<compile_context>
chip_gen: v7x
topology: tpu7x:2x2x1
jax: 0.10.0
libtpu: 0.0.40
codegen_flags: <defaults>
</compile_context>

<pallas_src>
import functools
import math

import jax
import jax.numpy as jnp
import numpy as np
from jax.experimental import pallas as pl
from jax.experimental.pallas import tpu as pltpu


def _round_up(v, m):
    return int(-(-v // m) * m)


# ----------------------------------------------------------------------------
# Uniform-knot Cox-de Boor recurrence on one small row chunk (stays in vregs).
# ----------------------------------------------------------------------------
def _uniform_bspline_bases(xc, grid_vals, spline_order, h_step):
    """xc: (chunk, in_pad) f32. Returns list of coeff basis arrays, same shape.

    Uniform, feature-shared knots => all knot constants are compile-time
    Python floats; every division is a constant multiply.
    """
    f32 = jnp.float32
    # level-0 from shared comparisons: B0_j = (x>=g[j]) - (x>=g[j+1])
    cmp = [(xc >= g).astype(f32) for g in grid_vals]
    bases = [cmp[j] - cmp[j + 1] for j in range(len(grid_vals) - 1)]
    for k in range(1, spline_order + 1):
        inv = 1.0 / (k * h_step)
        t = xc * inv                                    # shared across knots
        w = [t - (grid_vals[j] * inv) for j in range(len(bases))]
        v = [w[j] * bases[j] for j in range(len(bases))]
        bases = [v[j] + bases[j + 1] - v[j + 1] for j in range(len(bases) - 1)]
    return bases  # len == grid_size + spline_order


# ----------------------------------------------------------------------------
# Fused stack kernel: a run of layers in one pallas_call, tiled over rows.
# refs = (x_ref, [wb, wm, ws_flat]*L, o_ref, basis_slab, x_slab, silu_slab)
# ----------------------------------------------------------------------------
def _multkan_stack_kernel(*refs, layer_dims, grid_vals, spline_order, h_step,
                          mm_dtype, chunk):
    num_layers = len(layer_dims)
    x_ref = refs[0]
    w_refs = refs[1:1 + 3 * num_layers]
    o_ref = refs[1 + 3 * num_layers]
    basis_slab, x_slab, silu_slab = refs[2 + 3 * num_layers:]

    f32 = jnp.float32
    coeff = len(grid_vals) - 1 - spline_order   # grid_size + spline_order

    h = x_ref[...].astype(f32)                  # (tn, in_pad0)
    tn = h.shape[0]

    for li in range(num_layers):
        ip, op = layer_dims[li]
        wb = w_refs[3 * li][...]
        wm = w_refs[3 * li + 1][...]
        ws = w_refs[3 * li + 2][...]

        # ---- elementwise stage: SiLU + B-spline bases over small row chunks
        # so the basis pyramid never round-trips VMEM; only the final bases
        # (already at matmul precision) are stored into the scratch slabs.
        for c in range(tn // chunk):
            r0, r1 = c * chunk, (c + 1) * chunk
            xc = h[r0:r1]                                       # (chunk, ip)
            x_slab[r0:r1, :ip] = xc.astype(mm_dtype)
            silu_slab[r0:r1, :ip] = (xc * jax.nn.sigmoid(xc)).astype(mm_dtype)
            bases = _uniform_bspline_bases(xc, grid_vals, spline_order, h_step)
            for j, b in enumerate(bases):
                basis_slab[r0:r1, j * ip:(j + 1) * ip] = b.astype(mm_dtype)

        # ---- MXU stage: three matmuls straight from the mm-dtype slabs.
        # base_output = SiLU(x) @ base_weight^T
        base = jnp.dot(silu_slab[:, :ip], wb, preferred_element_type=f32)
        # mult_output = (x @ mult_weight^T) * base_output
        mult = jnp.dot(x_slab[:, :ip], wm, preferred_element_type=f32) * base
        # spline_output: one fused matmul with K = coeff * in_pad
        spline = jnp.dot(basis_slab[:, :coeff * ip], ws,
                         preferred_element_type=f32)
        h = base + spline + mult

    o_ref[...] = h.astype(o_ref.dtype)


# ----------------------------------------------------------------------------
# One fused pallas_call over a contiguous run of layers.
# ----------------------------------------------------------------------------
def _stack_call(x_p, layer_weights, layer_dims, *, tn, coeff, grid_vals,
                h_step, spline_order, mm_dtype, chunk, wt_bytes):
    n_pad, ip0 = x_p.shape
    op_last = layer_dims[-1][1]
    max_ip = max(ip for ip, _ in layer_dims)
    max_op = max(op for _, op in layer_dims)

    inputs = [x_p]
    in_specs = [pl.BlockSpec((tn, ip0), lambda i: (i, 0))]
    flops = 0
    transcendentals = 0
    weight_bytes_total = 0
    for (wb, wm, ws), (ip, op) in zip(layer_weights, layer_dims):
        inputs += [wb, wm, ws]
        in_specs += [
            pl.BlockSpec((ip, op), lambda i: (0, 0)),
            pl.BlockSpec((ip, op), lambda i: (0, 0)),
            pl.BlockSpec((coeff * ip, op), lambda i: (0, 0)),
        ]
        flops += 2 * n_pad * op * (2 * ip + coeff * ip)
        transcendentals += n_pad * ip                      # sigmoid / element
        weight_bytes_total += (2 + coeff) * ip * op * wt_bytes
    bytes_accessed = x_p.size * 4 + n_pad * op_last * 4 + weight_bytes_total

    kernel = functools.partial(
        _multkan_stack_kernel,
        layer_dims=tuple(layer_dims),
        grid_vals=grid_vals,
        spline_order=spline_order,
        h_step=h_step,
        mm_dtype=mm_dtype,
        chunk=chunk,
    )

    scratch_shapes = [
        pltpu.VMEM((tn, coeff * max_ip), mm_dtype),   # final B-spline bases
        pltpu.VMEM((tn, max_ip), mm_dtype),           # x at matmul precision
        pltpu.VMEM((tn, max_ip), mm_dtype),           # SiLU(x) at matmul precision
    ]

    # Explicit scoped-VMEM budget: double-buffered IO tiles + (double-buffered)
    # resident weights + scratch slabs + f32 intermediates + headroom.
    io_bytes = 2 * (tn * ip0 * 4) + 2 * (tn * op_last * 4)
    slab_bytes = (coeff + 2) * tn * max_ip * wt_bytes
    interm_bytes = 4 * tn * max_op * 4
    vmem_limit = int((2 * weight_bytes_total + io_bytes + slab_bytes
                      + interm_bytes) * 1.25) + (4 << 20)
    vmem_limit = min(max(vmem_limit, 16 << 20), 100 << 20)

    return pl.pallas_call(
        kernel,
        out_shape=jax.ShapeDtypeStruct((n_pad, op_last), jnp.float32),
        grid_spec=pltpu.PrefetchScalarGridSpec(
            num_scalar_prefetch=0,
            grid=(n_pad // tn,),
            in_specs=in_specs,
            out_specs=pl.BlockSpec((tn, op_last), lambda i: (i, 0)),
            scratch_shapes=scratch_shapes,
        ),
        compiler_params=pltpu.CompilerParams(
            dimension_semantics=("parallel",),
            vmem_limit_bytes=vmem_limit),
        cost_estimate=pl.CostEstimate(
            flops=int(flops),
            transcendentals=int(transcendentals),
            bytes_accessed=int(bytes_accessed)),
    )(*inputs)


# ----------------------------------------------------------------------------
# Wrapper: pads, prepares weights, groups layers, builds the pallas_call(s).
# ----------------------------------------------------------------------------
def multkan_forward(x, params, *, grid_size=5, spline_order=3,
                    grid_range=(-1.0, 1.0), tile_n=256, use_bf16=True,
                    vmem_budget_per_call=40 << 20):
    """Forward through the whole MultKAN stack with fused Pallas calls.

    x: (..., in_features) feature-last.
    params: list of dicts with 'base' (out,in), 'mult' (out,in),
            'spline' (out,in,coeff).
    """
    # TODO(synk): narrow layers (in_features < 128) still pay 128-lane padding
    # in the elementwise stage; folding rows into lanes for that stage would
    # need an in-kernel relayout and is left out for robustness.
    # TODO(synk): fp8 weights / single-buffered weight BlockSpecs (v7x-only
    # VMEM savings) are not used; wide stacks fall back to per-group calls.
    orig_shape = x.shape
    x2d = x.reshape(-1, orig_shape[-1]).astype(jnp.float32)
    N, in_f0 = x2d.shape
    coeff = grid_size + spline_order
    mm_dtype = jnp.bfloat16 if use_bf16 else jnp.float32
    wt_bytes = 2 if use_bf16 else 4

    dims = [in_f0] + [int(p["base"].shape[0]) for p in params]
    pdims = [_round_up(d, 128) for d in dims]       # lane-dense feature dims
    out_f_last = dims[-1]

    # Row tile: multiple of 8; shrink so the parallel grid has >=2 steps
    # (use both v7x TensorCores for small/medium N).
    assert tile_n % 8 == 0
    tn = int(tile_n)
    n_rows = max(N, 1)
    while tn > 8 and -(-n_rows // tn) < 2:
        tn = max(8, (tn // 2) // 8 * 8)
    n_pad = _round_up(n_rows, tn)
    chunk = 16 if tn % 16 == 0 else 8               # rows kept register-resident

    # Uniform extended knot grid as compile-time constants.
    h_step = (grid_range[1] - grid_range[0]) / grid_size
    grid_vals = tuple(float((j - spline_order) * h_step + grid_range[0])
                      for j in range(grid_size + 2 * spline_order + 1))

    x_p = jnp.zeros((n_pad, pdims[0]), jnp.float32).at[:N, :in_f0].set(x2d)

    # Padded, transposed, matmul-dtype weights per layer.
    layer_weights = []
    for li, p in enumerate(params):
        out_f, in_f = p["base"].shape
        ip, op = pdims[li], pdims[li + 1]
        wb_t = jnp.zeros((ip, op), jnp.float32).at[:in_f, :out_f].set(
            jnp.asarray(p["base"], jnp.float32).T)
        wm_t = jnp.zeros((ip, op), jnp.float32).at[:in_f, :out_f].set(
            jnp.asarray(p["mult"], jnp.float32).T)
        sw_cio = jnp.transpose(jnp.asarray(p["spline"], jnp.float32), (2, 1, 0))
        ws_flat = jnp.zeros((coeff, ip, op), jnp.float32).at[
            :, :in_f, :out_f].set(sw_cio).reshape(coeff * ip, op)
        layer_weights.append((wb_t.astype(mm_dtype), wm_t.astype(mm_dtype),
                              ws_flat.astype(mm_dtype)))

    # Group consecutive layers so each fused call's (double-buffered) resident
    # weight footprint stays under a conservative budget (v7x: 64 MiB VMEM/TC).
    def _layer_weight_bytes(li):
        ip, op = pdims[li], pdims[li + 1]
        return (2 + coeff) * ip * op * wt_bytes * 2
    groups, cur, cur_bytes = [], [], 0
    for li in range(len(params)):
        wbytes = _layer_weight_bytes(li)
        if cur and cur_bytes + wbytes > vmem_budget_per_call:
            groups.append(cur)
            cur, cur_bytes = [], 0
        cur.append(li)
        cur_bytes += wbytes
    if cur:
        groups.append(cur)

    h_p = x_p
    for group in groups:
        h_p = _stack_call(
            h_p,
            [layer_weights[li] for li in group],
            [(pdims[li], pdims[li + 1]) for li in group],
            tn=tn, coeff=coeff, grid_vals=grid_vals, h_step=h_step,
            spline_order=spline_order, mm_dtype=mm_dtype, chunk=chunk,
            wt_bytes=wt_bytes)

    out = h_p[:N, :out_f_last]
    return out.reshape(*orig_shape[:-1], out_f_last)


# ----------------------------------------------------------------------------
# Parameter init (shapes match the PyTorch module)
# ----------------------------------------------------------------------------
def init_multkan_params(key, layers_hidden, *, grid_size=5, spline_order=3,
                        scale_noise=0.1):
    # TODO(synk): PyTorch init fits spline_weight via lstsq (curve2coeff); here
    # we use small uniform noise of the same shape (init only; forward
    # semantics are unaffected).
    coeff = grid_size + spline_order
    params = []
    for i in range(len(layers_hidden) - 1):
        in_f, out_f = layers_hidden[i], layers_hidden[i + 1]
        key, k1, k2, k3 = jax.random.split(key, 4)
        bound = 1.0 / math.sqrt(in_f)
        base_w = jax.random.uniform(k1, (out_f, in_f), jnp.float32, -bound, bound)
        mult_w = jax.random.uniform(k2, (out_f, in_f), jnp.float32, -bound, bound)
        spline_w = jax.random.uniform(
            k3, (out_f, in_f, coeff), jnp.float32,
            -scale_noise / grid_size, scale_noise / grid_size)
        params.append(dict(base=base_w, mult=mult_w, spline=spline_w))
    return params


# ----------------------------------------------------------------------------
# Pure-JAX reference (mirrors the PyTorch forward) for correctness check
# ----------------------------------------------------------------------------
def _ref_layer(x, base_w, mult_w, spline_w, *, grid_size, spline_order,
               grid_range=(-1.0, 1.0)):
    in_f = x.shape[-1]
    h = (grid_range[1] - grid_range[0]) / grid_size
    g = (jnp.arange(-spline_order, grid_size + spline_order + 1,
                    dtype=jnp.float32) * h + grid_range[0])
    grid = jnp.broadcast_to(g, (in_f, g.shape[0]))

    xe = x[:, :, None]
    bases = ((xe >= grid[:, :-1]) & (xe < grid[:, 1:])).astype(x.dtype)
    for k in range(1, spline_order + 1):
        bases = ((xe - grid[:, : -(k + 1)])
                 / (grid[:, k:-1] - grid[:, : -(k + 1)]) * bases[:, :, :-1]
                 + (grid[:, k + 1:] - xe)
                 / (grid[:, k + 1:] - grid[:, 1:-k]) * bases[:, :, 1:])
    base_out = jax.nn.silu(x) @ base_w.T
    spline_out = bases.reshape(x.shape[0], -1) @ spline_w.reshape(
        spline_w.shape[0], -1).T
    mult_out = (x @ mult_w.T) * base_out
    return base_out + spline_out + mult_out


def multkan_reference(x, params, *, grid_size=5, spline_order=3):
    orig_shape = x.shape
    h = x.reshape(-1, orig_shape[-1]).astype(jnp.float32)
    for p in params:
        h = _ref_layer(h, p["base"], p["mult"], p["spline"],
                       grid_size=grid_size, spline_order=spline_order)
    return h.reshape(*orig_shape[:-1], h.shape[-1])


# ----------------------------------------------------------------------------
if __name__ == "__main__":
    key = jax.random.PRNGKey(0)
    layers_hidden = [32, 64, 32]
    grid_size, spline_order = 5, 3

    kx, kp = jax.random.split(key)
    # small input: batch=4, seq=8, features=32 (feature-last layout)
    x = jax.random.uniform(kx, (4, 8, layers_hidden[0]), jnp.float32,
                           minval=-1.0, maxval=1.0)
    params = init_multkan_params(kp, layers_hidden,
                                 grid_size=grid_size,
                                 spline_order=spline_order)

    ref = multkan_reference(x, params, grid_size=grid_size,
                            spline_order=spline_order)

    # Exact-precision path (f32 matmul boundary): tight check vs reference.
    out_f32 = jax.block_until_ready(
        multkan_forward(x, params, grid_size=grid_size,
                        spline_order=spline_order, use_bf16=False))
    assert out_f32.shape == (4, 8, layers_hidden[-1])
    np.testing.assert_allclose(np.asarray(out_f32), np.asarray(ref),
                               rtol=2e-4, atol=2e-4)

    # Default path: bf16 at the matmul boundary (MXU-native on v5e/v6e/v7x),
    # basis math + accumulation in f32; loose sanity check.
    out = jax.block_until_ready(
        multkan_forward(x, params, grid_size=grid_size,
                        spline_order=spline_order))
    assert out.shape == (4, 8, layers_hidden[-1])
    err = float(np.max(np.abs(np.asarray(out) - np.asarray(ref))))
    scale = float(np.max(np.abs(np.asarray(ref)))) + 1e-6
    assert np.isfinite(err) and err / scale < 0.1

    print("KERNEL_OK")
</pallas_src>

<mosaic_0001>
module attributes {stable_mosaic.version = 11 : i64} {
  func.func @_multkan_stack_kernel(%arg0: i32, %arg1: memref<16x128xf32, #tpu.memory_space<vmem>>, %arg2: memref<128x128xf32, #tpu.memory_space<vmem>>, %arg3: memref<128x128xf32, #tpu.memory_space<vmem>>, %arg4: memref<1024x128xf32, #tpu.memory_space<vmem>>, %arg5: memref<128x128xf32, #tpu.memory_space<vmem>>, %arg6: memref<128x128xf32, #tpu.memory_space<vmem>>, %arg7: memref<1024x128xf32, #tpu.memory_space<vmem>>, %arg8: memref<16x128xf32, #tpu.memory_space<vmem>>, %arg9: memref<16x1024xf32, #tpu.memory_space<vmem>>, %arg10: memref<16x128xf32, #tpu.memory_space<vmem>>, %arg11: memref<16x128xf32, #tpu.memory_space<vmem>>) attributes {dimension_semantics = [#tpu.dimension_semantics<parallel>], iteration_bounds = array<i64: 2>, scalar_prefetch = 0 : i64, scratch_operands = 3 : i64, tpu.core_type = #tpu.core_type<tc>, window_params = [{transform_indices = @transform_0, window_bounds = array<i64: 16, 128>}, {pipeline_mode = #tpu.pipeline_mode<synchronous>, transform_indices = @transform_1, window_bounds = array<i64: 128, 128>}, {pipeline_mode = #tpu.pipeline_mode<synchronous>, transform_indices = @transform_2, window_bounds = array<i64: 128, 128>}, {pipeline_mode = #tpu.pipeline_mode<synchronous>, transform_indices = @transform_3, window_bounds = array<i64: 1024, 128>}, {pipeline_mode = #tpu.pipeline_mode<synchronous>, transform_indices = @transform_4, window_bounds = array<i64: 128, 128>}, {pipeline_mode = #tpu.pipeline_mode<synchronous>, transform_indices = @transform_5, window_bounds = array<i64: 128, 128>}, {pipeline_mode = #tpu.pipeline_mode<synchronous>, transform_indices = @transform_6, window_bounds = array<i64: 1024, 128>}, {transform_indices = @transform_7, window_bounds = array<i64: 16, 128>}]} {
    %c0 = arith.constant 0 : index
    %c0_0 = arith.constant 0 : index
    %0 = vector.load %arg1[%c0, %c0_0] : memref<16x128xf32, #tpu.memory_space<vmem>>, vector<16x128xf32>
    %c0_1 = arith.constant 0 : index
    %c0_2 = arith.constant 0 : index
    %1 = vector.load %arg2[%c0_1, %c0_2] : memref<128x128xf32, #tpu.memory_space<vmem>>, vector<128x128xf32>
    %c0_3 = arith.constant 0 : index
    %c0_4 = arith.constant 0 : index
    %2 = vector.load %arg3[%c0_3, %c0_4] : memref<128x128xf32, #tpu.memory_space<vmem>>, vector<128x128xf32>
    %c0_5 = arith.constant 0 : index
    %c0_6 = arith.constant 0 : index
    %3 = vector.load %arg4[%c0_5, %c0_6] : memref<1024x128xf32, #tpu.memory_space<vmem>>, vector<1024x128xf32>
    %c0_7 = arith.constant 0 : index
    %c0_8 = arith.constant 0 : index
    %4 = vector.load %arg10[%c0_7, %c0_8] : memref<16x128xf32, #tpu.memory_space<vmem>>, vector<16x128xf32>
    tpu.vector_store %arg10[%c0_7, %c0_8], %0 {strides = array<i32>} : memref<16x128xf32, #tpu.memory_space<vmem>>, vector<16x128xf32>,
    %5 = arith.negf %0 : vector<16x128xf32>
    %6 = math.exp %5 : vector<16x128xf32>
    %cst = arith.constant 1.000000e+00 : f32
    %7 = vector.broadcast %cst : f32 to vector<16x128xf32>
    %8 = arith.addf %7, %6 : vector<16x128xf32>
    %9 = arith.divf %7, %8 : vector<16x128xf32>
    %10 = arith.mulf %0, %9 : vector<16x128xf32>
    %c0_9 = arith.constant 0 : index
    %c0_10 = arith.constant 0 : index
    %11 = vector.load %arg11[%c0_9, %c0_10] : memref<16x128xf32, #tpu.memory_space<vmem>>, vector<16x128xf32>
    tpu.vector_store %arg11[%c0_9, %c0_10], %10 {strides = array<i32>} : memref<16x128xf32, #tpu.memory_space<vmem>>, vector<16x128xf32>,
    %cst_11 = arith.constant -2.200000e+00 : f32
    %12 = vector.broadcast %cst_11 : f32 to vector<16x128xf32>
    %13 = arith.cmpf oge, %0, %12 : vector<16x128xf32>
    %14 = arith.extui %13 : vector<16x128xi1> to vector<16x128xi32>
    %15 = arith.sitofp %14 : vector<16x128xi32> to vector<16x128xf32>
    %cst_12 = arith.constant -1.800000e+00 : f32
    %16 = vector.broadcast %cst_12 : f32 to vector<16x128xf32>
    %17 = arith.cmpf oge, %0, %16 : vector<16x128xf32>
    %18 = arith.extui %17 : vector<16x128xi1> to vector<16x128xi32>
    %19 = arith.sitofp %18 : vector<16x128xi32> to vector<16x128xf32>
    %cst_13 = arith.constant -1.400000e+00 : f32
    %20 = vector.broadcast %cst_13 : f32 to vector<16x128xf32>
    %21 = arith.cmpf oge, %0, %20 : vector<16x128xf32>
    %22 = arith.extui %21 : vector<16x128xi1> to vector<16x128xi32>
    %23 = arith.sitofp %22 : vector<16x128xi32> to vector<16x128xf32>
    %cst_14 = arith.constant -1.000000e+00 : f32
    %24 = vector.broadcast %cst_14 : f32 to vector<16x128xf32>
    %25 = arith.cmpf oge, %0, %24 : vector<16x128xf32>
    %26 = arith.extui %25 : vector<16x128xi1> to vector<16x128xi32>
    %27 = arith.sitofp %26 : vector<16x128xi32> to vector<16x128xf32>
    %cst_15 = arith.constant -6.000000e-01 : f32
    %28 = vector.broadcast %cst_15 : f32 to vector<16x128xf32>
    %29 = arith.cmpf oge, %0, %28 : vector<16x128xf32>
    %30 = arith.extui %29 : vector<16x128xi1> to vector<16x128xi32>
    %31 = arith.sitofp %30 : vector<16x128xi32> to vector<16x128xf32>
    %cst_16 = arith.constant -2.000000e-01 : f32
    %32 = vector.broadcast %cst_16 : f32 to vector<16x128xf32>
    %33 = arith.cmpf oge, %0, %32 : vector<16x128xf32>
    %34 = arith.extui %33 : vector<16x128xi1> to vector<16x128xi32>
    %35 = arith.sitofp %34 : vector<16x128xi32> to vector<16x128xf32>
    %cst_17 = arith.constant 2.000000e-01 : f32
    %36 = vector.broadcast %cst_17 : f32 to vector<16x128xf32>
    %37 = arith.cmpf oge, %0, %36 : vector<16x128xf32>
    %38 = arith.extui %37 : vector<16x128xi1> to vector<16x128xi32>
    %39 = arith.sitofp %38 : vector<16x128xi32> to vector<16x128xf32>
    %cst_18 = arith.constant 6.000000e-01 : f32
    %40 = vector.broadcast %cst_18 : f32 to vector<16x128xf32>
    %41 = arith.cmpf oge, %0, %40 : vector<16x128xf32>
    %42 = arith.extui %41 : vector<16x128xi1> to vector<16x128xi32>
    %43 = arith.sitofp %42 : vector<16x128xi32> to vector<16x128xf32>
    %cst_19 = arith.constant 1.000000e+00 : f32
    %44 = vector.broadcast %cst_19 : f32 to vector<16x128xf32>
    %45 = arith.cmpf oge, %0, %44 : vector<16x128xf32>
    %46 = arith.extui %45 : vector<16x128xi1> to vector<16x128xi32>
    %47 = arith.sitofp %46 : vector<16x128xi32> to vector<16x128xf32>
    %cst_20 = arith.constant 1.400000e+00 : f32
    %48 = vector.broadcast %cst_20 : f32 to vector<16x128xf32>
    %49 = arith.cmpf oge, %0, %48 : vector<16x128xf32>
    %50 = arith.extui %49 : vector<16x128xi1> to vector<16x128xi32>
    %51 = arith.sitofp %50 : vector<16x128xi32> to vector<16x128xf32>
    %cst_21 = arith.constant 1.800000e+00 : f32
    %52 = vector.broadcast %cst_21 : f32 to vector<16x128xf32>
    %53 = arith.cmpf oge, %0, %52 : vector<16x128xf32>
    %54 = arith.extui %53 : vector<16x128xi1> to vector<16x128xi32>
    %55 = arith.sitofp %54 : vector<16x128xi32> to vector<16x128xf32>
    %cst_22 = arith.constant 2.200000e+00 : f32
    %56 = vector.broadcast %cst_22 : f32 to vector<16x128xf32>
    %57 = arith.cmpf oge, %0, %56 : vector<16x128xf32>
    %58 = arith.extui %57 : vector<16x128xi1> to vector<16x128xi32>
    %59 = arith.sitofp %58 : vector<16x128xi32> to vector<16x128xf32>
    %60 = arith.subf %15, %19 : vector<16x128xf32>
    %61 = arith.subf %19, %23 : vector<16x128xf32>
    %62 = arith.subf %23, %27 : vector<16x128xf32>
    %63 = arith.subf %27, %31 : vector<16x128xf32>
    %64 = arith.subf %31, %35 : vector<16x128xf32>
    %65 = arith.subf %35, %39 : vector<16x128xf32>
    %66 = arith.subf %39, %43 : vector<16x128xf32>
    %67 = arith.subf %43, %47 : vector<16x128xf32>
    %68 = arith.subf %47, %51 : vector<16x128xf32>
    %69 = arith.subf %51, %55 : vector<16x128xf32>
    %70 = arith.subf %55, %59 : vector<16x128xf32>
    %cst_23 = arith.constant 2.500000e+00 : f32
    %71 = vector.broadcast %cst_23 : f32 to vector<16x128xf32>
    %72 = arith.mulf %0, %71 : vector<16x128xf32>
    %cst_24 = arith.constant -5.500000e+00 : f32
    %73 = vector.broadcast %cst_24 : f32 to vector<16x128xf32>
    %74 = arith.subf %72, %73 : vector<16x128xf32>
    %cst_25 = arith.constant -4.500000e+00 : f32
    %75 = vector.broadcast %cst_25 : f32 to vector<16x128xf32>
    %76 = arith.subf %72, %75 : vector<16x128xf32>
    %cst_26 = arith.constant -3.500000e+00 : f32
    %77 = vector.broadcast %cst_26 : f32 to vector<16x128xf32>
    %78 = arith.subf %72, %77 : vector<16x128xf32>
    %cst_27 = arith.constant -2.500000e+00 : f32
    %79 = vector.broadcast %cst_27 : f32 to vector<16x128xf32>
    %80 = arith.subf %72, %79 : vector<16x128xf32>
    %cst_28 = arith.constant -1.500000e+00 : f32
    %81 = vector.broadcast %cst_28 : f32 to vector<16x128xf32>
    %82 = arith.subf %72, %81 : vector<16x128xf32>
    %cst_29 = arith.constant -5.000000e-01 : f32
    %83 = vector.broadcast %cst_29 : f32 to vector<16x128xf32>
    %84 = arith.subf %72, %83 : vector<16x128xf32>
    %cst_30 = arith.constant 5.000000e-01 : f32
    %85 = vector.broadcast %cst_30 : f32 to vector<16x128xf32>
    %86 = arith.subf %72, %85 : vector<16x128xf32>
    %cst_31 = arith.constant 1.500000e+00 : f32
    %87 = vector.broadcast %cst_31 : f32 to vector<16x128xf32>
    %88 = arith.subf %72, %87 : vector<16x128xf32>
    %cst_32 = arith.constant 2.500000e+00 : f32
    %89 = vector.broadcast %cst_32 : f32 to vector<16x128xf32>
    %90 = arith.subf %72, %89 : vector<16x128xf32>
    %cst_33 = arith.constant 3.500000e+00 : f32
    %91 = vector.broadcast %cst_33 : f32 to vector<16x128xf32>
    %92 = arith.subf %72, %91 : vector<16x128xf32>
    %cst_34 = arith.constant 4.500000e+00 : f32
    %93 = vector.broadcast %cst_34 : f32 to vector<16x128xf32>
    %94 = arith.subf %72, %93 : vector<16x128xf32>
    %95 = arith.mulf %74, %60 : vector<16x128xf32>
    %96 = arith.mulf %76, %61 : vector<16x128xf32>
    %97 = arith.mulf %78, %62 : vector<16x128xf32>
    %98 = arith.mulf %80, %63 : vector<16x128xf32>
    %99 = arith.mulf %82, %64 : vector<16x128xf32>
    %100 = arith.mulf %84, %65 : vector<16x128xf32>
    %101 = arith.mulf %86, %66 : vector<16x128xf32>
    %102 = arith.mulf %88, %67 : vector<16x128xf32>
    %103 = arith.mulf %90, %68 : vector<16x128xf32>
    %104 = arith.mulf %92, %69 : vector<16x128xf32>
    %105 = arith.mulf %94, %70 : vector<16x128xf32>
    %106 = arith.addf %95, %61 : vector<16x128xf32>
    %107 = arith.subf %106, %96 : vector<16x128xf32>
    %108 = arith.addf %96, %62 : vector<16x128xf32>
    %109 = arith.subf %108, %97 : vector<16x128xf32>
    %110 = arith.addf %97, %63 : vector<16x128xf32>
    %111 = arith.subf %110, %98 : vector<16x128xf32>
    %112 = arith.addf %98, %64 : vector<16x128xf32>
    %113 = arith.subf %112, %99 : vector<16x128xf32>
    %114 = arith.addf %99, %65 : vector<16x128xf32>
    %115 = arith.subf %114, %100 : vector<16x128xf32>
    %116 = arith.addf %100, %66 : vector<16x128xf32>
    %117 = arith.subf %116, %101 : vector<16x128xf32>
    %118 = arith.addf %101, %67 : vector<16x128xf32>
    %119 = arith.subf %118, %102 : vector<16x128xf32>
    %120 = arith.addf %102, %68 : vector<16x128xf32>
    %121 = arith.subf %120, %103 : vector<16x128xf32>
    %122 = arith.addf %103, %69 : vector<16x128xf32>
    %123 = arith.subf %122, %104 : vector<16x128xf32>
    %124 = arith.addf %104, %70 : vector<16x128xf32>
    %125 = arith.subf %124, %105 : vector<16x128xf32>
    %cst_35 = arith.constant 1.250000e+00 : f32
    %126 = vector.broadcast %cst_35 : f32 to vector<16x128xf32>
    %127 = arith.mulf %0, %126 : vector<16x128xf32>
    %cst_36 = arith.constant -2.750000e+00 : f32
    %128 = vector.broadcast %cst_36 : f32 to vector<16x128xf32>
    %129 = arith.subf %127, %128 : vector<16x128xf32>
    %cst_37 = arith.constant -2.250000e+00 : f32
    %130 = vector.broadcast %cst_37 : f32 to vector<16x128xf32>
    %131 = arith.subf %127, %130 : vector<16x128xf32>
    %cst_38 = arith.constant -1.750000e+00 : f32
    %132 = vector.broadcast %cst_38 : f32 to vector<16x128xf32>
    %133 = arith.subf %127, %132 : vector<16x128xf32>
    %cst_39 = arith.constant -1.250000e+00 : f32
    %134 = vector.broadcast %cst_39 : f32 to vector<16x128xf32>
    %135 = arith.subf %127, %134 : vector<16x128xf32>
    %cst_40 = arith.constant -7.500000e-01 : f32
    %136 = vector.broadcast %cst_40 : f32 to vector<16x128xf32>
    %137 = arith.subf %127, %136 : vector<16x128xf32>
    %cst_41 = arith.constant -2.500000e-01 : f32
    %138 = vector.broadcast %cst_41 : f32 to vector<16x128xf32>
    %139 = arith.subf %127, %138 : vector<16x128xf32>
    %cst_42 = arith.constant 2.500000e-01 : f32
    %140 = vector.broadcast %cst_42 : f32 to vector<16x128xf32>
    %141 = arith.subf %127, %140 : vector<16x128xf32>
    %cst_43 = arith.constant 7.500000e-01 : f32
    %142 = vector.broadcast %cst_43 : f32 to vector<16x128xf32>
    %143 = arith.subf %127, %142 : vector<16x128xf32>
    %cst_44 = arith.constant 1.250000e+00 : f32
    %144 = vector.broadcast %cst_44 : f32 to vector<16x128xf32>
    %145 = arith.subf %127, %144 : vector<16x128xf32>
    %cst_45 = arith.constant 1.750000e+00 : f32
    %146 = vector.broadcast %cst_45 : f32 to vector<16x128xf32>
    %147 = arith.subf %127, %146 : vector<16x128xf32>
    %148 = arith.mulf %129, %107 : vector<16x128xf32>
    %149 = arith.mulf %131, %109 : vector<16x128xf32>
    %150 = arith.mulf %133, %111 : vector<16x128xf32>
    %151 = arith.mulf %135, %113 : vector<16x128xf32>
    %152 = arith.mulf %137, %115 : vector<16x128xf32>
    %153 = arith.mulf %139, %117 : vector<16x128xf32>
    %154 = arith.mulf %141, %119 : vector<16x128xf32>
    %155 = arith.mulf %143, %121 : vector<16x128xf32>
    %156 = arith.mulf %145, %123 : vector<16x128xf32>
    %157 = arith.mulf %147, %125 : vector<16x128xf32>
    %158 = arith.addf %148, %109 : vector<16x128xf32>
    %159 = arith.subf %158, %149 : vector<16x128xf32>
    %160 = arith.addf %149, %111 : vector<16x128xf32>
    %161 = arith.subf %160, %150 : vector<16x128xf32>
    %162 = arith.addf %150, %113 : vector<16x128xf32>
    %163 = arith.subf %162, %151 : vector<16x128xf32>
    %164 = arith.addf %151, %115 : vector<16x128xf32>
    %165 = arith.subf %164, %152 : vector<16x128xf32>
    %166 = arith.addf %152, %117 : vector<16x128xf32>
    %167 = arith.subf %166, %153 : vector<16x128xf32>
    %168 = arith.addf %153, %119 : vector<16x128xf32>
    %169 = arith.subf %168, %154 : vector<16x128xf32>
    %170 = arith.addf %154, %121 : vector<16x128xf32>
    %171 = arith.subf %170, %155 : vector<16x128xf32>
    %172 = arith.addf %155, %123 : vector<16x128xf32>
    %173 = arith.subf %172, %156 : vector<16x128xf32>
    %174 = arith.addf %156, %125 : vector<16x128xf32>
    %175 = arith.subf %174, %157 : vector<16x128xf32>
    %cst_46 = arith.constant 0.833333313 : f32
    %176 = vector.broadcast %cst_46 : f32 to vector<16x128xf32>
    %177 = arith.mulf %0, %176 : vector<16x128xf32>
    %cst_47 = arith.constant -1.83333337 : f32
    %178 = vector.broadcast %cst_47 : f32 to vector<16x128xf32>
    %179 = arith.subf %177, %178 : vector<16x128xf32>
    %cst_48 = arith.constant -1.500000e+00 : f32
    %180 = vector.broadcast %cst_48 : f32 to vector<16x128xf32>
    %181 = arith.subf %177, %180 : vector<16x128xf32>
    %cst_49 = arith.constant -1.16666663 : f32
    %182 = vector.broadcast %cst_49 : f32 to vector<16x128xf32>
    %183 = arith.subf %177, %182 : vector<16x128xf32>
    %cst_50 = arith.constant -0.833333313 : f32
    %184 = vector.broadcast %cst_50 : f32 to vector<16x128xf32>
    %185 = arith.subf %177, %184 : vector<16x128xf32>
    %cst_51 = arith.constant -5.000000e-01 : f32
    %186 = vector.broadcast %cst_51 : f32 to vector<16x128xf32>
    %187 = arith.subf %177, %186 : vector<16x128xf32>
    %cst_52 = arith.constant -0.166666672 : f32
    %188 = vector.broadcast %cst_52 : f32 to vector<16x128xf32>
    %189 = arith.subf %177, %188 : vector<16x128xf32>
    %cst_53 = arith.constant 0.166666672 : f32
    %190 = vector.broadcast %cst_53 : f32 to vector<16x128xf32>
    %191 = arith.subf %177, %190 : vector<16x128xf32>
    %cst_54 = arith.constant 5.000000e-01 : f32
    %192 = vector.broadcast %cst_54 : f32 to vector<16x128xf32>
    %193 = arith.subf %177, %192 : vector<16x128xf32>
    %cst_55 = arith.constant 0.833333313 : f32
    %194 = vector.broadcast %cst_55 : f32 to vector<16x128xf32>
    %195 = arith.subf %177, %194 : vector<16x128xf32>
    %196 = arith.mulf %179, %159 : vector<16x128xf32>
    %197 = arith.mulf %181, %161 : vector<16x128xf32>
    %198 = arith.mulf %183, %163 : vector<16x128xf32>
    %199 = arith.mulf %185, %165 : vector<16x128xf32>
    %200 = arith.mulf %187, %167 : vector<16x128xf32>
    %201 = arith.mulf %189, %169 : vector<16x128xf32>
    %202 = arith.mulf %191, %171 : vector<16x128xf32>
    %203 = arith.mulf %193, %173 : vector<16x128xf32>
    %204 = arith.mulf %195, %175 : vector<16x128xf32>
    %205 = arith.addf %196, %161 : vector<16x128xf32>
    %206 = arith.subf %205, %197 : vector<16x128xf32>
    %207 = arith.addf %197, %163 : vector<16x128xf32>
    %208 = arith.subf %207, %198 : vector<16x128xf32>
    %209 = arith.addf %198, %165 : vector<16x128xf32>
    %210 = arith.subf %209, %199 : vector<16x128xf32>
    %211 = arith.addf %199, %167 : vector<16x128xf32>
    %212 = arith.subf %211, %200 : vector<16x128xf32>
    %213 = arith.addf %200, %169 : vector<16x128xf32>
    %214 = arith.subf %213, %201 : vector<16x128xf32>
    %215 = arith.addf %201, %171 : vector<16x128xf32>
    %216 = arith.subf %215, %202 : vector<16x128xf32>
    %217 = arith.addf %202, %173 : vector<16x128xf32>
    %218 = arith.subf %217, %203 : vector<16x128xf32>
    %219 = arith.addf %203, %175 : vector<16x128xf32>
    %220 = arith.subf %219, %204 : vector<16x128xf32>
    %c0_56 = arith.constant 0 : index
    %c0_57 = arith.constant 0 : index
    %221 = vector.load %arg9[%c0_56, %c0_57] : memref<16x1024xf32, #tpu.memory_space<vmem>>, vector<16x128xf32>
    tpu.vector_store %arg9[%c0_56, %c0_57], %206 {strides = array<i32>} : memref<16x1024xf32, #tpu.memory_space<vmem>>, vector<16x128xf32>,
    %c0_58 = arith.constant 0 : index
    %c128 = arith.constant 128 : index
    %222 = vector.load %arg9[%c0_58, %c128] : memref<16x1024xf32, #tpu.memory_space<vmem>>, vector<16x128xf32>
    tpu.vector_store %arg9[%c0_58, %c128], %208 {strides = array<i32>} : memref<16x1024xf32, #tpu.memory_space<vmem>>, vector<16x128xf32>,
    %c0_59 = arith.constant 0 : index
    %c256 = arith.constant 256 : index
    %223 = vector.load %arg9[%c0_59, %c256] : memref<16x1024xf32, #tpu.memory_space<vmem>>, vector<16x128xf32>
    tpu.vector_store %arg9[%c0_59, %c256], %210 {strides = array<i32>} : memref<16x1024xf32, #tpu.memory_space<vmem>>, vector<16x128xf32>,
    %c0_60 = arith.constant 0 : index
    %c384 = arith.constant 384 : index
    %224 = vector.load %arg9[%c0_60, %c384] : memref<16x1024xf32, #tpu.memory_space<vmem>>, vector<16x128xf32>
    tpu.vector_store %arg9[%c0_60, %c384], %212 {strides = array<i32>} : memref<16x1024xf32, #tpu.memory_space<vmem>>, vector<16x128xf32>,
    %c0_61 = arith.constant 0 : index
    %c512 = arith.constant 512 : index
    %225 = vector.load %arg9[%c0_61, %c512] : memref<16x1024xf32, #tpu.memory_space<vmem>>, vector<16x128xf32>
    tpu.vector_store %arg9[%c0_61, %c512], %214 {strides = array<i32>} : memref<16x1024xf32, #tpu.memory_space<vmem>>, vector<16x128xf32>,
    %c0_62 = arith.constant 0 : index
    %c640 = arith.constant 640 : index
    %226 = vector.load %arg9[%c0_62, %c640] : memref<16x1024xf32, #tpu.memory_space<vmem>>, vector<16x128xf32>
    tpu.vector_store %arg9[%c0_62, %c640], %216 {strides = array<i32>} : memref<16x1024xf32, #tpu.memory_space<vmem>>, vector<16x128xf32>,
    %c0_63 = arith.constant 0 : index
    %c768 = arith.constant 768 : index
    %227 = vector.load %arg9[%c0_63, %c768] : memref<16x1024xf32, #tpu.memory_space<vmem>>, vector<16x128xf32>
    tpu.vector_store %arg9[%c0_63, %c768], %218 {strides = array<i32>} : memref<16x1024xf32, #tpu.memory_space<vmem>>, vector<16x128xf32>,
    %c0_64 = arith.constant 0 : index
    %c896 = arith.constant 896 : index
    %228 = vector.load %arg9[%c0_64, %c896] : memref<16x1024xf32, #tpu.memory_space<vmem>>, vector<16x128xf32>
    tpu.vector_store %arg9[%c0_64, %c896], %220 {strides = array<i32>} : memref<16x1024xf32, #tpu.memory_space<vmem>>, vector<16x128xf32>,
    %c0_65 = arith.constant 0 : index
    %c0_66 = arith.constant 0 : index
    %229 = vector.load %arg11[%c0_65, %c0_66] : memref<16x128xf32, #tpu.memory_space<vmem>>, vector<16x128xf32>
    %cst_67 = arith.constant dense<0.000000e+00> : vector<16x128xf32>
    %230 = tpu.matmul %229, %1, %cst_67 {dimension_numbers = #tpu.dot_dimension_numbers<[1], [0], [0], [1], [0, 0, 1, 1], [], []>} : vector<16x128xf32>, vector<128x128xf32>, vector<16x128xf32> -> vector<16x128xf32>
    %c0_68 = arith.constant 0 : index
    %c0_69 = arith.constant 0 : index
    %231 = vector.load %arg10[%c0_68, %c0_69] : memref<16x128xf32, #tpu.memory_space<vmem>>, vector<16x128xf32>
    %cst_70 = arith.constant dense<0.000000e+00> : vector<16x128xf32>
    %232 = tpu.matmul %231, %2, %cst_70 {dimension_numbers = #tpu.dot_dimension_numbers<[1], [0], [0], [1], [0, 0, 1, 1], [], []>} : vector<16x128xf32>, vector<128x128xf32>, vector<16x128xf32> -> vector<16x128xf32>
    %233 = arith.mulf %232, %230 : vector<16x128xf32>
    %c0_71 = arith.constant 0 : index
    %c0_72 = arith.constant 0 : index
    %234 = vector.load %arg9[%c0_71, %c0_72] : memref<16x1024xf32, #tpu.memory_space<vmem>>, vector<16x1024xf32>
    %cst_73 = arith.constant dense<0.000000e+00> : vector<16x128xf32>
    %235 = tpu.matmul %234, %3, %cst_73 {dimension_numbers = #tpu.dot_dimension_numbers<[1], [0], [0], [1], [0, 0, 1, 1], [], []>} : vector<16x1024xf32>, vector<1024x128xf32>, vector<16x128xf32> -> vector<16x128xf32>
    %236 = arith.addf %230, %235 : vector<16x128xf32>
    %237 = arith.addf %236, %233 : vector<16x128xf32>
    %c0_74 = arith.constant 0 : index
    %c0_75 = arith.constant 0 : index
    %238 = vector.load %arg5[%c0_74, %c0_75] : memref<128x128xf32, #tpu.memory_space<vmem>>, vector<128x128xf32>
    %c0_76 = arith.constant 0 : index
    %c0_77 = arith.constant 0 : index
    %239 = vector.load %arg6[%c0_76, %c0_77] : memref<128x128xf32, #tpu.memory_space<vmem>>, vector<128x128xf32>
    %c0_78 = arith.constant 0 : index
    %c0_79 = arith.constant 0 : index
    %240 = vector.load %arg7[%c0_78, %c0_79] : memref<1024x128xf32, #tpu.memory_space<vmem>>, vector<1024x128xf32>
    %c0_80 = arith.constant 0 : index
    %c0_81 = arith.constant 0 : index
    %241 = vector.load %arg10[%c0_80, %c0_81] : memref<16x128xf32, #tpu.memory_space<vmem>>, vector<16x128xf32>
    tpu.vector_store %arg10[%c0_80, %c0_81], %237 {strides = array<i32>} : memref<16x128xf32, #tpu.memory_space<vmem>>, vector<16x128xf32>,
    %242 = arith.negf %237 : vector<16x128xf32>
    %243 = math.exp %242 : vector<16x128xf32>
    %cst_82 = arith.constant 1.000000e+00 : f32
    %244 = vector.broadcast %cst_82 : f32 to vector<16x128xf32>
    %245 = arith.addf %244, %243 : vector<16x128xf32>
    %246 = arith.divf %244, %245 : vector<16x128xf32>
    %247 = arith.mulf %237, %246 : vector<16x128xf32>
    %c0_83 = arith.constant 0 : index
    %c0_84 = arith.constant 0 : index
    %248 = vector.load %arg11[%c0_83, %c0_84] : memref<16x128xf32, #tpu.memory_space<vmem>>, vector<16x128xf32>
    tpu.vector_store %arg11[%c0_83, %c0_84], %247 {strides = array<i32>} : memref<16x128xf32, #tpu.memory_space<vmem>>, vector<16x128xf32>,
    %cst_85 = arith.constant -2.200000e+00 : f32
    %249 = vector.broadcast %cst_85 : f32 to vector<16x128xf32>
    %250 = arith.cmpf oge, %237, %249 : vector<16x128xf32>
    %251 = arith.extui %250 : vector<16x128xi1> to vector<16x128xi32>
    %252 = arith.sitofp %251 : vector<16x128xi32> to vector<16x128xf32>
    %cst_86 = arith.constant -1.800000e+00 : f32
    %253 = vector.broadcast %cst_86 : f32 to vector<16x128xf32>
    %254 = arith.cmpf oge, %237, %253 : vector<16x128xf32>
    %255 = arith.extui %254 : vector<16x128xi1> to vector<16x128xi32>
    %256 = arith.sitofp %255 : vector<16x128xi32> to vector<16x128xf32>
    %cst_87 = arith.constant -1.400000e+00 : f32
    %257 = vector.broadcast %cst_87 : f32 to vector<16x128xf32>
    %258 = arith.cmpf oge, %237, %257 : vector<16x128xf32>
    %259 = arith.extui %258 : vector<16x128xi1> to vector<16x128xi32>
    %260 = arith.sitofp %259 : vector<16x128xi32> to vector<16x128xf32>
    %cst_88 = arith.constant -1.000000e+00 : f32
    %261 = vector.broadcast %cst_88 : f32 to vector<16x128xf32>
    %262 = arith.cmpf oge, %237, %261 : vector<16x128xf32>
    %263 = arith.extui %262 : vector<16x128xi1> to vector<16x128xi32>
    %264 = arith.sitofp %263 : vector<16x128xi32> to vector<16x128xf32>
    %cst_89 = arith.constant -6.000000e-01 : f32
    %265 = vector.broadcast %cst_89 : f32 to vector<16x128xf32>
    %266 = arith.cmpf oge, %237, %265 : vector<16x128xf32>
    %267 = arith.extui %266 : vector<16x128xi1> to vector<16x128xi32>
    %268 = arith.sitofp %267 : vector<16x128xi32> to vector<16x128xf32>
    %cst_90 = arith.constant -2.000000e-01 : f32
    %269 = vector.broadcast %cst_90 : f32 to vector<16x128xf32>
    %270 = arith.cmpf oge, %237, %269 : vector<16x128xf32>
    %271 = arith.extui %270 : vector<16x128xi1> to vector<16x128xi32>
    %272 = arith.sitofp %271 : vector<16x128xi32> to vector<16x128xf32>
    %cst_91 = arith.constant 2.000000e-01 : f32
    %273 = vector.broadcast %cst_91 : f32 to vector<16x128xf32>
    %274 = arith.cmpf oge, %237, %273 : vector<16x128xf32>
    %275 = arith.extui %274 : vector<16x128xi1> to vector<16x128xi32>
    %276 = arith.sitofp %275 : vector<16x128xi32> to vector<16x128xf32>
    %cst_92 = arith.constant 6.000000e-01 : f32
    %277 = vector.broadcast %cst_92 : f32 to vector<16x128xf32>
    %278 = arith.cmpf oge, %237, %277 : vector<16x128xf32>
    %279 = arith.extui %278 : vector<16x128xi1> to vector<16x128xi32>
    %280 = arith.sitofp %279 : vector<16x128xi32> to vector<16x128xf32>
    %cst_93 = arith.constant 1.000000e+00 : f32
    %281 = vector.broadcast %cst_93 : f32 to vector<16x128xf32>
    %282 = arith.cmpf oge, %237, %281 : vector<16x128xf32>
    %283 = arith.extui %282 : vector<16x128xi1> to vector<16x128xi32>
    %284 = arith.sitofp %283 : vector<16x128xi32> to vector<16x128xf32>
    %cst_94 = arith.constant 1.400000e+00 : f32
    %285 = vector.broadcast %cst_94 : f32 to vector<16x128xf32>
    %286 = arith.cmpf oge, %237, %285 : vector<16x128xf32>
    %287 = arith.extui %286 : vector<16x128xi1> to vector<16x128xi32>
    %288 = arith.sitofp %287 : vector<16x128xi32> to vector<16x128xf32>
    %cst_95 = arith.constant 1.800000e+00 : f32
    %289 = vector.broadcast %cst_95 : f32 to vector<16x128xf32>
    %290 = arith.cmpf oge, %237, %289 : vector<16x128xf32>
    %291 = arith.extui %290 : vector<16x128xi1> to vector<16x128xi32>
    %292 = arith.sitofp %291 : vector<16x128xi32> to vector<16x128xf32>
    %cst_96 = arith.constant 2.200000e+00 : f32
    %293 = vector.broadcast %cst_96 : f32 to vector<16x128xf32>
    %294 = arith.cmpf oge, %237, %293 : vector<16x128xf32>
    %295 = arith.extui %294 : vector<16x128xi1> to vector<16x128xi32>
    %296 = arith.sitofp %295 : vector<16x128xi32> to vector<16x128xf32>
    %297 = arith.subf %252, %256 : vector<16x128xf32>
    %298 = arith.subf %256, %260 : vector<16x128xf32>
    %299 = arith.subf %260, %264 : vector<16x128xf32>
    %300 = arith.subf %264, %268 : vector<16x128xf32>
    %301 = arith.subf %268, %272 : vector<16x128xf32>
    %302 = arith.subf %272, %276 : vector<16x128xf32>
    %303 = arith.subf %276, %280 : vector<16x128xf32>
    %304 = arith.subf %280, %284 : vector<16x128xf32>
    %305 = arith.subf %284, %288 : vector<16x128xf32>
    %306 = arith.subf %288, %292 : vector<16x128xf32>
    %307 = arith.subf %292, %296 : vector<16x128xf32>
    %cst_97 = arith.constant 2.500000e+00 : f32
    %308 = vector.broadcast %cst_97 : f32 to vector<16x128xf32>
    %309 = arith.mulf %237, %308 : vector<16x128xf32>
    %cst_98 = arith.constant -5.500000e+00 : f32
    %310 = vector.broadcast %cst_98 : f32 to vector<16x128xf32>
    %311 = arith.subf %309, %310 : vector<16x128xf32>
    %cst_99 = arith.constant -4.500000e+00 : f32
    %312 = vector.broadcast %cst_99 : f32 to vector<16x128xf32>
    %313 = arith.subf %309, %312 : vector<16x128xf32>
    %cst_100 = arith.constant -3.500000e+00 : f32
    %314 = vector.broadcast %cst_100 : f32 to vector<16x128xf32>
    %315 = arith.subf %309, %314 : vector<16x128xf32>
    %cst_101 = arith.constant -2.500000e+00 : f32
    %316 = vector.broadcast %cst_101 : f32 to vector<16x128xf32>
    %317 = arith.subf %309, %316 : vector<16x128xf32>
    %cst_102 = arith.constant -1.500000e+00 : f32
    %318 = vector.broadcast %cst_102 : f32 to vector<16x128xf32>
    %319 = arith.subf %309, %318 : vector<16x128xf32>
    %cst_103 = arith.constant -5.000000e-01 : f32
    %320 = vector.broadcast %cst_103 : f32 to vector<16x128xf32>
    %321 = arith.subf %309, %320 : vector<16x128xf32>
    %cst_104 = arith.constant 5.000000e-01 : f32
    %322 = vector.broadcast %cst_104 : f32 to vector<16x128xf32>
    %323 = arith.subf %309, %322 : vector<16x128xf32>
    %cst_105 = arith.constant 1.500000e+00 : f32
    %324 = vector.broadcast %cst_105 : f32 to vector<16x128xf32>
    %325 = arith.subf %309, %324 : vector<16x128xf32>
    %cst_106 = arith.constant 2.500000e+00 : f32
    %326 = vector.broadcast %cst_106 : f32 to vector<16x128xf32>
    %327 = arith.subf %309, %326 : vector<16x128xf32>
    %cst_107 = arith.constant 3.500000e+00 : f32
    %328 = vector.broadcast %cst_107 : f32 to vector<16x128xf32>
    %329 = arith.subf %309, %328 : vector<16x128xf32>
    %cst_108 = arith.constant 4.500000e+00 : f32
    %330 = vector.broadcast %cst_108 : f32 to vector<16x128xf32>
    %331 = arith.subf %309, %330 : vector<16x128xf32>
    %332 = arith.mulf %311, %297 : vector<16x128xf32>
    %333 = arith.mulf %313, %298 : vector<16x128xf32>
    %334 = arith.mulf %315, %299 : vector<16x128xf32>
    %335 = arith.mulf %317, %300 : vector<16x128xf32>
    %336 = arith.mulf %319, %301 : vector<16x128xf32>
    %337 = arith.mulf %321, %302 : vector<16x128xf32>
    %338 = arith.mulf %323, %303 : vector<16x128xf32>
    %339 = arith.mulf %325, %304 : vector<16x128xf32>
    %340 = arith.mulf %327, %305 : vector<16x128xf32>
    %341 = arith.mulf %329, %306 : vector<16x128xf32>
    %342 = arith.mulf %331, %307 : vector<16x128xf32>
    %343 = arith.addf %332, %298 : vector<16x128xf32>
    %344 = arith.subf %343, %333 : vector<16x128xf32>
    %345 = arith.addf %333, %299 : vector<16x128xf32>
    %346 = arith.subf %345, %334 : vector<16x128xf32>
    %347 = arith.addf %334, %300 : vector<16x128xf32>
    %348 = arith.subf %347, %335 : vector<16x128xf32>
    %349 = arith.addf %335, %301 : vector<16x128xf32>
    %350 = arith.subf %349, %336 : vector<16x128xf32>
    %351 = arith.addf %336, %302 : vector<16x128xf32>
    %352 = arith.subf %351, %337 : vector<16x128xf32>
    %353 = arith.addf %337, %303 : vector<16x128xf32>
    %354 = arith.subf %353, %338 : vector<16x128xf32>
    %355 = arith.addf %338, %304 : vector<16x128xf32>
    %356 = arith.subf %355, %339 : vector<16x128xf32>
    %357 = arith.addf %339, %305 : vector<16x128xf32>
    %358 = arith.subf %357, %340 : vector<16x128xf32>
    %359 = arith.addf %340, %306 : vector<16x128xf32>
    %360 = arith.subf %359, %341 : vector<16x128xf32>
    %361 = arith.addf %341, %307 : vector<16x128xf32>
    %362 = arith.subf %361, %342 : vector<16x128xf32>
    %cst_109 = arith.constant 1.250000e+00 : f32
    %363 = vector.broadcast %cst_109 : f32 to vector<16x128xf32>
    %364 = arith.mulf %237, %363 : vector<16x128xf32>
    %cst_110 = arith.constant -2.750000e+00 : f32
    %365 = vector.broadcast %cst_110 : f32 to vector<16x128xf32>
    %366 = arith.subf %364, %365 : vector<16x128xf32>
    %cst_111 = arith.constant -2.250000e+00 : f32
    %367 = vector.broadcast %cst_111 : f32 to vector<16x128xf32>
    %368 = arith.subf %364, %367 : vector<16x128xf32>
    %cst_112 = arith.constant -1.750000e+00 : f32
    %369 = vector.broadcast %cst_112 : f32 to vector<16x128xf32>
    %370 = arith.subf %364, %369 : vector<16x128xf32>
    %cst_113 = arith.constant -1.250000e+00 : f32
    %371 = vector.broadcast %cst_113 : f32 to vector<16x128xf32>
    %372 = arith.subf %364, %371 : vector<16x128xf32>
    %cst_114 = arith.constant -7.500000e-01 : f32
    %373 = vector.broadcast %cst_114 : f32 to vector<16x128xf32>
    %374 = arith.subf %364, %373 : vector<16x128xf32>
    %cst_115 = arith.constant -2.500000e-01 : f32
    %375 = vector.broadcast %cst_115 : f32 to vector<16x128xf32>
    %376 = arith.subf %364, %375 : vector<16x128xf32>
    %cst_116 = arith.constant 2.500000e-01 : f32
    %377 = vector.broadcast %cst_116 : f32 to vector<16x128xf32>
    %378 = arith.subf %364, %377 : vector<16x128xf32>
    %cst_117 = arith.constant 7.500000e-01 : f32
    %379 = vector.broadcast %cst_117 : f32 to vector<16x128xf32>
    %380 = arith.subf %364, %379 : vector<16x128xf32>
    %cst_118 = arith.constant 1.250000e+00 : f32
    %381 = vector.broadcast %cst_118 : f32 to vector<16x128xf32>
    %382 = arith.subf %364, %381 : vector<16x128xf32>
    %cst_119 = arith.constant 1.750000e+00 : f32
    %383 = vector.broadcast %cst_119 : f32 to vector<16x128xf32>
    %384 = arith.subf %364, %383 : vector<16x128xf32>
    %385 = arith.mulf %366, %344 : vector<16x128xf32>
    %386 = arith.mulf %368, %346 : vector<16x128xf32>
    %387 = arith.mulf %370, %348 : vector<16x128xf32>
    %388 = arith.mulf %372, %350 : vector<16x128xf32>
    %389 = arith.mulf %374, %352 : vector<16x128xf32>
    %390 = arith.mulf %376, %354 : vector<16x128xf32>
    %391 = arith.mulf %378, %356 : vector<16x128xf32>
    %392 = arith.mulf %380, %358 : vector<16x128xf32>
    %393 = arith.mulf %382, %360 : vector<16x128xf32>
    %394 = arith.mulf %384, %362 : vector<16x128xf32>
    %395 = arith.addf %385, %346 : vector<16x128xf32>
    %396 = arith.subf %395, %386 : vector<16x128xf32>
    %397 = arith.addf %386, %348 : vector<16x128xf32>
    %398 = arith.subf %397, %387 : vector<16x128xf32>
    %399 = arith.addf %387, %350 : vector<16x128xf32>
    %400 = arith.subf %399, %388 : vector<16x128xf32>
    %401 = arith.addf %388, %352 : vector<16x128xf32>
    %402 = arith.subf %401, %389 : vector<16x128xf32>
    %403 = arith.addf %389, %354 : vector<16x128xf32>
    %404 = arith.subf %403, %390 : vector<16x128xf32>
    %405 = arith.addf %390, %356 : vector<16x128xf32>
    %406 = arith.subf %405, %391 : vector<16x128xf32>
    %407 = arith.addf %391, %358 : vector<16x128xf32>
    %408 = arith.subf %407, %392 : vector<16x128xf32>
    %409 = arith.addf %392, %360 : vector<16x128xf32>
    %410 = arith.subf %409, %393 : vector<16x128xf32>
    %411 = arith.addf %393, %362 : vector<16x128xf32>
    %412 = arith.subf %411, %394 : vector<16x128xf32>
    %cst_120 = arith.constant 0.833333313 : f32
    %413 = vector.broadcast %cst_120 : f32 to vector<16x128xf32>
    %414 = arith.mulf %237, %413 : vector<16x128xf32>
    %cst_121 = arith.constant -1.83333337 : f32
    %415 = vector.broadcast %cst_121 : f32 to vector<16x128xf32>
    %416 = arith.subf %414, %415 : vector<16x128xf32>
    %cst_122 = arith.constant -1.500000e+00 : f32
    %417 = vector.broadcast %cst_122 : f32 to vector<16x128xf32>
    %418 = arith.subf %414, %417 : vector<16x128xf32>
    %cst_123 = arith.constant -1.16666663 : f32
    %419 = vector.broadcast %cst_123 : f32 to vector<16x128xf32>
    %420 = arith.subf %414, %419 : vector<16x128xf32>
    %cst_124 = arith.constant -0.833333313 : f32
    %421 = vector.broadcast %cst_124 : f32 to vector<16x128xf32>
    %422 = arith.subf %414, %421 : vector<16x128xf32>
    %cst_125 = arith.constant -5.000000e-01 : f32
    %423 = vector.broadcast %cst_125 : f32 to vector<16x128xf32>
    %424 = arith.subf %414, %423 : vector<16x128xf32>
    %cst_126 = arith.constant -0.166666672 : f32
    %425 = vector.broadcast %cst_126 : f32 to vector<16x128xf32>
    %426 = arith.subf %414, %425 : vector<16x128xf32>
    %cst_127 = arith.constant 0.166666672 : f32
    %427 = vector.broadcast %cst_127 : f32 to vector<16x128xf32>
    %428 = arith.subf %414, %427 : vector<16x128xf32>
    %cst_128 = arith.constant 5.000000e-01 : f32
    %429 = vector.broadcast %cst_128 : f32 to vector<16x128xf32>
    %430 = arith.subf %414, %429 : vector<16x128xf32>
    %cst_129 = arith.constant 0.833333313 : f32
    %431 = vector.broadcast %cst_129 : f32 to vector<16x128xf32>
    %432 = arith.subf %414, %431 : vector<16x128xf32>
    %433 = arith.mulf %416, %396 : vector<16x128xf32>
    %434 = arith.mulf %418, %398 : vector<16x128xf32>
    %435 = arith.mulf %420, %400 : vector<16x128xf32>
    %436 = arith.mulf %422, %402 : vector<16x128xf32>
    %437 = arith.mulf %424, %404 : vector<16x128xf32>
    %438 = arith.mulf %426, %406 : vector<16x128xf32>
    %439 = arith.mulf %428, %408 : vector<16x128xf32>
    %440 = arith.mulf %430, %410 : vector<16x128xf32>
    %441 = arith.mulf %432, %412 : vector<16x128xf32>
    %442 = arith.addf %433, %398 : vector<16x128xf32>
    %443 = arith.subf %442, %434 : vector<16x128xf32>
    %444 = arith.addf %434, %400 : vector<16x128xf32>
    %445 = arith.subf %444, %435 : vector<16x128xf32>
    %446 = arith.addf %435, %402 : vector<16x128xf32>
    %447 = arith.subf %446, %436 : vector<16x128xf32>
    %448 = arith.addf %436, %404 : vector<16x128xf32>
    %449 = arith.subf %448, %437 : vector<16x128xf32>
    %450 = arith.addf %437, %406 : vector<16x128xf32>
    %451 = arith.subf %450, %438 : vector<16x128xf32>
    %452 = arith.addf %438, %408 : vector<16x128xf32>
    %453 = arith.subf %452, %439 : vector<16x128xf32>
    %454 = arith.addf %439, %410 : vector<16x128xf32>
    %455 = arith.subf %454, %440 : vector<16x128xf32>
    %456 = arith.addf %440, %412 : vector<16x128xf32>
    %457 = arith.subf %456, %441 : vector<16x128xf32>
    %c0_130 = arith.constant 0 : index
    %c0_131 = arith.constant 0 : index
    %458 = vector.load %arg9[%c0_130, %c0_131] : memref<16x1024xf32, #tpu.memory_space<vmem>>, vector<16x128xf32>
    tpu.vector_store %arg9[%c0_130, %c0_131], %443 {strides = array<i32>} : memref<16x1024xf32, #tpu.memory_space<vmem>>, vector<16x128xf32>,
    %c0_132 = arith.constant 0 : index
    %c128_133 = arith.constant 128 : index
    %459 = vector.load %arg9[%c0_132, %c128_133] : memref<16x1024xf32, #tpu.memory_space<vmem>>, vector<16x128xf32>
    tpu.vector_store %arg9[%c0_132, %c128_133], %445 {strides = array<i32>} : memref<16x1024xf32, #tpu.memory_space<vmem>>, vector<16x128xf32>,
    %c0_134 = arith.constant 0 : index
    %c256_135 = arith.constant 256 : index
    %460 = vector.load %arg9[%c0_134, %c256_135] : memref<16x1024xf32, #tpu.memory_space<vmem>>, vector<16x128xf32>
    tpu.vector_store %arg9[%c0_134, %c256_135], %447 {strides = array<i32>} : memref<16x1024xf32, #tpu.memory_space<vmem>>, vector<16x128xf32>,
    %c0_136 = arith.constant 0 : index
    %c384_137 = arith.constant 384 : index
    %461 = vector.load %arg9[%c0_136, %c384_137] : memref<16x1024xf32, #tpu.memory_space<vmem>>, vector<16x128xf32>
    tpu.vector_store %arg9[%c0_136, %c384_137], %449 {strides = array<i32>} : memref<16x1024xf32, #tpu.memory_space<vmem>>, vector<16x128xf32>,
    %c0_138 = arith.constant 0 : index
    %c512_139 = arith.constant 512 : index
    %462 = vector.load %arg9[%c0_138, %c512_139] : memref<16x1024xf32, #tpu.memory_space<vmem>>, vector<16x128xf32>
    tpu.vector_store %arg9[%c0_138, %c512_139], %451 {strides = array<i32>} : memref<16x1024xf32, #tpu.memory_space<vmem>>, vector<16x128xf32>,
    %c0_140 = arith.constant 0 : index
    %c640_141 = arith.constant 640 : index
    %463 = vector.load %arg9[%c0_140, %c640_141] : memref<16x1024xf32, #tpu.memory_space<vmem>>, vector<16x128xf32>
    tpu.vector_store %arg9[%c0_140, %c640_141], %453 {strides = array<i32>} : memref<16x1024xf32, #tpu.memory_space<vmem>>, vector<16x128xf32>,
    %c0_142 = arith.constant 0 : index
    %c768_143 = arith.constant 768 : index
    %464 = vector.load %arg9[%c0_142, %c768_143] : memref<16x1024xf32, #tpu.memory_space<vmem>>, vector<16x128xf32>
    tpu.vector_store %arg9[%c0_142, %c768_143], %455 {strides = array<i32>} : memref<16x1024xf32, #tpu.memory_space<vmem>>, vector<16x128xf32>,
    %c0_144 = arith.constant 0 : index
    %c896_145 = arith.constant 896 : index
    %465 = vector.load %arg9[%c0_144, %c896_145] : memref<16x1024xf32, #tpu.memory_space<vmem>>, vector<16x128xf32>
    tpu.vector_store %arg9[%c0_144, %c896_145], %457 {strides = array<i32>} : memref<16x1024xf32, #tpu.memory_space<vmem>>, vector<16x128xf32>,
    %c0_146 = arith.constant 0 : index
    %c0_147 = arith.constant 0 : index
    %466 = vector.load %arg11[%c0_146, %c0_147] : memref<16x128xf32, #tpu.memory_space<vmem>>, vector<16x128xf32>
    %cst_148 = arith.constant dense<0.000000e+00> : vector<16x128xf32>
    %467 = tpu.matmul %466, %238, %cst_148 {dimension_numbers = #tpu.dot_dimension_numbers<[1], [0], [0], [1], [0, 0, 1, 1], [], []>} : vector<16x128xf32>, vector<128x128xf32>, vector<16x128xf32> -> vector<16x128xf32>
    %c0_149 = arith.constant 0 : index
    %c0_150 = arith.constant 0 : index
    %468 = vector.load %arg10[%c0_149, %c0_150] : memref<16x128xf32, #tpu.memory_space<vmem>>, vector<16x128xf32>
    %cst_151 = arith.constant dense<0.000000e+00> : vector<16x128xf32>
    %469 = tpu.matmul %468, %239, %cst_151 {dimension_numbers = #tpu.dot_dimension_numbers<[1], [0], [0], [1], [0, 0, 1, 1], [], []>} : vector<16x128xf32>, vector<128x128xf32>, vector<16x128xf32> -> vector<16x128xf32>
    %470 = arith.mulf %469, %467 : vector<16x128xf32>
    %c0_152 = arith.constant 0 : index
    %c0_153 = arith.constant 0 : index
    %471 = vector.load %arg9[%c0_152, %c0_153] : memref<16x1024xf32, #tpu.memory_space<vmem>>, vector<16x1024xf32>
    %cst_154 = arith.constant dense<0.000000e+00> : vector<16x128xf32>
    %472 = tpu.matmul %471, %240, %cst_154 {dimension_numbers = #tpu.dot_dimension_numbers<[1], [0], [0], [1], [0, 0, 1, 1], [], []>} : vector<16x1024xf32>, vector<1024x128xf32>, vector<16x128xf32> -> vector<16x128xf32>
    %473 = arith.addf %467, %472 : vector<16x128xf32>
    %474 = arith.addf %473, %470 : vector<16x128xf32>
    %c0_155 = arith.constant 0 : index
    %c0_156 = arith.constant 0 : index
    %475 = vector.load %arg8[%c0_155, %c0_156] : memref<16x128xf32, #tpu.memory_space<vmem>>, vector<16x128xf32>
    tpu.vector_store %arg8[%c0_155, %c0_156], %474 {strides = array<i32>} : memref<16x128xf32, #tpu.memory_space<vmem>>, vector<16x128xf32>,
    return
  }
  func.func @transform_0(%arg0: i32) -> (i32, i32) {
    %c0_i32 = arith.constant 0 : i32
    %c0_i32_0 = arith.constant 0 : i32
    return %arg0, %c0_i32 : i32, i32
  }
  func.func @transform_1(%arg0: i32) -> (i32, i32) {
    %c0_i32 = arith.constant 0 : i32
    %c0_i32_0 = arith.constant 0 : i32
    %c0_i32_1 = arith.constant 0 : i32
    return %c0_i32, %c0_i32_0 : i32, i32
  }
  func.func @transform_2(%arg0: i32) -> (i32, i32) {
    %c0_i32 = arith.constant 0 : i32
    %c0_i32_0 = arith.constant 0 : i32
    %c0_i32_1 = arith.constant 0 : i32
    return %c0_i32, %c0_i32_0 : i32, i32
  }
  func.func @transform_3(%arg0: i32) -> (i32, i32) {
    %c0_i32 = arith.constant 0 : i32
    %c0_i32_0 = arith.constant 0 : i32
    %c0_i32_1 = arith.constant 0 : i32
    return %c0_i32, %c0_i32_0 : i32, i32
  }
  func.func @transform_4(%arg0: i32) -> (i32, i32) {
    %c0_i32 = arith.constant 0 : i32
    %c0_i32_0 = arith.constant 0 : i32
    %c0_i32_1 = arith.constant 0 : i32
    return %c0_i32, %c0_i32_0 : i32, i32
  }
  func.func @transform_5(%arg0: i32) -> (i32, i32) {
    %c0_i32 = arith.constant 0 : i32
    %c0_i32_0 = arith.constant 0 : i32
    %c0_i32_1 = arith.constant 0 : i32
    return %c0_i32, %c0_i32_0 : i32, i32
  }
  func.func @transform_6(%arg0: i32) -> (i32, i32) {
    %c0_i32 = arith.constant 0 : i32
    %c0_i32_0 = arith.constant 0 : i32
    %c0_i32_1 = arith.constant 0 : i32
    return %c0_i32, %c0_i32_0 : i32, i32
  }
  func.func @transform_7(%arg0: i32) -> (i32, i32) {
    %c0_i32 = arith.constant 0 : i32
    %c0_i32_0 = arith.constant 0 : i32
    return %arg0, %c0_i32 : i32, i32
  }
}

</mosaic_0001>

<llo_original>
// kernel: tpu_custom_call.1
$region0: #{tpu_custom_call.1}
  #allocation0 [shape = 'u32[]', space=smem, size = 0x4, offset = 0x4, fixed_abs, tag = 'smem constant byte address 0x4 - core index']
  #allocation1 [shape = 'u32[144,128]{1,0:T(1,128)}', space=vmem, size = 0x12000, scoped, tag = 'internal scratch']
  #allocation2 [shape = 'f32[16,1024]{1,0:T(8,128)}', space=vmem, size = 0x10000, scoped, tag = 'scratch operand']
  #allocation3 [shape = 'f32[16,128]{1,0:T(8,128)}', space=vmem, size = 0x2000, scoped, tag = 'scratch operand']
  #allocation4 [shape = 'f32[16,128]{1,0:T(8,128)}', space=vmem, size = 0x2000, scoped, tag = 'scratch operand']
  %s0 = inlined_call_operand.hbm [shape: f32[32,128], index: 0, kind: input, shape index: {}]
  %s1 = inlined_call_operand.hbm [shape: f32[128,128], index: 1, kind: input, shape index: {}]
  %s2 = inlined_call_operand.hbm [shape: f32[128,128], index: 2, kind: input, shape index: {}]
  %s3 = inlined_call_operand.hbm [shape: f32[1024,128], index: 3, kind: input, shape index: {}]
  %s4 = inlined_call_operand.hbm [shape: f32[128,128], index: 4, kind: input, shape index: {}]
  %s5 = inlined_call_operand.hbm [shape: f32[128,128], index: 5, kind: input, shape index: {}]
  %s6 = inlined_call_operand.hbm [shape: f32[1024,128], index: 6, kind: input, shape index: {}]
  %s7 = inlined_call_operand.hbm [shape: f32[32,128], index: 7, kind: output, shape index: {}]
  %s8 = sld [smem:[#allocation0]]
  $region89: #{tpu_custom_call.1} parent=0
    _
  %s10 = ssub.s32 1, %s8
  %s11 = scalar_select 0, %s10, %s8
  $region1: #{tpu_custom_call.1} parent=0
    #allocation5 [shape = 'u8[16384]{0}', space=vmem, size = 0x4000, scoped, tag = 'input window, operand 0']
    #allocation6 [shape = 's32[2]{0}', space=sflag, size = 0x8, scoped, tag = 'scoped memory for tpu_custom_call.1']
    #allocation7 [shape = 's32[2]{0}', space=sflag, size = 0x8, scoped, tag = 'scoped memory for tpu_custom_call.1']
    #allocation8 [shape = 'u8[65536]{0}', space=vmem, size = 0x10000, scoped, tag = 'input window, operand 1, single buffered']
    #allocation9 [shape = 's32[1]{0}', space=sflag, size = 0x4, scoped, tag = 'scoped memory for tpu_custom_call.1']
    #allocation10 [shape = 'u8[65536]{0}', space=vmem, size = 0x10000, scoped, tag = 'input window, operand 2, single buffered']
    #allocation11 [shape = 'u8[524288]{0}', space=vmem, size = 0x80000, scoped, tag = 'input window, operand 3, single buffered']
    #allocation12 [shape = 's32[1]{0}', space=sflag, size = 0x4, scoped, tag = 'scoped memory for tpu_custom_call.1']
    #allocation13 [shape = 'u8[65536]{0}', space=vmem, size = 0x10000, scoped, tag = 'input window, operand 4, single buffered']
    #allocation14 [shape = 'u8[65536]{0}', space=vmem, size = 0x10000, scoped, tag = 'input window, operand 5, single buffered']
    #allocation15 [shape = 's32[1]{0}', space=sflag, size = 0x4, scoped, tag = 'scoped memory for tpu_custom_call.1']
    #allocation16 [shape = 'u8[524288]{0}', space=vmem, size = 0x80000, scoped, tag = 'input window, operand 6, single buffered']
    #allocation17 [shape = 'u8[16384]{0}', space=vmem, size = 0x4000, scoped, tag = 'output window, operand 0']
    %12 = vsyncpa [#allocation6], 0
    %s13 = scalar_lea.sflag [#allocation6], 1
    %14 = vsyncpa %s13, 0
    %15 = vsyncpa [#allocation9], 0
    %16 = vsyncpa [#allocation12], 0
    %17 = vsyncpa [#allocation15], 0
    %18 = vsyncpa [#allocation7], 0
    %s19 = scalar_lea.sflag [#allocation7], 1
    %20 = vsyncpa %s19, 0
    loop: start=0, step=1, limit=4
    $region2: #{tpu_custom_call.1} parent=1 // loop_pre_header
      _
    $region3: #{tpu_custom_call.1} parent=1 // loop_header
      %s22 = sphi 0, %s26
      %p23 = scmp.ge.s32.totalorder %s22, 4
      %s32 = sphi 0, %s34
      %s35 = sphi 0, %s32
      %s36 = sphi 0, %s35
      %s52 = sphi 0, %s36
      %s56 = sphi 0, %s56
      %s58 = sphi 0, %s56
      %s59 = sphi 0, %s58
      %s73 = sphi 0, %s59
      %s77 = sphi 0, %s77
      %s79 = sphi 0, %s77
      %s80 = sphi 0, %s79
      %s94 = sphi 0, %s80
      %s98 = sphi 0, %s98
      %s100 = sphi 0, %s98
      %s101 = sphi 0, %s100
      %s115 = sphi 0, %s101
      %s119 = sphi 0, %s119
      %s121 = sphi 0, %s119
      %s122 = sphi 0, %s121
      %s136 = sphi 0, %s122
      %s140 = sphi 0, %s140
      %s142 = sphi 0, %s140
      %s143 = sphi 0, %s142
      %s157 = sphi 0, %s143
      %s161 = sphi 0, %s161
      %s163 = sphi 0, %s161
      %s164 = sphi 0, %s163
      %s178 = sphi 0, %s164
      %s184 = sphi 0, %s186
      %s187 = sphi 0, %s184
      %s188 = sphi 0, %s187
      %s204 = sphi 0, %s188
    $region4: #{tpu_custom_call.1} parent=1 // loop_header_branch
      %25 = sbr.rel (%p23) target = $region8
    $region5: #{tpu_custom_call.1} parent=1 // loop_body
      %s27 = ssub.s32 %s22, 1
      %s28 = ssub.s32 %s22, 2
      %s29 = sadd.s32 %s22, 1
      %s30 = ssub.s32 %s22, %s29
      %p31 = scmp.eq.s32.totalorder %s30, 0
      %s33 = sadd.s32 %s32, 1
      %s34 = scalar_select %p31, %s32, %s33
      %p37 = pneg %p31
      %p38 = scmp.eq.s32.totalorder %s22, 1
      %p39 = por %p37, %p38
      %p40 = scmp.ne.s32.totalorder %s32, %s35
      %p41 = scmp.eq.s32.totalorder %s22, 0
      %p42 = por %p40, %p41
      %p43 = scmp.ne.s32.totalorder %s32, %s35
      %p44 = scmp.eq.s32.totalorder %s27, 1
      %p45 = por %p43, %p44
      %p46 = scmp.ne.s32.totalorder %s35, %s36
      %p47 = scmp.eq.s32.totalorder %s27, 0
      %p48 = por %p46, %p47
      %p49 = scmp.ne.s32.totalorder %s35, %s36
      %p50 = scmp.eq.s32.totalorder %s28, 1
      %p51 = por %p49, %p50
      %p53 = scmp.ne.s32.totalorder %s36, %s52
      %p54 = scmp.eq.s32.totalorder %s28, 0
      %p55 = por %p53, %p54
      %s57 = sadd.s32 %s56, 1
      %p60 = scmp.eq.s32.totalorder %s22, 1
      %p61 = scmp.ne.s32.totalorder %s56, %s58
      %p62 = scmp.eq.s32.totalorder %s22, 0
      %p63 = por %p61, %p62
      %p64 = scmp.ne.s32.totalorder %s56, %s58
      %p65 = scmp.eq.s32.totalorder %s27, 1
      %p66 = por %p64, %p65
      %p67 = scmp.ne.s32.totalorder %s58, %s59
      %p68 = scmp.eq.s32.totalorder %s27, 0
      %p69 = por %p67, %p68
      %p70 = scmp.ne.s32.totalorder %s58, %s59
      %p71 = scmp.eq.s32.totalorder %s28, 1
      %p72 = por %p70, %p71
      %p74 = scmp.ne.s32.totalorder %s59, %s73
      %p75 = scmp.eq.s32.totalorder %s28, 0
      %p76 = por %p74, %p75
      %s78 = sadd.s32 %s77, 1
      %p81 = scmp.eq.s32.totalorder %s22, 1
      %p82 = scmp.ne.s32.totalorder %s77, %s79
      %p83 = scmp.eq.s32.totalorder %s22, 0
      %p84 = por %p82, %p83
      %p85 = scmp.ne.s32.totalorder %s77, %s79
      %p86 = scmp.eq.s32.totalorder %s27, 1
      %p87 = por %p85, %p86
      %p88 = scmp.ne.s32.totalorder %s79, %s80
      %p89 = scmp.eq.s32.totalorder %s27, 0
      %p90 = por %p88, %p89
      %p91 = scmp.ne.s32.totalorder %s79, %s80
      %p92 = scmp.eq.s32.totalorder %s28, 1
      %p93 = por %p91, %p92
      %p95 = scmp.ne.s32.totalorder %s80, %s94
      %p96 = scmp.eq.s32.totalorder %s28, 0
      %p97 = por %p95, %p96
      %s99 = sadd.s32 %s98, 1
      %p102 = scmp.eq.s32.totalorder %s22, 1
      %p103 = scmp.ne.s32.totalorder %s98, %s100
      %p104 = scmp.eq.s32.totalorder %s22, 0
      %p105 = por %p103, %p104
      %p106 = scmp.ne.s32.totalorder %s98, %s100
      %p107 = scmp.eq.s32.totalorder %s27, 1
      %p108 = por %p106, %p107
      %p109 = scmp.ne.s32.totalorder %s100, %s101
      %p110 = scmp.eq.s32.totalorder %s27, 0
      %p111 = por %p109, %p110
      %p112 = scmp.ne.s32.totalorder %s100, %s101
      %p113 = scmp.eq.s32.totalorder %s28, 1
      %p114 = por %p112, %p113
      %p116 = scmp.ne.s32.totalorder %s101, %s115
      %p117 = scmp.eq.s32.totalorder %s28, 0
      %p118 = por %p116, %p117
      %s120 = sadd.s32 %s119, 1
      %p123 = scmp.eq.s32.totalorder %s22, 1
      %p124 = scmp.ne.s32.totalorder %s119, %s121
      %p125 = scmp.eq.s32.totalorder %s22, 0
      %p126 = por %p124, %p125
      %p127 = scmp.ne.s32.totalorder %s119, %s121
      %p128 = scmp.eq.s32.totalorder %s27, 1
      %p129 = por %p127, %p128
      %p130 = scmp.ne.s32.totalorder %s121, %s122
      %p131 = scmp.eq.s32.totalorder %s27, 0
      %p132 = por %p130, %p131
      %p133 = scmp.ne.s32.totalorder %s121, %s122
      %p134 = scmp.eq.s32.totalorder %s28, 1
      %p135 = por %p133, %p134
      %p137 = scmp.ne.s32.totalorder %s122, %s136
      %p138 = scmp.eq.s32.totalorder %s28, 0
      %p139 = por %p137, %p138
      %s141 = sadd.s32 %s140, 1
      %p144 = scmp.eq.s32.totalorder %s22, 1
      %p145 = scmp.ne.s32.totalorder %s140, %s142
      %p146 = scmp.eq.s32.totalorder %s22, 0
      %p147 = por %p145, %p146
      %p148 = scmp.ne.s32.totalorder %s140, %s142
      %p149 = scmp.eq.s32.totalorder %s27, 1
      %p150 = por %p148, %p149
      %p151 = scmp.ne.s32.totalorder %s142, %s143
      %p152 = scmp.eq.s32.totalorder %s27, 0
      %p153 = por %p151, %p152
      %p154 = scmp.ne.s32.totalorder %s142, %s143
      %p155 = scmp.eq.s32.totalorder %s28, 1
      %p156 = por %p154, %p155
      %p158 = scmp.ne.s32.totalorder %s143, %s157
      %p159 = scmp.eq.s32.totalorder %s28, 0
      %p160 = por %p158, %p159
      %s162 = sadd.s32 %s161, 1
      %p165 = scmp.eq.s32.totalorder %s22, 1
      %p166 = scmp.ne.s32.totalorder %s161, %s163
      %p167 = scmp.eq.s32.totalorder %s22, 0
      %p168 = por %p166, %p167
      %p169 = scmp.ne.s32.totalorder %s161, %s163
      %p170 = scmp.eq.s32.totalorder %s27, 1
      %p171 = por %p169, %p170
      %p172 = scmp.ne.s32.totalorder %s163, %s164
      %p173 = scmp.eq.s32.totalorder %s27, 0
      %p174 = por %p172, %p173
      %p175 = scmp.ne.s32.totalorder %s163, %s164
      %p176 = scmp.eq.s32.totalorder %s28, 1
      %p177 = por %p175, %p176
      %p179 = scmp.ne.s32.totalorder %s164, %s178
      %p180 = scmp.eq.s32.totalorder %s28, 0
      %p181 = por %p179, %p180
      %s182 = ssub.s32 %s22, %s29
      %p183 = scmp.eq.s32.totalorder %s182, 0
      %s185 = sadd.s32 %s184, 1
      %s186 = scalar_select %p183, %s184, %s185
      %p189 = pneg %p183
      %p190 = scmp.eq.s32.totalorder %s22, 1
      %p191 = por %p189, %p190
      %p192 = scmp.ne.s32.totalorder %s184, %s187
      %p193 = scmp.eq.s32.totalorder %s22, 0
      %p194 = por %p192, %p193
      %p195 = scmp.ne.s32.totalorder %s184, %s187
      %p196 = scmp.eq.s32.totalorder %s27, 1
      %p197 = por %p195, %p196
      %p198 = scmp.ne.s32.totalorder %s187, %s188
      %p199 = scmp.eq.s32.totalorder %s27, 0
      %p200 = por %p198, %p199
      %p201 = scmp.ne.s32.totalorder %s187, %s188
      %p202 = scmp.eq.s32.totalorder %s28, 1
      %p203 = por %p201, %p202
      %p205 = scmp.ne.s32.totalorder %s188, %s204
      %p206 = scmp.eq.s32.totalorder %s28, 0
      %p207 = por %p205, %p206
      %p208 = scmp.le.s32.totalorder 1, %s22
      %p209 = scmp.lt.s32.totalorder %s22, 3
      %p210 = pnand %p208, %p209
      %p211 = pneg %p210
      // Predicated region
      $region9: #{tpu_custom_call.1} parent=5 // pred_check
        _
      $region10: #{tpu_custom_call.1} parent=5 // pred_check_branch
        %213 = sbr.rel (%p210) target = $region12
      $region11: #{tpu_custom_call.1} parent=5 // pred_region
        %s214 = ssub.s32 %s22, 1
        // Predicated region
        $region13: #{tpu_custom_call.1} parent=11 // pred_check
          %p215 = pneg %p69
        $region14: #{tpu_custom_call.1} parent=11 // pred_check_branch
          %217 = sbr.rel (%p215) target = $region16
        $region15: #{tpu_custom_call.1} parent=11 // pred_region
          %s219 = ssub.s32 2048, 2048
          %220 = vsyncadd [#allocation9], %s219
          %s221 = sshll.u32 [#allocation8], 4
          %s222 = int_to_ptr.vmem [resolvable:$true] %s221
          %227 = dma.hbm_to_vmem [thread:$0]  %s1, 2048, %s222, [#allocation9], 128, 128, 8
        $region16: #{tpu_custom_call.1} parent=11 // pred_fallthru
          _
        // Predicated region
        $region17: #{tpu_custom_call.1} parent=11 // pred_check
          %p228 = pneg %p90
        $region18: #{tpu_custom_call.1} parent=11 // pred_check_branch
          %230 = sbr.rel (%p228) target = $region20
        $region19: #{tpu_custom_call.1} parent=11 // pred_region
          %s232 = ssub.s32 2048, 2048
          %233 = vsyncadd [#allocation9], %s232
          %s234 = sshll.u32 [#allocation10], 4
          %s235 = int_to_ptr.vmem [resolvable:$true] %s234
          %240 = dma.hbm_to_vmem [thread:$0]  %s2, 2048, %s235, [#allocation9], 128, 128, 8
        $region20: #{tpu_custom_call.1} parent=11 // pred_fallthru
          _
        // Predicated region
        $region21: #{tpu_custom_call.1} parent=11 // pred_check
          %p241 = pneg %p111
        $region22: #{tpu_custom_call.1} parent=11 // pred_check_branch
          %243 = sbr.rel (%p241) target = $region24
        $region23: #{tpu_custom_call.1} parent=11 // pred_region
          %s245 = ssub.s32 16384, 16384
          %246 = vsyncadd [#allocation12], %s245
          %s247 = sshll.u32 [#allocation11], 4
          %s248 = int_to_ptr.vmem [resolvable:$true] %s247
          %253 = dma.hbm_to_vmem [thread:$0]  %s3, 16384, %s248, [#allocation12], 128, 128, 8
        $region24: #{tpu_custom_call.1} parent=11 // pred_fallthru
          _
        // Predicated region
        $region25: #{tpu_custom_call.1} parent=11 // pred_check
          %p254 = pneg %p132
        $region26: #{tpu_custom_call.1} parent=11 // pred_check_branch
          %256 = sbr.rel (%p254) target = $region28
        $region27: #{tpu_custom_call.1} parent=11 // pred_region
          %s258 = ssub.s32 2048, 2048
          %259 = vsyncadd [#allocation12], %s258
          %s260 = sshll.u32 [#allocation13], 4
          %s261 = int_to_ptr.vmem [resolvable:$true] %s260
          %266 = dma.hbm_to_vmem [thread:$0]  %s4, 2048, %s261, [#allocation12], 128, 128, 8
        $region28: #{tpu_custom_call.1} parent=11 // pred_fallthru
          _
        // Predicated region
        $region29: #{tpu_custom_call.1} parent=11 // pred_check
          %p267 = pneg %p153
        $region30: #{tpu_custom_call.1} parent=11 // pred_check_branch
          %269 = sbr.rel (%p267) target = $region32
        $region31: #{tpu_custom_call.1} parent=11 // pred_region
          %s271 = ssub.s32 2048, 2048
          %272 = vsyncadd [#allocation15], %s271
          %s273 = sshll.u32 [#allocation14], 4
          %s274 = int_to_ptr.vmem [resolvable:$true] %s273
          %279 = dma.hbm_to_vmem [thread:$0]  %s5, 2048, %s274, [#allocation15], 128, 128, 8
        $region32: #{tpu_custom_call.1} parent=11 // pred_fallthru
          _
        // Predicated region
        $region33: #{tpu_custom_call.1} parent=11 // pred_check
          %p280 = pneg %p174
        $region34: #{tpu_custom_call.1} parent=11 // pred_check_branch
          %282 = sbr.rel (%p280) target = $region36
        $region35: #{tpu_custom_call.1} parent=11 // pred_region
          %s284 = ssub.s32 16384, 16384
          %285 = vsyncadd [#allocation15], %s284
          %s286 = sshll.u32 [#allocation16], 4
          %s287 = int_to_ptr.vmem [resolvable:$true] %s286
          %292 = dma.hbm_to_vmem [thread:$0]  %s6, 16384, %s287, [#allocation15], 128, 128, 8
        $region36: #{tpu_custom_call.1} parent=11 // pred_fallthru
          _
      $region12: #{tpu_custom_call.1} parent=5 // pred_fallthru
        _
      %p293 = scmp.lt.s32.totalorder %s22, 2
      // Predicated region
      $region37: #{tpu_custom_call.1} parent=5 // pred_check
        %p294 = pneg %p293
      $region38: #{tpu_custom_call.1} parent=5 // pred_check_branch
        %296 = sbr.rel (%p294) target = $region40
      $region39: #{tpu_custom_call.1} parent=5 // pred_region
        // Predicated region
        $region41: #{tpu_custom_call.1} parent=39 // pred_check
          %p297 = pneg %p42
        $region42: #{tpu_custom_call.1} parent=39 // pred_check_branch
          %299 = sbr.rel (%p297) target = $region44
        $region43: #{tpu_custom_call.1} parent=39 // pred_region
          %s300 = sand.u32 %s32, 1
          %s301 = scalar_lea.sflag [#allocation6], %s300
          %s302 = sand.u32 %s32, 1
          %s303 = smul.addr %s302, 16
          %s304 = scalar_lea.vmem [#allocation5], %s303
          %s305 = smul.u32 2, %s22
          %s307 = ssub.s32 256, 256
          %308 = vsyncadd %s301, %s307
          %s309 = smul.addr %s305, 128
          %s310 = scalar_lea.hbm %s0, %s309
          %s311 = sshll.u32 %s304, 4
          %s312 = int_to_ptr.vmem [resolvable:$true] %s311
          %317 = dma.hbm_to_vmem [thread:$0]  %s310, 256, %s312, %s301, 128, 128, 8
        $region44: #{tpu_custom_call.1} parent=39 // pred_fallthru
          _
      $region40: #{tpu_custom_call.1} parent=5 // pred_fallthru
        _
      %p318 = scmp.le.s32.totalorder 1, %s22
      %p319 = scmp.lt.s32.totalorder %s22, 3
      %p320 = pnand %p318, %p319
      %p321 = pneg %p320
      // Predicated region
      $region45: #{tpu_custom_call.1} parent=5 // pred_check
        _
      $region46: #{tpu_custom_call.1} parent=5 // pred_check_branch
        %323 = sbr.rel (%p320) target = $region48
      $region47: #{tpu_custom_call.1} parent=5 // pred_region
        %s324 = ssub.s32 %s22, 1
        %s325 = sand.u32 %s35, 1
        %s326 = scalar_lea.sflag [#allocation6], %s325
        %s327 = sand.u32 %s35, 1
        %s328 = smul.addr %s327, 16
        %s329 = scalar_lea.vmem [#allocation5], %s328
        // Predicated region
        $region49: #{tpu_custom_call.1} parent=47 // pred_check
          %p330 = pneg %p48
        $region50: #{tpu_custom_call.1} parent=47 // pred_check_branch
          %332 = sbr.rel (%p330) target = $region52
        $region51: #{tpu_custom_call.1} parent=47 // pred_region
          %333 = dma.done %s326, 256
        $region52: #{tpu_custom_call.1} parent=47 // pred_fallthru
          _
        // Predicated region
        $region53: #{tpu_custom_call.1} parent=47 // pred_check
          %p334 = pneg %p69
        $region54: #{tpu_custom_call.1} parent=47 // pred_check_branch
          %336 = sbr.rel (%p334) target = $region56
        $region55: #{tpu_custom_call.1} parent=47 // pred_region
          %337 = dma.done [#allocation9], 2048
        $region56: #{tpu_custom_call.1} parent=47 // pred_fallthru
          _
        // Predicated region
        $region57: #{tpu_custom_call.1} parent=47 // pred_check
          %p338 = pneg %p90
        $region58: #{tpu_custom_call.1} parent=47 // pred_check_branch
          %340 = sbr.rel (%p338) target = $region60
        $region59: #{tpu_custom_call.1} parent=47 // pred_region
          %341 = dma.done [#allocation9], 2048
        $region60: #{tpu_custom_call.1} parent=47 // pred_fallthru
          _
        // Predicated region
        $region61: #{tpu_custom_call.1} parent=47 // pred_check
          %p342 = pneg %p111
        $region62: #{tpu_custom_call.1} parent=47 // pred_check_branch
          %344 = sbr.rel (%p342) target = $region64
        $region63: #{tpu_custom_call.1} parent=47 // pred_region
          %345 = dma.done [#allocation12], 16384
        $region64: #{tpu_custom_call.1} parent=47 // pred_fallthru
          _
        // Predicated region
        $region65: #{tpu_custom_call.1} parent=47 // pred_check
          %p346 = pneg %p132
        $region66: #{tpu_custom_call.1} parent=47 // pred_check_branch
          %348 = sbr.rel (%p346) target = $region68
        $region67: #{tpu_custom_call.1} parent=47 // pred_region
          %349 = dma.done [#allocation12], 2048
        $region68: #{tpu_custom_call.1} parent=47 // pred_fallthru
          _
        // Predicated region
        $region69: #{tpu_custom_call.1} parent=47 // pred_check
          %p350 = pneg %p153
        $region70: #{tpu_custom_call.1} parent=47 // pred_check_branch
          %352 = sbr.rel (%p350) target = $region72
        $region71: #{tpu_custom_call.1} parent=47 // pred_region
          %353 = dma.done [#allocation15], 2048
        $region72: #{tpu_custom_call.1} parent=47 // pred_fallthru
          _
        // Predicated region
        $region73: #{tpu_custom_call.1} parent=47 // pred_check
          %p354 = pneg %p174
        $region74: #{tpu_custom_call.1} parent=47 // pred_check_branch
          %356 = sbr.rel (%p354) target = $region76
        $region75: #{tpu_custom_call.1} parent=47 // pred_region
          %357 = dma.done [#allocation15], 16384
        $region76: #{tpu_custom_call.1} parent=47 // pred_fallthru
          _
        %s358 = sand.u32 %s35, 1
        %s359 = scalar_lea.sflag [#allocation6], %s358
        %s360 = sand.u32 %s35, 1
        %s361 = smul.addr %s360, 16
        %s362 = scalar_lea.vmem [#allocation5], %s361
        %p363 = pneg %p48
        %p364 = pneg %p45
        %p365 = pneg %p69
        %p366 = pneg %p66
        %p367 = pneg %p90
        %p368 = pneg %p87
        %p369 = pneg %p111
        %p370 = pneg %p108
        %p371 = pneg %p132
        %p372 = pneg %p129
        %p373 = pneg %p153
        %p374 = pneg %p150
        %p375 = pneg %p174
        %p376 = pneg %p171
        %p377 = pneg %p200
        %p378 = pneg %p197
        %s379 = sand.u32 %s187, 1
        %s380 = scalar_lea.sflag [#allocation7], %s379
        %s381 = sand.u32 %s187, 1
        %s382 = smul.addr %s381, 16
        %s383 = scalar_lea.vmem [#allocation17], %s382
        %s384 = smul.u32 2, %s27
        %s385 = smul.u32 2, %s27
        %v386 = vld [vmem:[%s329] sm:$0xff]
        %v387 = vld [vmem:[%s329 + $0x8] sm:$0xff]
        %v388 = vld [vmem:[#allocation8] sm:$0xff]
        %v389 = vld [vmem:[#allocation8 + $0x8] sm:$0xff]
        %v390 = vld [vmem:[#allocation8 + $0x10] sm:$0xff]
        %v391 = vld [vmem:[#allocation8 + $0x18] sm:$0xff]
        %v392 = vld [vmem:[#allocation8 + $0x20] sm:$0xff]
        %v393 = vld [vmem:[#allocation8 + $0x28] sm:$0xff]
        %v394 = vld [vmem:[#allocation8 + $0x30] sm:$0xff]
        %v395 = vld [vmem:[#allocation8 + $0x38] sm:$0xff]
        %v396 = vld [vmem:[#allocation8 + $0x40] sm:$0xff]
        %v397 = vld [vmem:[#allocation8 + $0x48] sm:$0xff]
        %v398 = vld [vmem:[#allocation8 + $0x50] sm:$0xff]
        %v399 = vld [vmem:[#allocation8 + $0x58] sm:$0xff]
        %v400 = vld [vmem:[#allocation8 + $0x60] sm:$0xff]
        %v401 = vld [vmem:[#allocation8 + $0x68] sm:$0xff]
        %v402 = vld [vmem:[#allocation8 + $0x70] sm:$0xff]
        %v403 = vld [vmem:[#allocation8 + $0x78] sm:$0xff]
        %v404 = vld [vmem:[#allocation10] sm:$0xff]
        %v405 = vld [vmem:[#allocation10 + $0x8] sm:$0xff]
        %v406 = vld [vmem:[#allocation10 + $0x10] sm:$0xff]
        %v407 = vld [vmem:[#allocation10 + $0x18] sm:$0xff]
        %v408 = vld [vmem:[#allocation10 + $0x20] sm:$0xff]
        %v409 = vld [vmem:[#allocation10 + $0x28] sm:$0xff]
        %v410 = vld [vmem:[#allocation10 + $0x30] sm:$0xff]
        %v411 = vld [vmem:[#allocation10 + $0x38] sm:$0xff]
        %v412 = vld [vmem:[#allocation10 + $0x40] sm:$0xff]
        %v413 = vld [vmem:[#allocation10 + $0x48] sm:$0xff]
        %v414 = vld [vmem:[#allocation10 + $0x50] sm:$0xff]
        %v415 = vld [vmem:[#allocation10 + $0x58] sm:$0xff]
        %v416 = vld [vmem:[#allocation10 + $0x60] sm:$0xff]
        %v417 = vld [vmem:[#allocation10 + $0x68] sm:$0xff]
        %v418 = vld [vmem:[#allocation10 + $0x70] sm:$0xff]
        %v419 = vld [vmem:[#allocation10 + $0x78] sm:$0xff]
        %v420 = vld [vmem:[#allocation11] sm:$0xff]
        %v421 = vld [vmem:[#allocation11 + $0x8] sm:$0xff]
        %v422 = vld [vmem:[#allocation11 + $0x10] sm:$0xff]
        %v423 = vld [vmem:[#allocation11 + $0x18] sm:$0xff]
        %v424 = vld [vmem:[#allocation11 + $0x20] sm:$0xff]
        %v425 = vld [vmem:[#allocation11 + $0x28] sm:$0xff]
        %v426 = vld [vmem:[#allocation11 + $0x30] sm:$0xff]
        %v427 = vld [vmem:[#allocation11 + $0x38] sm:$0xff]
        %v428 = vld [vmem:[#allocation11 + $0x40] sm:$0xff]
        %v429 = vld [vmem:[#allocation11 + $0x48] sm:$0xff]
        %v430 = vld [vmem:[#allocation11 + $0x50] sm:$0xff]
        %v431 = vld [vmem:[#allocation11 + $0x58] sm:$0xff]
        %v432 = vld [vmem:[#allocation11 + $0x60] sm:$0xff]
        %v433 = vld [vmem:[#allocation11 + $0x68] sm:$0xff]
        %v434 = vld [vmem:[#allocation11 + $0x70] sm:$0xff]
        %v435 = vld [vmem:[#allocation11 + $0x78] sm:$0xff]
        %v436 = vld [vmem:[#allocation11 + $0x80] sm:$0xff]
        %v437 = vld [vmem:[#allocation11 + $0x88] sm:$0xff]
        %v438 = vld [vmem:[#allocation11 + $0x90] sm:$0xff]
        %v439 = vld [vmem:[#allocation11 + $0x98] sm:$0xff]
        %v440 = vld [vmem:[#allocation11 + $0xa0] sm:$0xff]
        %v441 = vld [vmem:[#allocation11 + $0xa8] sm:$0xff]
        %v442 = vld [vmem:[#allocation11 + $0xb0] sm:$0xff]
        %v443 = vld [vmem:[#allocation11 + $0xb8] sm:$0xff]
        %v444 = vld [vmem:[#allocation11 + $0xc0] sm:$0xff]
        %v445 = vld [vmem:[#allocation11 + $0xc8] sm:$0xff]
        %v446 = vld [vmem:[#allocation11 + $0xd0] sm:$0xff]
        %v447 = vld [vmem:[#allocation11 + $0xd8] sm:$0xff]
        %v448 = vld [vmem:[#allocation11 + $0xe0] sm:$0xff]
        %v449 = vld [vmem:[#allocation11 + $0xe8] sm:$0xff]
        %v450 = vld [vmem:[#allocation11 + $0xf0] sm:$0xff]
        %v451 = vld [vmem:[#allocation11 + $0xf8] sm:$0xff]
        %v452 = vld [vmem:[#allocation11 + $0x100] sm:$0xff]
        %v453 = vld [vmem:[#allocation11 + $0x108] sm:$0xff]
        %v454 = vld [vmem:[#allocation11 + $0x110] sm:$0xff]
        %v455 = vld [vmem:[#allocation11 + $0x118] sm:$0xff]
        %v456 = vld [vmem:[#allocation11 + $0x120] sm:$0xff]
        %v457 = vld [vmem:[#allocation11 + $0x128] sm:$0xff]
        %v458 = vld [vmem:[#allocation11 + $0x130] sm:$0xff]
        %v459 = vld [vmem:[#allocation11 + $0x138] sm:$0xff]
        %v460 = vld [vmem:[#allocation11 + $0x140] sm:$0xff]
        %v461 = vld [vmem:[#allocation11 + $0x148] sm:$0xff]
        %v462 = vld [vmem:[#allocation11 + $0x150] sm:$0xff]
        %v463 = vld [vmem:[#allocation11 + $0x158] sm:$0xff]
        %v464 = vld [vmem:[#allocation11 + $0x160] sm:$0xff]
        %v465 = vld [vmem:[#allocation11 + $0x168] sm:$0xff]
        %v466 = vld [vmem:[#allocation11 + $0x170] sm:$0xff]
        %v467 = vld [vmem:[#allocation11 + $0x178] sm:$0xff]
        %v468 = vld [vmem:[#allocation11 + $0x180] sm:$0xff]
        %v469 = vld [vmem:[#allocation11 + $0x188] sm:$0xff]
        %v470 = vld [vmem:[#allocation11 + $0x190] sm:$0xff]
        %v471 = vld [vmem:[#allocation11 + $0x198] sm:$0xff]
        %v472 = vld [vmem:[#allocation11 + $0x1a0] sm:$0xff]
        %v473 = vld [vmem:[#allocation11 + $0x1a8] sm:$0xff]
        %v474 = vld [vmem:[#allocation11 + $0x1b0] sm:$0xff]
        %v475 = vld [vmem:[#allocation11 + $0x1b8] sm:$0xff]
        %v476 = vld [vmem:[#allocation11 + $0x1c0] sm:$0xff]
        %v477 = vld [vmem:[#allocation11 + $0x1c8] sm:$0xff]
        %v478 = vld [vmem:[#allocation11 + $0x1d0] sm:$0xff]
        %v479 = vld [vmem:[#allocation11 + $0x1d8] sm:$0xff]
        %v480 = vld [vmem:[#allocation11 + $0x1e0] sm:$0xff]
        %v481 = vld [vmem:[#allocation11 + $0x1e8] sm:$0xff]
        %v482 = vld [vmem:[#allocation11 + $0x1f0] sm:$0xff]
        %v483 = vld [vmem:[#allocation11 + $0x1f8] sm:$0xff]
        %v484 = vld [vmem:[#allocation11 + $0x200] sm:$0xff]
        %v485 = vld [vmem:[#allocation11 + $0x208] sm:$0xff]
        %v486 = vld [vmem:[#allocation11 + $0x210] sm:$0xff]
        %v487 = vld [vmem:[#allocation11 + $0x218] sm:$0xff]
        %v488 = vld [vmem:[#allocation11 + $0x220] sm:$0xff]
        %v489 = vld [vmem:[#allocation11 + $0x228] sm:$0xff]
        %v490 = vld [vmem:[#allocation11 + $0x230] sm:$0xff]
        %v491 = vld [vmem:[#allocation11 + $0x238] sm:$0xff]
        %v492 = vld [vmem:[#allocation11 + $0x240] sm:$0xff]
        %v493 = vld [vmem:[#allocation11 + $0x248] sm:$0xff]
        %v494 = vld [vmem:[#allocation11 + $0x250] sm:$0xff]
        %v495 = vld [vmem:[#allocation11 + $0x258] sm:$0xff]
        %v496 = vld [vmem:[#allocation11 + $0x260] sm:$0xff]
        %v497 = vld [vmem:[#allocation11 + $0x268] sm:$0xff]
        %v498 = vld [vmem:[#allocation11 + $0x270] sm:$0xff]
        %v499 = vld [vmem:[#allocation11 + $0x278] sm:$0xff]
        %v500 = vld [vmem:[#allocation11 + $0x280] sm:$0xff]
        %v501 = vld [vmem:[#allocation11 + $0x288] sm:$0xff]
        %v502 = vld [vmem:[#allocation11 + $0x290] sm:$0xff]
        %v503 = vld [vmem:[#allocation11 + $0x298] sm:$0xff]
        %v504 = vld [vmem:[#allocation11 + $0x2a0] sm:$0xff]
        %v505 = vld [vmem:[#allocation11 + $0x2a8] sm:$0xff]
        %v506 = vld [vmem:[#allocation11 + $0x2b0] sm:$0xff]
        %v507 = vld [vmem:[#allocation11 + $0x2b8] sm:$0xff]
        %v508 = vld [vmem:[#allocation11 + $0x2c0] sm:$0xff]
        %v509 = vld [vmem:[#allocation11 + $0x2c8] sm:$0xff]
        %v510 = vld [vmem:[#allocation11 + $0x2d0] sm:$0xff]
        %v511 = vld [vmem:[#allocation11 + $0x2d8] sm:$0xff]
        %v512 = vld [vmem:[#allocation11 + $0x2e0] sm:$0xff]
        %v513 = vld [vmem:[#allocation11 + $0x2e8] sm:$0xff]
        %v514 = vld [vmem:[#allocation11 + $0x2f0] sm:$0xff]
        %v515 = vld [vmem:[#allocation11 + $0x2f8] sm:$0xff]
        %v516 = vld [vmem:[#allocation11 + $0x300] sm:$0xff]
        %v517 = vld [vmem:[#allocation11 + $0x308] sm:$0xff]
        %v518 = vld [vmem:[#allocation11 + $0x310] sm:$0xff]
        %v519 = vld [vmem:[#allocation11 + $0x318] sm:$0xff]
        %v520 = vld [vmem:[#allocation11 + $0x320] sm:$0xff]
        %v521 = vld [vmem:[#allocation11 + $0x328] sm:$0xff]
        %v522 = vld [vmem:[#allocation11 + $0x330] sm:$0xff]
        %v523 = vld [vmem:[#allocation11 + $0x338] sm:$0xff]
        %v524 = vld [vmem:[#allocation11 + $0x340] sm:$0xff]
        %v525 = vld [vmem:[#allocation11 + $0x348] sm:$0xff]
        %v526 = vld [vmem:[#allocation11 + $0x350] sm:$0xff]
        %v527 = vld [vmem:[#allocation11 + $0x358] sm:$0xff]
        %v528 = vld [vmem:[#allocation11 + $0x360] sm:$0xff]
        %v529 = vld [vmem:[#allocation11 + $0x368] sm:$0xff]
        %v530 = vld [vmem:[#allocation11 + $0x370] sm:$0xff]
        %v531 = vld [vmem:[#allocation11 + $0x378] sm:$0xff]
        %v532 = vld [vmem:[#allocation11 + $0x380] sm:$0xff]
        %v533 = vld [vmem:[#allocation11 + $0x388] sm:$0xff]
        %v534 = vld [vmem:[#allocation11 + $0x390] sm:$0xff]
        %v535 = vld [vmem:[#allocation11 + $0x398] sm:$0xff]
        %v536 = vld [vmem:[#allocation11 + $0x3a0] sm:$0xff]
        %v537 = vld [vmem:[#allocation11 + $0x3a8] sm:$0xff]
        %v538 = vld [vmem:[#allocation11 + $0x3b0] sm:$0xff]
        %v539 = vld [vmem:[#allocation11 + $0x3b8] sm:$0xff]
        %v540 = vld [vmem:[#allocation11 + $0x3c0] sm:$0xff]
        %v541 = vld [vmem:[#allocation11 + $0x3c8] sm:$0xff]
        %v542 = vld [vmem:[#allocation11 + $0x3d0] sm:$0xff]
        %v543 = vld [vmem:[#allocation11 + $0x3d8] sm:$0xff]
        %v544 = vld [vmem:[#allocation11 + $0x3e0] sm:$0xff]
        %v545 = vld [vmem:[#allocation11 + $0x3e8] sm:$0xff]
        %v546 = vld [vmem:[#allocation11 + $0x3f0] sm:$0xff]
        %v547 = vld [vmem:[#allocation11 + $0x3f8] sm:$0xff]
        %548 = vst [vmem:[#allocation3] sm:$0xff] %v386
        %549 = vst [vmem:[#allocation3 + $0x8] sm:$0xff] %v387
        %v550 = vxor.u32 %v386, 2147483648
        %v551 = vxor.u32 %v387, 2147483648
        %v552 = vmul.f32 %v550, 1.442695
        %v553 = vpow.pop %v552
        %v554 = vmul.f32 %v551, 1.442695
        %v555 = vpow.pop %v554
        %v556 = vadd.f32 %v553, 1.0
        %v557 = vadd.f32 %v555, 1.0
        %v558 = vrcp.pop %v556
        %v559 = vmul.f32 1.0, %v558
        %v560 = vrcp.pop %v557
        %v561 = vmul.f32 1.0, %v560
        %v562 = vmul.f32 %v386, %v559
        %v563 = vmul.f32 %v387, %v561
        %564 = vst [vmem:[#allocation4] sm:$0xff] %v562
        %565 = vst [vmem:[#allocation4 + $0x8] sm:$0xff] %v563
        %vm566 = vcmp.ge.f32.partialorder %v386, -2.2
        %vm567 = vcmp.ge.f32.partialorder %v387, -2.2
        %v568 = vsel %vm566, 1, 0
        %v569 = vsel %vm567, 1, 0
        %v570 = vcvt.s32.f32 %v568
        %v571 = vcvt.s32.f32 %v569
        %vm572 = vcmp.ge.f32.partialorder %v386, -1.8
        %vm573 = vcmp.ge.f32.partialorder %v387, -1.8
        %v574 = vsel %vm572, 1, 0
        %v575 = vsel %vm573, 1, 0
        %v576 = vcvt.s32.f32 %v574
        %v577 = vcvt.s32.f32 %v575
        %vm578 = vcmp.ge.f32.partialorder %v386, -1.4
        %vm579 = vcmp.ge.f32.partialorder %v387, -1.4
        %v580 = vsel %vm578, 1, 0
        %v581 = vsel %vm579, 1, 0
        %v582 = vcvt.s32.f32 %v580
        %v583 = vcvt.s32.f32 %v581
        %vm584 = vcmp.ge.f32.partialorder %v386, -1.0
        %vm585 = vcmp.ge.f32.partialorder %v387, -1.0
        %v586 = vsel %vm584, 1, 0
        %v587 = vsel %vm585, 1, 0
        %v588 = vcvt.s32.f32 %v586
        %v589 = vcvt.s32.f32 %v587
        %vm590 = vcmp.ge.f32.partialorder %v386, -0.6
        %vm591 = vcmp.ge.f32.partialorder %v387, -0.6
        %v592 = vsel %vm590, 1, 0
        %v593 = vsel %vm591, 1, 0
        %v594 = vcvt.s32.f32 %v592
        %v595 = vcvt.s32.f32 %v593
        %vm596 = vcmp.ge.f32.partialorder %v386, -0.2
        %vm597 = vcmp.ge.f32.partialorder %v387, -0.2
        %v598 = vsel %vm596, 1, 0
        %v599 = vsel %vm597, 1, 0
        %v600 = vcvt.s32.f32 %v598
        %v601 = vcvt.s32.f32 %v599
        %vm602 = vcmp.ge.f32.partialorder %v386, 0.2
        %vm603 = vcmp.ge.f32.partialorder %v387, 0.2
        %v604 = vsel %vm602, 1, 0
        %v605 = vsel %vm603, 1, 0
        %v606 = vcvt.s32.f32 %v604
        %v607 = vcvt.s32.f32 %v605
        %vm608 = vcmp.ge.f32.partialorder %v386, 0.6
        %vm609 = vcmp.ge.f32.partialorder %v387, 0.6
        %v610 = vsel %vm608, 1, 0
        %v611 = vsel %vm609, 1, 0
        %v612 = vcvt.s32.f32 %v610
        %v613 = vcvt.s32.f32 %v611
        %vm614 = vcmp.ge.f32.partialorder %v386, 1.0
        %vm615 = vcmp.ge.f32.partialorder %v387, 1.0
        %v616 = vsel %vm614, 1, 0
        %v617 = vsel %vm615, 1, 0
        %v618 = vcvt.s32.f32 %v616
        %v619 = vcvt.s32.f32 %v617
        %vm620 = vcmp.ge.f32.partialorder %v386, 1.4
        %vm621 = vcmp.ge.f32.partialorder %v387, 1.4
        %v622 = vsel %vm620, 1, 0
        %v623 = vsel %vm621, 1, 0
        %v624 = vcvt.s32.f32 %v622
        %v625 = vcvt.s32.f32 %v623
        %vm626 = vcmp.ge.f32.partialorder %v386, 1.8
        %vm627 = vcmp.ge.f32.partialorder %v387, 1.8
        %v628 = vsel %vm626, 1, 0
        %v629 = vsel %vm627, 1, 0
        %v630 = vcvt.s32.f32 %v628
        %v631 = vcvt.s32.f32 %v629
        %vm632 = vcmp.ge.f32.partialorder %v386, 2.2
        %vm633 = vcmp.ge.f32.partialorder %v387, 2.2
        %v634 = vsel %vm632, 1, 0
        %v635 = vsel %vm633, 1, 0
        %v636 = vcvt.s32.f32 %v634
        %v637 = vcvt.s32.f32 %v635
        %v638 = vsub.f32 %v570, %v576
        %v639 = vsub.f32 %v571, %v577
        %v640 = vsub.f32 %v576, %v582
        %v641 = vsub.f32 %v577, %v583
        %v642 = vsub.f32 %v582, %v588
        %v643 = vsub.f32 %v583, %v589
        %v644 = vsub.f32 %v588, %v594
        %v645 = vsub.f32 %v589, %v595
        %v646 = vsub.f32 %v594, %v600
        %v647 = vsub.f32 %v595, %v601
        %v648 = vsub.f32 %v600, %v606
        %v649 = vsub.f32 %v601, %v607
        %v650 = vsub.f32 %v606, %v612
        %v651 = vsub.f32 %v607, %v613
        %v652 = vsub.f32 %v612, %v618
        %v653 = vsub.f32 %v613, %v619
        %v654 = vsub.f32 %v618, %v624
        %v655 = vsub.f32 %v619, %v625
        %v656 = vsub.f32 %v624, %v630
        %v657 = vsub.f32 %v625, %v631
        %v658 = vsub.f32 %v630, %v636
        %v659 = vsub.f32 %v631, %v637
        %v660 = vmul.f32 %v386, 2.5
        %v661 = vmul.f32 %v387, 2.5
        %v662 = vsub.f32 %v660, -5.5
        %v663 = vsub.f32 %v661, -5.5
        %v664 = vsub.f32 %v660, -4.5
        %v665 = vsub.f32 %v661, -4.5
        %v666 = vsub.f32 %v660, -3.5
        %v667 = vsub.f32 %v661, -3.5
        %v668 = vsub.f32 %v660, -2.5
        %v669 = vsub.f32 %v661, -2.5
        %v670 = vsub.f32 %v660, -1.5
        %v671 = vsub.f32 %v661, -1.5
        %v672 = vsub.f32 %v660, -0.5
        %v673 = vsub.f32 %v661, -0.5
        %v674 = vsub.f32 %v660, 0.5
        %v675 = vsub.f32 %v661, 0.5
        %v676 = vsub.f32 %v660, 1.5
        %v677 = vsub.f32 %v661, 1.5
        %v678 = vsub.f32 %v660, 2.5
        %v679 = vsub.f32 %v661, 2.5
        %v680 = vsub.f32 %v660, 3.5
        %v681 = vsub.f32 %v661, 3.5
        %v682 = vsub.f32 %v660, 4.5
        %v683 = vsub.f32 %v661, 4.5
        %v684 = vmul.f32 %v662, %v638
        %v685 = vmul.f32 %v663, %v639
        %v686 = vmul.f32 %v664, %v640
        %v687 = vmul.f32 %v665, %v641
        %v688 = vmul.f32 %v666, %v642
        %v689 = vmul.f32 %v667, %v643
        %v690 = vmul.f32 %v668, %v644
        %v691 = vmul.f32 %v669, %v645
        %v692 = vmul.f32 %v670, %v646
        %v693 = vmul.f32 %v671, %v647
        %v694 = vmul.f32 %v672, %v648
        %v695 = vmul.f32 %v673, %v649
        %v696 = vmul.f32 %v674, %v650
        %v697 = vmul.f32 %v675, %v651
        %v698 = vmul.f32 %v676, %v652
        %v699 = vmul.f32 %v677, %v653
        %v700 = vmul.f32 %v678, %v654
        %v701 = vmul.f32 %v679, %v655
        %v702 = vmul.f32 %v680, %v656
        %v703 = vmul.f32 %v681, %v657
        %v704 = vmul.f32 %v682, %v658
        %v705 = vmul.f32 %v683, %v659
        %v706 = vadd.f32 %v684, %v640
        %v707 = vadd.f32 %v685, %v641
        %v708 = vsub.f32 %v706, %v686
        %v709 = vsub.f32 %v707, %v687
        %v710 = vadd.f32 %v686, %v642
        %v711 = vadd.f32 %v687, %v643
        %v712 = vsub.f32 %v710, %v688
        %v713 = vsub.f32 %v711, %v689
        %v714 = vadd.f32 %v688, %v644
        %v715 = vadd.f32 %v689, %v645
        %v716 = vsub.f32 %v714, %v690
        %v717 = vsub.f32 %v715, %v691
        %v718 = vadd.f32 %v690, %v646
        %v719 = vadd.f32 %v691, %v647
        %v720 = vsub.f32 %v718, %v692
        %v721 = vsub.f32 %v719, %v693
        %v722 = vadd.f32 %v692, %v648
        %v723 = vadd.f32 %v693, %v649
        %v724 = vsub.f32 %v722, %v694
        %v725 = vsub.f32 %v723, %v695
        %v726 = vadd.f32 %v694, %v650
        %v727 = vadd.f32 %v695, %v651
        %v728 = vsub.f32 %v726, %v696
        %v729 = vsub.f32 %v727, %v697
        %v730 = vadd.f32 %v696, %v652
        %v731 = vadd.f32 %v697, %v653
        %v732 = vsub.f32 %v730, %v698
        %v733 = vsub.f32 %v731, %v699
        %v734 = vadd.f32 %v698, %v654
        %v735 = vadd.f32 %v699, %v655
        %v736 = vsub.f32 %v734, %v700
        %v737 = vsub.f32 %v735, %v701
        %v738 = vadd.f32 %v700, %v656
        %v739 = vadd.f32 %v701, %v657
        %v740 = vsub.f32 %v738, %v702
        %v741 = vsub.f32 %v739, %v703
        %v742 = vadd.f32 %v702, %v658
        %v743 = vadd.f32 %v703, %v659
        %v744 = vsub.f32 %v742, %v704
        %v745 = vsub.f32 %v743, %v705
        %v746 = vmul.f32 %v386, 1.25
        %v747 = vmul.f32 %v387, 1.25
        %v748 = vsub.f32 %v746, -2.75
        %v749 = vsub.f32 %v747, -2.75
        %v750 = vsub.f32 %v746, -2.25
        %v751 = vsub.f32 %v747, -2.25
        %v752 = vsub.f32 %v746, -1.75
        %v753 = vsub.f32 %v747, -1.75
        %v754 = vsub.f32 %v746, -1.25
        %v755 = vsub.f32 %v747, -1.25
        %v756 = vsub.f32 %v746, -0.75
        %v757 = vsub.f32 %v747, -0.75
        %v758 = vsub.f32 %v746, -0.25
        %v759 = vsub.f32 %v747, -0.25
        %v760 = vsub.f32 %v746, 0.25
        %v761 = vsub.f32 %v747, 0.25
        %v762 = vsub.f32 %v746, 0.75
        %v763 = vsub.f32 %v747, 0.75
        %v764 = vsub.f32 %v746, 1.25
        %v765 = vsub.f32 %v747, 1.25
        %v766 = vsub.f32 %v746, 1.75
        %v767 = vsub.f32 %v747, 1.75
        %v768 = vmul.f32 %v748, %v708
        %v769 = vmul.f32 %v749, %v709
        %v770 = vmul.f32 %v750, %v712
        %v771 = vmul.f32 %v751, %v713
        %v772 = vmul.f32 %v752, %v716
        %v773 = vmul.f32 %v753, %v717
        %v774 = vmul.f32 %v754, %v720
        %v775 = vmul.f32 %v755, %v721
        %v776 = vmul.f32 %v756, %v724
        %v777 = vmul.f32 %v757, %v725
        %v778 = vmul.f32 %v758, %v728
        %v779 = vmul.f32 %v759, %v729
        %v780 = vmul.f32 %v760, %v732
        %v781 = vmul.f32 %v761, %v733
        %v782 = vmul.f32 %v762, %v736
        %v783 = vmul.f32 %v763, %v737
        %v784 = vmul.f32 %v764, %v740
        %v785 = vmul.f32 %v765, %v741
        %v786 = vmul.f32 %v766, %v744
        %v787 = vmul.f32 %v767, %v745
        %v788 = vadd.f32 %v768, %v712
        %v789 = vadd.f32 %v769, %v713
        %v790 = vsub.f32 %v788, %v770
        %v791 = vsub.f32 %v789, %v771
        %v792 = vadd.f32 %v770, %v716
        %v793 = vadd.f32 %v771, %v717
        %v794 = vsub.f32 %v792, %v772
        %v795 = vsub.f32 %v793, %v773
        %v796 = vadd.f32 %v772, %v720
        %v797 = vadd.f32 %v773, %v721
        %v798 = vsub.f32 %v796, %v774
        %v799 = vsub.f32 %v797, %v775
        %v800 = vadd.f32 %v774, %v724
        %v801 = vadd.f32 %v775, %v725
        %v802 = vsub.f32 %v800, %v776
        %v803 = vsub.f32 %v801, %v777
        %v804 = vadd.f32 %v776, %v728
        %v805 = vadd.f32 %v777, %v729
        %v806 = vsub.f32 %v804, %v778
        %v807 = vsub.f32 %v805, %v779
        %v808 = vadd.f32 %v778, %v732
        %v809 = vadd.f32 %v779, %v733
        %v810 = vsub.f32 %v808, %v780
        %v811 = vsub.f32 %v809, %v781
        %v812 = vadd.f32 %v780, %v736
        %v813 = vadd.f32 %v781, %v737
        %v814 = vsub.f32 %v812, %v782
        %v815 = vsub.f32 %v813, %v783
        %v816 = vadd.f32 %v782, %v740
        %v817 = vadd.f32 %v783, %v741
        %v818 = vsub.f32 %v816, %v784
        %v819 = vsub.f32 %v817, %v785
        %v820 = vadd.f32 %v784, %v744
        %v821 = vadd.f32 %v785, %v745
        %v822 = vsub.f32 %v820, %v786
        %v823 = vsub.f32 %v821, %v787
        %v824 = vmul.f32 %v386, 0.8333333
        %v825 = vmul.f32 %v387, 0.8333333
        %v826 = vsub.f32 %v824, -1.8333334
        %v827 = vsub.f32 %v825, -1.8333334
        %v828 = vsub.f32 %v824, -1.5
        %v829 = vsub.f32 %v825, -1.5
        %v830 = vsub.f32 %v824, -1.1666666
        %v831 = vsub.f32 %v825, -1.1666666
        %v832 = vsub.f32 %v824, -0.8333333
        %v833 = vsub.f32 %v825, -0.8333333
        %v834 = vsub.f32 %v824, -0.5
        %v835 = vsub.f32 %v825, -0.5
        %v836 = vsub.f32 %v824, -0.16666667
        %v837 = vsub.f32 %v825, -0.16666667
        %v838 = vsub.f32 %v824, 0.16666667
        %v839 = vsub.f32 %v825, 0.16666667
        %v840 = vsub.f32 %v824, 0.5
        %v841 = vsub.f32 %v825, 0.5
        %v842 = vsub.f32 %v824, 0.8333333
        %v843 = vsub.f32 %v825, 0.8333333
        %v844 = vmul.f32 %v826, %v790
        %v845 = vmul.f32 %v827, %v791
        %v846 = vmul.f32 %v828, %v794
        %v847 = vmul.f32 %v829, %v795
        %v848 = vmul.f32 %v830, %v798
        %v849 = vmul.f32 %v831, %v799
        %v850 = vmul.f32 %v832, %v802
        %v851 = vmul.f32 %v833, %v803
        %v852 = vmul.f32 %v834, %v806
        %v853 = vmul.f32 %v835, %v807
        %v854 = vmul.f32 %v836, %v810
        %v855 = vmul.f32 %v837, %v811
        %v856 = vmul.f32 %v838, %v814
        %v857 = vmul.f32 %v839, %v815
        %v858 = vmul.f32 %v840, %v818
        %v859 = vmul.f32 %v841, %v819
        %v860 = vmul.f32 %v842, %v822
        %v861 = vmul.f32 %v843, %v823
        %v862 = vadd.f32 %v844, %v794
        %v863 = vadd.f32 %v845, %v795
        %v864 = vsub.f32 %v862, %v846
        %v865 = vsub.f32 %v863, %v847
        %v866 = vadd.f32 %v846, %v798
        %v867 = vadd.f32 %v847, %v799
        %v868 = vsub.f32 %v866, %v848
        %v869 = vsub.f32 %v867, %v849
        %v870 = vadd.f32 %v848, %v802
        %v871 = vadd.f32 %v849, %v803
        %v872 = vsub.f32 %v870, %v850
        %v873 = vsub.f32 %v871, %v851
        %v874 = vadd.f32 %v850, %v806
        %v875 = vadd.f32 %v851, %v807
        %v876 = vsub.f32 %v874, %v852
        %v877 = vsub.f32 %v875, %v853
        %v878 = vadd.f32 %v852, %v810
        %v879 = vadd.f32 %v853, %v811
        %v880 = vsub.f32 %v878, %v854
        %v881 = vsub.f32 %v879, %v855
        %v882 = vadd.f32 %v854, %v814
        %v883 = vadd.f32 %v855, %v815
        %v884 = vsub.f32 %v882, %v856
        %v885 = vsub.f32 %v883, %v857
        %v886 = vadd.f32 %v856, %v818
        %v887 = vadd.f32 %v857, %v819
        %v888 = vsub.f32 %v886, %v858
        %v889 = vsub.f32 %v887, %v859
        %v890 = vadd.f32 %v858, %v822
        %v891 = vadd.f32 %v859, %v823
        %v892 = vsub.f32 %v890, %v860
        %v893 = vsub.f32 %v891, %v861
        %894 = vst [vmem:[#allocation2] sm:$0xff] %v864
        %895 = vst [vmem:[#allocation2 + $0x40] sm:$0xff] %v865
        %896 = vst [vmem:[#allocation2 + $0x8] sm:$0xff] %v868
        %897 = vst [vmem:[#allocation2 + $0x48] sm:$0xff] %v869
        %898 = vst [vmem:[#allocation2 + $0x10] sm:$0xff] %v872
        %899 = vst [vmem:[#allocation2 + $0x50] sm:$0xff] %v873
        %900 = vst [vmem:[#allocation2 + $0x18] sm:$0xff] %v876
        %901 = vst [vmem:[#allocation2 + $0x58] sm:$0xff] %v877
        %902 = vst [vmem:[#allocation2 + $0x20] sm:$0xff] %v880
        %903 = vst [vmem:[#allocation2 + $0x60] sm:$0xff] %v881
        %904 = vst [vmem:[#allocation2 + $0x28] sm:$0xff] %v884
        %905 = vst [vmem:[#allocation2 + $0x68] sm:$0xff] %v885
        %906 = vst [vmem:[#allocation2 + $0x30] sm:$0xff] %v888
        %907 = vst [vmem:[#allocation2 + $0x70] sm:$0xff] %v889
        %908 = vst [vmem:[#allocation2 + $0x38] sm:$0xff] %v892
        %909 = vst [vmem:[#allocation2 + $0x78] sm:$0xff] %v893
        %v910 = vld [vmem:[#allocation4] sm:$0xff]
        %v911 = vld [vmem:[#allocation4 + $0x8] sm:$0xff]
        %912 = vmatprep.subr.mxu0 0.0
        %913 = vmatpush1.msra.mxu0 %v388
        %914 = vmatprep.subr.mxu0 0.0
        %915 = vmatpush1.msra.mxu0 %v389
        %916 = vmatprep.subr.mxu0 0.0
        %917 = vmatpush1.msra.mxu0 %v390
        %918 = vmatprep.subr.mxu0 0.0
        %919 = vmatpush1.msra.mxu0 %v391
        %920 = vmatprep.subr.mxu0 0.0
        %921 = vmatpush1.msra.mxu0 %v392
        %922 = vmatprep.subr.mxu0 0.0
        %923 = vmatpush1.msra.mxu0 %v393
        %924 = vmatprep.subr.mxu0 0.0
        %925 = vmatpush1.msra.mxu0 %v394
        %926 = vmatprep.subr.mxu0 0.0
        %927 = vmatpush1.msra.mxu0 %v395
        %928 = vmatprep.subr.mxu0 0.0
        %929 = vmatpush1.msra.mxu0 %v396
        %930 = vmatprep.subr.mxu0 0.0
        %931 = vmatpush1.msra.mxu0 %v397
        %932 = vmatprep.subr.mxu0 0.0
        %933 = vmatpush1.msra.mxu0 %v398
        %934 = vmatprep.subr.mxu0 0.0
        %935 = vmatpush1.msra.mxu0 %v399
        %936 = vmatprep.subr.mxu0 0.0
        %937 = vmatpush1.msra.mxu0 %v400
        %938 = vmatprep.subr.mxu0 0.0
        %939 = vmatpush1.msra.mxu0 %v401
        %940 = vmatprep.subr.mxu0 0.0
        %941 = vmatpush1.msra.mxu0 %v402
        %942 = vmatprep.subr.mxu0 0.0
        %943 = vmatpush1.msra.mxu0 %v403
        %944 = vmatprep.subr.mxu0 0.0
        %945 = vmatpush1.msra.mxu0 0.0
        %946 = vmatprep.subr.mxu0 0.0
        %947 = vmatpush1.msra.mxu0 0.0
        %948 = vmatprep.subr.mxu0 0.0
        %949 = vmatpush1.msra.mxu0 0.0
        %950 = vmatprep.subr.mxu0 0.0
        %951 = vmatpush1.msra.mxu0 0.0
        %952 = vmatprep.subr.mxu0 0.0
        %953 = vmatpush1.msra.mxu0 0.0
        %954 = vmatprep.subr.mxu0 0.0
        %955 = vmatpush1.msra.mxu0 0.0
        %956 = vmatprep.subr.mxu0 0.0
        %957 = vmatpush1.msra.mxu0 0.0
        %958 = vmatprep.subr.mxu0 0.0
        %959 = vmatpush1.msra.mxu0 0.0
        %960 = vmatprep.subr.mxu0 0.0
        %961 = vmatpush1.msra.mxu0 0.0
        %962 = vmatprep.subr.mxu0 0.0
        %963 = vmatpush1.msra.mxu0 0.0
        %964 = vmatprep.subr.mxu0 0.0
        %965 = vmatpush1.msra.mxu0 0.0
        %966 = vmatprep.subr.mxu0 0.0
        %967 = vmatpush1.msra.mxu0 0.0
        %968 = vmatprep.subr.mxu0 0.0
        %969 = vmatpush1.msra.mxu0 0.0
        %970 = vmatprep.subr.mxu0 0.0
        %971 = vmatpush1.msra.mxu0 0.0
        %972 = vmatprep.subr.mxu0 0.0
        %973 = vmatpush1.msra.mxu0 0.0
        %974 = vmatprep.subr.mxu0 0.0
        %975 = vmatpush1.msra.mxu0 0.0
        %976 = vmatprep.mubr.f32.mxu0 0.0
        %977 = vmatmul.mubr.f32.gmra.mrb[0].mxu0 %v910
        %v978 = vpop.f32.mrb[0].mxu0
        %v979 = vadd.f32 0.0, %v978
        %v980 = vpop.f32.mrb[0].mxu0
        %981 = vmatprep.mubr.f32.mxu0 0.0
        %982 = vmatmul.mubr.f32.gmra.mrb[0].mxu0 %v911
        %v983 = vpop.f32.mrb[0].mxu0
        %v984 = vadd.f32 0.0, %v983
        %v985 = vpop.f32.mrb[0].mxu0
        %986 = vdwg.mxu0
        %v987 = vld [vmem:[#allocation3] sm:$0xff]
        %v988 = vld [vmem:[#allocation3 + $0x8] sm:$0xff]
        %989 = vmatprep.subr.mxu0 0.0
        %990 = vmatpush1.msra.mxu0 %v404
        %991 = vmatprep.subr.mxu0 0.0
        %992 = vmatpush1.msra.mxu0 %v405
        %993 = vmatprep.subr.mxu0 0.0
        %994 = vmatpush1.msra.mxu0 %v406
        %995 = vmatprep.subr.mxu0 0.0
        %996 = vmatpush1.msra.mxu0 %v407
        %997 = vmatprep.subr.mxu0 0.0
        %998 = vmatpush1.msra.mxu0 %v408
        %999 = vmatprep.subr.mxu0 0.0
        %1000 = vmatpush1.msra.mxu0 %v409
        %1001 = vmatprep.subr.mxu0 0.0
        %1002 = vmatpush1.msra.mxu0 %v410
        %1003 = vmatprep.subr.mxu0 0.0
        %1004 = vmatpush1.msra.mxu0 %v411
        %1005 = vmatprep.subr.mxu0 0.0
        %1006 = vmatpush1.msra.mxu0 %v412
        %1007 = vmatprep.subr.mxu0 0.0
        %1008 = vmatpush1.msra.mxu0 %v413
        %1009 = vmatprep.subr.mxu0 0.0
        %1010 = vmatpush1.msra.mxu0 %v414
        %1011 = vmatprep.subr.mxu0 0.0
        %1012 = vmatpush1.msra.mxu0 %v415
        %1013 = vmatprep.subr.mxu0 0.0
        %1014 = vmatpush1.msra.mxu0 %v416
        %1015 = vmatprep.subr.mxu0 0.0
        %1016 = vmatpush1.msra.mxu0 %v417
        %1017 = vmatprep.subr.mxu0 0.0
        %1018 = vmatpush1.msra.mxu0 %v418
        %1019 = vmatprep.subr.mxu0 0.0
        %1020 = vmatpush1.msra.mxu0 %v419
        %1021 = vmatprep.subr.mxu0 0.0
        %1022 = vmatpush1.msra.mxu0 0.0
        %1023 = vmatprep.subr.mxu0 0.0
        %1024 = vmatpush1.msra.mxu0 0.0
        %1025 = vmatprep.subr.mxu0 0.0
        %1026 = vmatpush1.msra.mxu0 0.0
        %1027 = vmatprep.subr.mxu0 0.0
        %1028 = vmatpush1.msra.mxu0 0.0
        %1029 = vmatprep.subr.mxu0 0.0
        %1030 = vmatpush1.msra.mxu0 0.0
        %1031 = vmatprep.subr.mxu0 0.0
        %1032 = vmatpush1.msra.mxu0 0.0
        %1033 = vmatprep.subr.mxu0 0.0
        %1034 = vmatpush1.msra.mxu0 0.0
        %1035 = vmatprep.subr.mxu0 0.0
        %1036 = vmatpush1.msra.mxu0 0.0
        %1037 = vmatprep.subr.mxu0 0.0
        %1038 = vmatpush1.msra.mxu0 0.0
        %1039 = vmatprep.subr.mxu0 0.0
        %1040 = vmatpush1.msra.mxu0 0.0
        %1041 = vmatprep.subr.mxu0 0.0
        %1042 = vmatpush1.msra.mxu0 0.0
        %1043 = vmatprep.subr.mxu0 0.0
        %1044 = vmatpush1.msra.mxu0 0.0
        %1045 = vmatprep.subr.mxu0 0.0
        %1046 = vmatpush1.msra.mxu0 0.0
        %1047 = vmatprep.subr.mxu0 0.0
        %1048 = vmatpush1.msra.mxu0 0.0
        %1049 = vmatprep.subr.mxu0 0.0
        %1050 = vmatpush1.msra.mxu0 0.0
        %1051 = vmatprep.subr.mxu0 0.0
        %1052 = vmatpush1.msra.mxu0 0.0
        %1053 = vmatprep.mubr.f32.mxu0 0.0
        %1054 = vmatmul.mubr.f32.gmra.mrb[0].mxu0 %v987
        %v1055 = vpop.f32.mrb[0].mxu0
        %v1056 = vadd.f32 0.0, %v1055
        %v1057 = vpop.f32.mrb[0].mxu0
        %1058 = vmatprep.mubr.f32.mxu0 0.0
        %1059 = vmatmul.mubr.f32.gmra.mrb[0].mxu0 %v988
        %v1060 = vpop.f32.mrb[0].mxu0
        %v1061 = vadd.f32 0.0, %v1060
        %v1062 = vpop.f32.mrb[0].mxu0
        %1063 = vdwg.mxu0
        %v1064 = vmul.f32 %v1056, %v979
        %v1065 = vmul.f32 %v1061, %v984
        %v1066 = vld [vmem:[#allocation2] sm:$0xff]
        %v1067 = vld [vmem:[#allocation2 + $0x8] sm:$0xff]
        %v1068 = vld [vmem:[#allocation2 + $0x10] sm:$0xff]
        %v1069 = vld [vmem:[#allocation2 + $0x18] sm:$0xff]
        %v1070 = vld [vmem:[#allocation2 + $0x20] sm:$0xff]
        %v1071 = vld [vmem:[#allocation2 + $0x28] sm:$0xff]
        %v1072 = vld [vmem:[#allocation2 + $0x30] sm:$0xff]
        %v1073 = vld [vmem:[#allocation2 + $0x38] sm:$0xff]
        %v1074 = vld [vmem:[#allocation2 + $0x40] sm:$0xff]
        %v1075 = vld [vmem:[#allocation2 + $0x48] sm:$0xff]
        %v1076 = vld [vmem:[#allocation2 + $0x50] sm:$0xff]
        %v1077 = vld [vmem:[#allocation2 + $0x58] sm:$0xff]
        %v1078 = vld [vmem:[#allocation2 + $0x60] sm:$0xff]
        %v1079 = vld [vmem:[#allocation2 + $0x68] sm:$0xff]
        %v1080 = vld [vmem:[#allocation2 + $0x70] sm:$0xff]
        %v1081 = vld [vmem:[#allocation2 + $0x78] sm:$0xff]
        %1082 = vmatprep.subr.mxu0 0.0
        %1083 = vmatpush1.msra.mxu0 %v420
        %1084 = vmatprep.subr.mxu0 0.0
        %1085 = vmatpush1.msra.mxu0 %v421
        %1086 = vmatprep.subr.mxu0 0.0
        %1087 = vmatpush1.msra.mxu0 %v422
        %1088 = vmatprep.subr.mxu0 0.0
        %1089 = vmatpush1.msra.mxu0 %v423
        %1090 = vmatprep.subr.mxu0 0.0
        %1091 = vmatpush1.msra.mxu0 %v424
        %1092 = vmatprep.subr.mxu0 0.0
        %1093 = vmatpush1.msra.mxu0 %v425
        %1094 = vmatprep.subr.mxu0 0.0
        %1095 = vmatpush1.msra.mxu0 %v426
        %1096 = vmatprep.subr.mxu0 0.0
        %1097 = vmatpush1.msra.mxu0 %v427
        %1098 = vmatprep.subr.mxu0 0.0
        %1099 = vmatpush1.msra.mxu0 %v428
        %1100 = vmatprep.subr.mxu0 0.0
        %1101 = vmatpush1.msra.mxu0 %v429
        %1102 = vmatprep.subr.mxu0 0.0
        %1103 = vmatpush1.msra.mxu0 %v430
        %1104 = vmatprep.subr.mxu0 0.0
        %1105 = vmatpush1.msra.mxu0 %v431
        %1106 = vmatprep.subr.mxu0 0.0
        %1107 = vmatpush1.msra.mxu0 %v432
        %1108 = vmatprep.subr.mxu0 0.0
        %1109 = vmatpush1.msra.mxu0 %v433
        %1110 = vmatprep.subr.mxu0 0.0
        %1111 = vmatpush1.msra.mxu0 %v434
        %1112 = vmatprep.subr.mxu0 0.0
        %1113 = vmatpush1.msra.mxu0 %v435
        %1114 = vmatprep.subr.mxu0 0.0
        %1115 = vmatpush1.msra.mxu0 %v436
        %1116 = vmatprep.subr.mxu0 0.0
        %1117 = vmatpush1.msra.mxu0 %v437
        %1118 = vmatprep.subr.mxu0 0.0
        %1119 = vmatpush1.msra.mxu0 %v438
        %1120 = vmatprep.subr.mxu0 0.0
        %1121 = vmatpush1.msra.mxu0 %v439
        %1122 = vmatprep.subr.mxu0 0.0
        %1123 = vmatpush1.msra.mxu0 %v440
        %1124 = vmatprep.subr.mxu0 0.0
        %1125 = vmatpush1.msra.mxu0 %v441
        %1126 = vmatprep.subr.mxu0 0.0
        %1127 = vmatpush1.msra.mxu0 %v442
        %1128 = vmatprep.subr.mxu0 0.0
        %1129 = vmatpush1.msra.mxu0 %v443
        %1130 = vmatprep.subr.mxu0 0.0
        %1131 = vmatpush1.msra.mxu0 %v444
        %1132 = vmatprep.subr.mxu0 0.0
        %1133 = vmatpush1.msra.mxu0 %v445
        %1134 = vmatprep.subr.mxu0 0.0
        %1135 = vmatpush1.msra.mxu0 %v446
        %1136 = vmatprep.subr.mxu0 0.0
        %1137 = vmatpush1.msra.mxu0 %v447
        %1138 = vmatprep.subr.mxu0 0.0
        %1139 = vmatpush1.msra.mxu0 %v448
        %1140 = vmatprep.subr.mxu0 0.0
        %1141 = vmatpush1.msra.mxu0 %v449
        %1142 = vmatprep.subr.mxu0 0.0
        %1143 = vmatpush1.msra.mxu0 %v450
        %1144 = vmatprep.subr.mxu0 0.0
        %1145 = vmatpush1.msra.mxu0 %v451
        %1146 = vmatprep.mubr.f32.mxu0 %v1067
        %1147 = vmatmul.mubr.f32.gmra.mrb[0].mxu0 %v1066
        %v1148 = vpop.f32.mrb[0].mxu0
        %v1149 = vadd.f32 0.0, %v1148
        %v1150 = vpop.f32.mrb[0].mxu0
        %1151 = vmatprep.mubr.f32.mxu0 %v1075
        %1152 = vmatmul.mubr.f32.gmra.mrb[0].mxu0 %v1074
        %v1153 = vpop.f32.mrb[0].mxu0
        %v1154 = vadd.f32 0.0, %v1153
        %v1155 = vpop.f32.mrb[0].mxu0
        %1156 = vdwg.mxu0
        %1157 = vmatprep.subr.mxu0 0.0
        %1158 = vmatpush1.msra.mxu0 %v452
        %1159 = vmatprep.subr.mxu0 0.0
        %1160 = vmatpush1.msra.mxu0 %v453
        %1161 = vmatprep.subr.mxu0 0.0
        %1162 = vmatpush1.msra.mxu0 %v454
        %1163 = vmatprep.subr.mxu0 0.0
        %1164 = vmatpush1.msra.mxu0 %v455
        %1165 = vmatprep.subr.mxu0 0.0
        %1166 = vmatpush1.msra.mxu0 %v456
        %1167 = vmatprep.subr.mxu0 0.0
        %1168 = vmatpush1.msra.mxu0 %v457
        %1169 = vmatprep.subr.mxu0 0.0
        %1170 = vmatpush1.msra.mxu0 %v458
        %1171 = vmatprep.subr.mxu0 0.0
        %1172 = vmatpush1.msra.mxu0 %v459
        %1173 = vmatprep.subr.mxu0 0.0
        %1174 = vmatpush1.msra.mxu0 %v460
        %1175 = vmatprep.subr.mxu0 0.0
        %1176 = vmatpush1.msra.mxu0 %v461
        %1177 = vmatprep.subr.mxu0 0.0
        %1178 = vmatpush1.msra.mxu0 %v462
        %1179 = vmatprep.subr.mxu0 0.0
        %1180 = vmatpush1.msra.mxu0 %v463
        %1181 = vmatprep.subr.mxu0 0.0
        %1182 = vmatpush1.msra.mxu0 %v464
        %1183 = vmatprep.subr.mxu0 0.0
        %1184 = vmatpush1.msra.mxu0 %v465
        %1185 = vmatprep.subr.mxu0 0.0
        %1186 = vmatpush1.msra.mxu0 %v466
        %1187 = vmatprep.subr.mxu0 0.0
        %1188 = vmatpush1.msra.mxu0 %v467
        %1189 = vmatprep.subr.mxu0 0.0
        %1190 = vmatpush1.msra.mxu0 %v468
        %1191 = vmatprep.subr.mxu0 0.0
        %1192 = vmatpush1.msra.mxu0 %v469
        %1193 = vmatprep.subr.mxu0 0.0
        %1194 = vmatpush1.msra.mxu0 %v470
        %1195 = vmatprep.subr.mxu0 0.0
        %1196 = vmatpush1.msra.mxu0 %v471
        %1197 = vmatprep.subr.mxu0 0.0
        %1198 = vmatpush1.msra.mxu0 %v472
        %1199 = vmatprep.subr.mxu0 0.0
        %1200 = vmatpush1.msra.mxu0 %v473
        %1201 = vmatprep.subr.mxu0 0.0
        %1202 = vmatpush1.msra.mxu0 %v474
        %1203 = vmatprep.subr.mxu0 0.0
        %1204 = vmatpush1.msra.mxu0 %v475
        %1205 = vmatprep.subr.mxu0 0.0
        %1206 = vmatpush1.msra.mxu0 %v476
        %1207 = vmatprep.subr.mxu0 0.0
        %1208 = vmatpush1.msra.mxu0 %v477
        %1209 = vmatprep.subr.mxu0 0.0
        %1210 = vmatpush1.msra.mxu0 %v478
        %1211 = vmatprep.subr.mxu0 0.0
        %1212 = vmatpush1.msra.mxu0 %v479
        %1213 = vmatprep.subr.mxu0 0.0
        %1214 = vmatpush1.msra.mxu0 %v480
        %1215 = vmatprep.subr.mxu0 0.0
        %1216 = vmatpush1.msra.mxu0 %v481
        %1217 = vmatprep.subr.mxu0 0.0
        %1218 = vmatpush1.msra.mxu0 %v482
        %1219 = vmatprep.subr.mxu0 0.0
        %1220 = vmatpush1.msra.mxu0 %v483
        %1221 = vmatprep.mubr.f32.mxu0 %v1069
        %1222 = vmatmul.mubr.f32.gmra.mrb[0].mxu0 %v1068
        %v1223 = vpop.f32.mrb[0].mxu0
        %v1224 = vadd.f32 %v1149, %v1223
        %v1225 = vpop.f32.mrb[0].mxu0
        %1226 = vmatprep.mubr.f32.mxu0 %v1077
        %1227 = vmatmul.mubr.f32.gmra.mrb[0].mxu0 %v1076
        %v1228 = vpop.f32.mrb[0].mxu0
        %v1229 = vadd.f32 %v1154, %v1228
        %v1230 = vpop.f32.mrb[0].mxu0
        %1231 = vdwg.mxu0
        %1232 = vmatprep.subr.mxu0 0.0
        %1233 = vmatpush1.msra.mxu0 %v484
        %1234 = vmatprep.subr.mxu0 0.0
        %1235 = vmatpush1.msra.mxu0 %v485
        %1236 = vmatprep.subr.mxu0 0.0
        %1237 = vmatpush1.msra.mxu0 %v486
        %1238 = vmatprep.subr.mxu0 0.0
        %1239 = vmatpush1.msra.mxu0 %v487
        %1240 = vmatprep.subr.mxu0 0.0
        %1241 = vmatpush1.msra.mxu0 %v488
        %1242 = vmatprep.subr.mxu0 0.0
        %1243 = vmatpush1.msra.mxu0 %v489
        %1244 = vmatprep.subr.mxu0 0.0
        %1245 = vmatpush1.msra.mxu0 %v490
        %1246 = vmatprep.subr.mxu0 0.0
        %1247 = vmatpush1.msra.mxu0 %v491
        %1248 = vmatprep.subr.mxu0 0.0
        %1249 = vmatpush1.msra.mxu0 %v492
        %1250 = vmatprep.subr.mxu0 0.0
        %1251 = vmatpush1.msra.mxu0 %v493
        %1252 = vmatprep.subr.mxu0 0.0
        %1253 = vmatpush1.msra.mxu0 %v494
        %1254 = vmatprep.subr.mxu0 0.0
        %1255 = vmatpush1.msra.mxu0 %v495
        %1256 = vmatprep.subr.mxu0 0.0
        %1257 = vmatpush1.msra.mxu0 %v496
        %1258 = vmatprep.subr.mxu0 0.0
        %1259 = vmatpush1.msra.mxu0 %v497
        %1260 = vmatprep.subr.mxu0 0.0
        %1261 = vmatpush1.msra.mxu0 %v498
        %1262 = vmatprep.subr.mxu0 0.0
        %1263 = vmatpush1.msra.mxu0 %v499
        %1264 = vmatprep.subr.mxu0 0.0
        %1265 = vmatpush1.msra.mxu0 %v500
        %1266 = vmatprep.subr.mxu0 0.0
        %1267 = vmatpush1.msra.mxu0 %v501
        %1268 = vmatprep.subr.mxu0 0.0
        %1269 = vmatpush1.msra.mxu0 %v502
        %1270 = vmatprep.subr.mxu0 0.0
        %1271 = vmatpush1.msra.mxu0 %v503
        %1272 = vmatprep.subr.mxu0 0.0
        %1273 = vmatpush1.msra.mxu0 %v504
        %1274 = vmatprep.subr.mxu0 0.0
        %1275 = vmatpush1.msra.mxu0 %v505
        %1276 = vmatprep.subr.mxu0 0.0
        %1277 = vmatpush1.msra.mxu0 %v506
        %1278 = vmatprep.subr.mxu0 0.0
        %1279 = vmatpush1.msra.mxu0 %v507
        %1280 = vmatprep.subr.mxu0 0.0
        %1281 = vmatpush1.msra.mxu0 %v508
        %1282 = vmatprep.subr.mxu0 0.0
        %1283 = vmatpush1.msra.mxu0 %v509
        %1284 = vmatprep.subr.mxu0 0.0
        %1285 = vmatpush1.msra.mxu0 %v510
        %1286 = vmatprep.subr.mxu0 0.0
        %1287 = vmatpush1.msra.mxu0 %v511
        %1288 = vmatprep.subr.mxu0 0.0
        %1289 = vmatpush1.msra.mxu0 %v512
        %1290 = vmatprep.subr.mxu0 0.0
        %1291 = vmatpush1.msra.mxu0 %v513
        %1292 = vmatprep.subr.mxu0 0.0
        %1293 = vmatpush1.msra.mxu0 %v514
        %1294 = vmatprep.subr.mxu0 0.0
        %1295 = vmatpush1.msra.mxu0 %v515
        %1296 = vmatprep.mubr.f32.mxu0 %v1071
        %1297 = vmatmul.mubr.f32.gmra.mrb[0].mxu0 %v1070
        %v1298 = vpop.f32.mrb[0].mxu0
        %v1299 = vadd.f32 %v1224, %v1298
        %v1300 = vpop.f32.mrb[0].mxu0
        %1301 = vmatprep.mubr.f32.mxu0 %v1079
        %1302 = vmatmul.mubr.f32.gmra.mrb[0].mxu0 %v1078
        %v1303 = vpop.f32.mrb[0].mxu0
        %v1304 = vadd.f32 %v1229, %v1303
        %v1305 = vpop.f32.mrb[0].mxu0
        %1306 = vdwg.mxu0
        %1307 = vmatprep.subr.mxu0 0.0
        %1308 = vmatpush1.msra.mxu0 %v516
        %1309 = vmatprep.subr.mxu0 0.0
        %1310 = vmatpush1.msra.mxu0 %v517
        %1311 = vmatprep.subr.mxu0 0.0
        %1312 = vmatpush1.msra.mxu0 %v518
        %1313 = vmatprep.subr.mxu0 0.0
        %1314 = vmatpush1.msra.mxu0 %v519
        %1315 = vmatprep.subr.mxu0 0.0
        %1316 = vmatpush1.msra.mxu0 %v520
        %1317 = vmatprep.subr.mxu0 0.0
        %1318 = vmatpush1.msra.mxu0 %v521
        %1319 = vmatprep.subr.mxu0 0.0
        %1320 = vmatpush1.msra.mxu0 %v522
        %1321 = vmatprep.subr.mxu0 0.0
        %1322 = vmatpush1.msra.mxu0 %v523
        %1323 = vmatprep.subr.mxu0 0.0
        %1324 = vmatpush1.msra.mxu0 %v524
        %1325 = vmatprep.subr.mxu0 0.0
        %1326 = vmatpush1.msra.mxu0 %v525
        %1327 = vmatprep.subr.mxu0 0.0
        %1328 = vmatpush1.msra.mxu0 %v526
        %1329 = vmatprep.subr.mxu0 0.0
        %1330 = vmatpush1.msra.mxu0 %v527
        %1331 = vmatprep.subr.mxu0 0.0
        %1332 = vmatpush1.msra.mxu0 %v528
        %1333 = vmatprep.subr.mxu0 0.0
        %1334 = vmatpush1.msra.mxu0 %v529
        %1335 = vmatprep.subr.mxu0 0.0
        %1336 = vmatpush1.msra.mxu0 %v530
        %1337 = vmatprep.subr.mxu0 0.0
        %1338 = vmatpush1.msra.mxu0 %v531
        %1339 = vmatprep.subr.mxu0 0.0
        %1340 = vmatpush1.msra.mxu0 %v532
        %1341 = vmatprep.subr.mxu0 0.0
        %1342 = vmatpush1.msra.mxu0 %v533
        %1343 = vmatprep.subr.mxu0 0.0
        %1344 = vmatpush1.msra.mxu0 %v534
        %1345 = vmatprep.subr.mxu0 0.0
        %1346 = vmatpush1.msra.mxu0 %v535
        %1347 = vmatprep.subr.mxu0 0.0
        %1348 = vmatpush1.msra.mxu0 %v536
        %1349 = vmatprep.subr.mxu0 0.0
        %1350 = vmatpush1.msra.mxu0 %v537
        %1351 = vmatprep.subr.mxu0 0.0
        %1352 = vmatpush1.msra.mxu0 %v538
        %1353 = vmatprep.subr.mxu0 0.0
        %1354 = vmatpush1.msra.mxu0 %v539
        %1355 = vmatprep.subr.mxu0 0.0
        %1356 = vmatpush1.msra.mxu0 %v540
        %1357 = vmatprep.subr.mxu0 0.0
        %1358 = vmatpush1.msra.mxu0 %v541
        %1359 = vmatprep.subr.mxu0 0.0
        %1360 = vmatpush1.msra.mxu0 %v542
        %1361 = vmatprep.subr.mxu0 0.0
        %1362 = vmatpush1.msra.mxu0 %v543
        %1363 = vmatprep.subr.mxu0 0.0
        %1364 = vmatpush1.msra.mxu0 %v544
        %1365 = vmatprep.subr.mxu0 0.0
        %1366 = vmatpush1.msra.mxu0 %v545
        %1367 = vmatprep.subr.mxu0 0.0
        %1368 = vmatpush1.msra.mxu0 %v546
        %1369 = vmatprep.subr.mxu0 0.0
        %1370 = vmatpush1.msra.mxu0 %v547
        %1371 = vmatprep.mubr.f32.mxu0 %v1073
        %1372 = vmatmul.mubr.f32.gmra.mrb[0].mxu0 %v1072
        %v1373 = vpop.f32.mrb[0].mxu0
        %v1374 = vadd.f32 %v1299, %v1373
        %v1375 = vpop.f32.mrb[0].mxu0
        %1376 = vmatprep.mubr.f32.mxu0 %v1081
        %1377 = vmatmul.mubr.f32.gmra.mrb[0].mxu0 %v1080
        %v1378 = vpop.f32.mrb[0].mxu0
        %v1379 = vadd.f32 %v1304, %v1378
        %v1380 = vpop.f32.mrb[0].mxu0
        %1381 = vdwg.mxu0
        %v1382 = vadd.f32 %v979, %v1374
        %v1383 = vadd.f32 %v984, %v1379
        %v1384 = vadd.f32 %v1382, %v1064
        %v1385 = vadd.f32 %v1383, %v1065
        %v1386 = vld [vmem:[#allocation13] sm:$0xff]
        %v1387 = vld [vmem:[#allocation13 + $0x8] sm:$0xff]
        %v1388 = vld [vmem:[#allocation13 + $0x10] sm:$0xff]
        %v1389 = vld [vmem:[#allocation13 + $0x18] sm:$0xff]
        %v1390 = vld [vmem:[#allocation13 + $0x20] sm:$0xff]
        %v1391 = vld [vmem:[#allocation13 + $0x28] sm:$0xff]
        %v1392 = vld [vmem:[#allocation13 + $0x30] sm:$0xff]
        %v1393 = vld [vmem:[#allocation13 + $0x38] sm:$0xff]
        %v1394 = vld [vmem:[#allocation13 + $0x40] sm:$0xff]
        %v1395 = vld [vmem:[#allocation13 + $0x48] sm:$0xff]
        %v1396 = vld [vmem:[#allocation13 + $0x50] sm:$0xff]
        %v1397 = vld [vmem:[#allocation13 + $0x58] sm:$0xff]
        %v1398 = vld [vmem:[#allocation13 + $0x60] sm:$0xff]
        %v1399 = vld [vmem:[#allocation13 + $0x68] sm:$0xff]
        %v1400 = vld [vmem:[#allocation13 + $0x70] sm:$0xff]
        %v1401 = vld [vmem:[#allocation13 + $0x78] sm:$0xff]
        %v1402 = vld [vmem:[#allocation14] sm:$0xff]
        %v1403 = vld [vmem:[#allocation14 + $0x8] sm:$0xff]
        %v1404 = vld [vmem:[#allocation14 + $0x10] sm:$0xff]
        %v1405 = vld [vmem:[#allocation14 + $0x18] sm:$0xff]
        %v1406 = vld [vmem:[#allocation14 + $0x20] sm:$0xff]
        %v1407 = vld [vmem:[#allocation14 + $0x28] sm:$0xff]
        %v1408 = vld [vmem:[#allocation14 + $0x30] sm:$0xff]
        %v1409 = vld [vmem:[#allocation14 + $0x38] sm:$0xff]
        %v1410 = vld [vmem:[#allocation14 + $0x40] sm:$0xff]
        %v1411 = vld [vmem:[#allocation14 + $0x48] sm:$0xff]
        %v1412 = vld [vmem:[#allocation14 + $0x50] sm:$0xff]
        %v1413 = vld [vmem:[#allocation14 + $0x58] sm:$0xff]
        %v1414 = vld [vmem:[#allocation14 + $0x60] sm:$0xff]
        %v1415 = vld [vmem:[#allocation14 + $0x68] sm:$0xff]
        %v1416 = vld [vmem:[#allocation14 + $0x70] sm:$0xff]
        %v1417 = vld [vmem:[#allocation14 + $0x78] sm:$0xff]
        %v1418 = vld [vmem:[#allocation16] sm:$0xff]
        %v1419 = vld [vmem:[#allocation16 + $0x8] sm:$0xff]
        %v1420 = vld [vmem:[#allocation16 + $0x10] sm:$0xff]
        %v1421 = vld [vmem:[#allocation16 + $0x18] sm:$0xff]
        %v1422 = vld [vmem:[#allocation16 + $0x20] sm:$0xff]
        %v1423 = vld [vmem:[#allocation16 + $0x28] sm:$0xff]
        %v1424 = vld [vmem:[#allocation16 + $0x30] sm:$0xff]
        %v1425 = vld [vmem:[#allocation16 + $0x38] sm:$0xff]
        %v1426 = vld [vmem:[#allocation16 + $0x40] sm:$0xff]
        %v1427 = vld [vmem:[#allocation16 + $0x48] sm:$0xff]
        %v1428 = vld [vmem:[#allocation16 + $0x50] sm:$0xff]
        %v1429 = vld [vmem:[#allocation16 + $0x58] sm:$0xff]
        %v1430 = vld [vmem:[#allocation16 + $0x60] sm:$0xff]
        %v1431 = vld [vmem:[#allocation16 + $0x68] sm:$0xff]
        %v1432 = vld [vmem:[#allocation16 + $0x70] sm:$0xff]
        %v1433 = vld [vmem:[#allocation16 + $0x78] sm:$0xff]
        %v1434 = vld [vmem:[#allocation16 + $0x80] sm:$0xff]
        %v1435 = vld [vmem:[#allocation16 + $0x88] sm:$0xff]
        %v1436 = vld [vmem:[#allocation16 + $0x90] sm:$0xff]
        %v1437 = vld [vmem:[#allocation16 + $0x98] sm:$0xff]
        %v1438 = vld [vmem:[#allocation16 + $0xa0] sm:$0xff]
        %v1439 = vld [vmem:[#allocation16 + $0xa8] sm:$0xff]
        %v1440 = vld [vmem:[#allocation16 + $0xb0] sm:$0xff]
        %v1441 = vld [vmem:[#allocation16 + $0xb8] sm:$0xff]
        %v1442 = vld [vmem:[#allocation16 + $0xc0] sm:$0xff]
        %v1443 = vld [vmem:[#allocation16 + $0xc8] sm:$0xff]
        %v1444 = vld [vmem:[#allocation16 + $0xd0] sm:$0xff]
        %v1445 = vld [vmem:[#allocation16 + $0xd8] sm:$0xff]
        %v1446 = vld [vmem:[#allocation16 + $0xe0] sm:$0xff]
        %v1447 = vld [vmem:[#allocation16 + $0xe8] sm:$0xff]
        %v1448 = vld [vmem:[#allocation16 + $0xf0] sm:$0xff]
        %v1449 = vld [vmem:[#allocation16 + $0xf8] sm:$0xff]
        %v1450 = vld [vmem:[#allocation16 + $0x100] sm:$0xff]
        %v1451 = vld [vmem:[#allocation16 + $0x108] sm:$0xff]
        %v1452 = vld [vmem:[#allocation16 + $0x110] sm:$0xff]
        %v1453 = vld [vmem:[#allocation16 + $0x118] sm:$0xff]
        %v1454 = vld [vmem:[#allocation16 + $0x120] sm:$0xff]
        %v1455 = vld [vmem:[#allocation16 + $0x128] sm:$0xff]
        %v1456 = vld [vmem:[#allocation16 + $0x130] sm:$0xff]
        %v1457 = vld [vmem:[#allocation16 + $0x138] sm:$0xff]
        %v1458 = vld [vmem:[#allocation16 + $0x140] sm:$0xff]
        %v1459 = vld [vmem:[#allocation16 + $0x148] sm:$0xff]
        %v1460 = vld [vmem:[#allocation16 + $0x150] sm:$0xff]
        %v1461 = vld [vmem:[#allocation16 + $0x158] sm:$0xff]
        %v1462 = vld [vmem:[#allocation16 + $0x160] sm:$0xff]
        %v1463 = vld [vmem:[#allocation16 + $0x168] sm:$0xff]
        %v1464 = vld [vmem:[#allocation16 + $0x170] sm:$0xff]
        %v1465 = vld [vmem:[#allocation16 + $0x178] sm:$0xff]
        %v1466 = vld [vmem:[#allocation16 + $0x180] sm:$0xff]
        %v1467 = vld [vmem:[#allocation16 + $0x188] sm:$0xff]
        %v1468 = vld [vmem:[#allocation16 + $0x190] sm:$0xff]
        %v1469 = vld [vmem:[#allocation16 + $0x198] sm:$0xff]
        %v1470 = vld [vmem:[#allocation16 + $0x1a0] sm:$0xff]
        %v1471 = vld [vmem:[#allocation16 + $0x1a8] sm:$0xff]
        %v1472 = vld [vmem:[#allocation16 + $0x1b0] sm:$0xff]
        %v1473 = vld [vmem:[#allocation16 + $0x1b8] sm:$0xff]
        %v1474 = vld [vmem:[#allocation16 + $0x1c0] sm:$0xff]
        %v1475 = vld [vmem:[#allocation16 + $0x1c8] sm:$0xff]
        %v1476 = vld [vmem:[#allocation16 + $0x1d0] sm:$0xff]
        %v1477 = vld [vmem:[#allocation16 + $0x1d8] sm:$0xff]
        %v1478 = vld [vmem:[#allocation16 + $0x1e0] sm:$0xff]
        %v1479 = vld [vmem:[#allocation16 + $0x1e8] sm:$0xff]
        %v1480 = vld [vmem:[#allocation16 + $0x1f0] sm:$0xff]
        %v1481 = vld [vmem:[#allocation16 + $0x1f8] sm:$0xff]
        %v1482 = vld [vmem:[#allocation16 + $0x200] sm:$0xff]
        %v1483 = vld [vmem:[#allocation16 + $0x208] sm:$0xff]
        %v1484 = vld [vmem:[#allocation16 + $0x210] sm:$0xff]
        %v1485 = vld [vmem:[#allocation16 + $0x218] sm:$0xff]
        %v1486 = vld [vmem:[#allocation16 + $0x220] sm:$0xff]
        %v1487 = vld [vmem:[#allocation16 + $0x228] sm:$0xff]
        %v1488 = vld [vmem:[#allocation16 + $0x230] sm:$0xff]
        %v1489 = vld [vmem:[#allocation16 + $0x238] sm:$0xff]
        %v1490 = vld [vmem:[#allocation16 + $0x240] sm:$0xff]
        %v1491 = vld [vmem:[#allocation16 + $0x248] sm:$0xff]
        %v1492 = vld [vmem:[#allocation16 + $0x250] sm:$0xff]
        %v1493 = vld [vmem:[#allocation16 + $0x258] sm:$0xff]
        %v1494 = vld [vmem:[#allocation16 + $0x260] sm:$0xff]
        %v1495 = vld [vmem:[#allocation16 + $0x268] sm:$0xff]
        %v1496 = vld [vmem:[#allocation16 + $0x270] sm:$0xff]
        %v1497 = vld [vmem:[#allocation16 + $0x278] sm:$0xff]
        %v1498 = vld [vmem:[#allocation16 + $0x280] sm:$0xff]
        %v1499 = vld [vmem:[#allocation16 + $0x288] sm:$0xff]
        %v1500 = vld [vmem:[#allocation16 + $0x290] sm:$0xff]
        %v1501 = vld [vmem:[#allocation16 + $0x298] sm:$0xff]
        %v1502 = vld [vmem:[#allocation16 + $0x2a0] sm:$0xff]
        %v1503 = vld [vmem:[#allocation16 + $0x2a8] sm:$0xff]
        %v1504 = vld [vmem:[#allocation16 + $0x2b0] sm:$0xff]
        %v1505 = vld [vmem:[#allocation16 + $0x2b8] sm:$0xff]
        %v1506 = vld [vmem:[#allocation16 + $0x2c0] sm:$0xff]
        %v1507 = vld [vmem:[#allocation16 + $0x2c8] sm:$0xff]
        %v1508 = vld [vmem:[#allocation16 + $0x2d0] sm:$0xff]
        %v1509 = vld [vmem:[#allocation16 + $0x2d8] sm:$0xff]
        %v1510 = vld [vmem:[#allocation16 + $0x2e0] sm:$0xff]
        %v1511 = vld [vmem:[#allocation16 + $0x2e8] sm:$0xff]
        %v1512 = vld [vmem:[#allocation16 + $0x2f0] sm:$0xff]
        %v1513 = vld [vmem:[#allocation16 + $0x2f8] sm:$0xff]
        %v1514 = vld [vmem:[#allocation16 + $0x300] sm:$0xff]
        %v1515 = vld [vmem:[#allocation16 + $0x308] sm:$0xff]
        %v1516 = vld [vmem:[#allocation16 + $0x310] sm:$0xff]
        %v1517 = vld [vmem:[#allocation16 + $0x318] sm:$0xff]
        %v1518 = vld [vmem:[#allocation16 + $0x320] sm:$0xff]
        %v1519 = vld [vmem:[#allocation16 + $0x328] sm:$0xff]
        %v1520 = vld [vmem:[#allocation16 + $0x330] sm:$0xff]
        %v1521 = vld [vmem:[#allocation16 + $0x338] sm:$0xff]
        %v1522 = vld [vmem:[#allocation16 + $0x340] sm:$0xff]
        %v1523 = vld [vmem:[#allocation16 + $0x348] sm:$0xff]
        %v1524 = vld [vmem:[#allocation16 + $0x350] sm:$0xff]
        %v1525 = vld [vmem:[#allocation16 + $0x358] sm:$0xff]
        %v1526 = vld [vmem:[#allocation16 + $0x360] sm:$0xff]
        %v1527 = vld [vmem:[#allocation16 + $0x368] sm:$0xff]
        %v1528 = vld [vmem:[#allocation16 + $0x370] sm:$0xff]
        %v1529 = vld [vmem:[#allocation16 + $0x378] sm:$0xff]
        %v1530 = vld [vmem:[#allocation16 + $0x380] sm:$0xff]
        %v1531 = vld [vmem:[#allocation16 + $0x388] sm:$0xff]
        %v1532 = vld [vmem:[#allocation16 + $0x390] sm:$0xff]
        %v1533 = vld [vmem:[#allocation16 + $0x398] sm:$0xff]
        %v1534 = vld [vmem:[#allocation16 + $0x3a0] sm:$0xff]
        %v1535 = vld [vmem:[#allocation16 + $0x3a8] sm:$0xff]
        %v1536 = vld [vmem:[#allocation16 + $0x3b0] sm:$0xff]
        %v1537 = vld [vmem:[#allocation16 + $0x3b8] sm:$0xff]
        %v1538 = vld [vmem:[#allocation16 + $0x3c0] sm:$0xff]
        %v1539 = vld [vmem:[#allocation16 + $0x3c8] sm:$0xff]
        %v1540 = vld [vmem:[#allocation16 + $0x3d0] sm:$0xff]
        %v1541 = vld [vmem:[#allocation16 + $0x3d8] sm:$0xff]
        %v1542 = vld [vmem:[#allocation16 + $0x3e0] sm:$0xff]
        %v1543 = vld [vmem:[#allocation16 + $0x3e8] sm:$0xff]
        %v1544 = vld [vmem:[#allocation16 + $0x3f0] sm:$0xff]
        %v1545 = vld [vmem:[#allocation16 + $0x3f8] sm:$0xff]
        %1546 = vst [vmem:[#allocation3] sm:$0xff] %v1384
        %1547 = vst [vmem:[#allocation3 + $0x8] sm:$0xff] %v1385
        %v1548 = vxor.u32 %v1384, 2147483648
        %v1549 = vxor.u32 %v1385, 2147483648
        %v1550 = vmul.f32 %v1548, 1.442695
        %v1551 = vpow.pop %v1550
        %v1552 = vmul.f32 %v1549, 1.442695
        %v1553 = vpow.pop %v1552
        %v1554 = vadd.f32 %v1551, 1.0
        %v1555 = vadd.f32 %v1553, 1.0
        %v1556 = vrcp.pop %v1554
        %v1557 = vmul.f32 1.0, %v1556
        %v1558 = vrcp.pop %v1555
        %v1559 = vmul.f32 1.0, %v1558
        %v1560 = vmul.f32 %v1384, %v1557
        %v1561 = vmul.f32 %v1385, %v1559
        %1562 = vst [vmem:[#allocation4] sm:$0xff] %v1560
        %1563 = vst [vmem:[#allocation4 + $0x8] sm:$0xff] %v1561
        %vm1564 = vcmp.ge.f32.partialorder %v1384, -2.2
        %vm1565 = vcmp.ge.f32.partialorder %v1385, -2.2
        %v1566 = vsel %vm1564, 1, 0
        %v1567 = vsel %vm1565, 1, 0
        %v1568 = vcvt.s32.f32 %v1566
        %v1569 = vcvt.s32.f32 %v1567
        %vm1570 = vcmp.ge.f32.partialorder %v1384, -1.8
        %vm1571 = vcmp.ge.f32.partialorder %v1385, -1.8
        %v1572 = vsel %vm1570, 1, 0
        %v1573 = vsel %vm1571, 1, 0
        %v1574 = vcvt.s32.f32 %v1572
        %v1575 = vcvt.s32.f32 %v1573
        %vm1576 = vcmp.ge.f32.partialorder %v1384, -1.4
        %vm1577 = vcmp.ge.f32.partialorder %v1385, -1.4
        %v1578 = vsel %vm1576, 1, 0
        %v1579 = vsel %vm1577, 1, 0
        %v1580 = vcvt.s32.f32 %v1578
        %v1581 = vcvt.s32.f32 %v1579
        %vm1582 = vcmp.ge.f32.partialorder %v1384, -1.0
        %vm1583 = vcmp.ge.f32.partialorder %v1385, -1.0
        %v1584 = vsel %vm1582, 1, 0
        %v1585 = vsel %vm1583, 1, 0
        %v1586 = vcvt.s32.f32 %v1584
        %v1587 = vcvt.s32.f32 %v1585
        %vm1588 = vcmp.ge.f32.partialorder %v1384, -0.6
        %vm1589 = vcmp.ge.f32.partialorder %v1385, -0.6
        %v1590 = vsel %vm1588, 1, 0
        %v1591 = vsel %vm1589, 1, 0
        %v1592 = vcvt.s32.f32 %v1590
        %v1593 = vcvt.s32.f32 %v1591
        %vm1594 = vcmp.ge.f32.partialorder %v1384, -0.2
        %vm1595 = vcmp.ge.f32.partialorder %v1385, -0.2
        %v1596 = vsel %vm1594, 1, 0
        %v1597 = vsel %vm1595, 1, 0
        %v1598 = vcvt.s32.f32 %v1596
        %v1599 = vcvt.s32.f32 %v1597
        %vm1600 = vcmp.ge.f32.partialorder %v1384, 0.2
        %vm1601 = vcmp.ge.f32.partialorder %v1385, 0.2
        %v1602 = vsel %vm1600, 1, 0
        %v1603 = vsel %vm1601, 1, 0
        %v1604 = vcvt.s32.f32 %v1602
        %v1605 = vcvt.s32.f32 %v1603
        %vm1606 = vcmp.ge.f32.partialorder %v1384, 0.6
        %vm1607 = vcmp.ge.f32.partialorder %v1385, 0.6
        %v1608 = vsel %vm1606, 1, 0
        %v1609 = vsel %vm1607, 1, 0
        %v1610 = vcvt.s32.f32 %v1608
        %v1611 = vcvt.s32.f32 %v1609
        %vm1612 = vcmp.ge.f32.partialorder %v1384, 1.0
        %vm1613 = vcmp.ge.f32.partialorder %v1385, 1.0
        %v1614 = vsel %vm1612, 1, 0
        %v1615 = vsel %vm1613, 1, 0
        %v1616 = vcvt.s32.f32 %v1614
        %v1617 = vcvt.s32.f32 %v1615
        %vm1618 = vcmp.ge.f32.partialorder %v1384, 1.4
        %vm1619 = vcmp.ge.f32.partialorder %v1385, 1.4
        %v1620 = vsel %vm1618, 1, 0
        %v1621 = vsel %vm1619, 1, 0
        %v1622 = vcvt.s32.f32 %v1620
        %v1623 = vcvt.s32.f32 %v1621
        %vm1624 = vcmp.ge.f32.partialorder %v1384, 1.8
        %vm1625 = vcmp.ge.f32.partialorder %v1385, 1.8
        %v1626 = vsel %vm1624, 1, 0
        %v1627 = vsel %vm1625, 1, 0
        %v1628 = vcvt.s32.f32 %v1626
        %v1629 = vcvt.s32.f32 %v1627
        %vm1630 = vcmp.ge.f32.partialorder %v1384, 2.2
        %vm1631 = vcmp.ge.f32.partialorder %v1385, 2.2
        %v1632 = vsel %vm1630, 1, 0
        %v1633 = vsel %vm1631, 1, 0
        %v1634 = vcvt.s32.f32 %v1632
        %v1635 = vcvt.s32.f32 %v1633
        %v1636 = vsub.f32 %v1568, %v1574
        %v1637 = vsub.f32 %v1569, %v1575
        %v1638 = vsub.f32 %v1574, %v1580
        %v1639 = vsub.f32 %v1575, %v1581
        %v1640 = vsub.f32 %v1580, %v1586
        %v1641 = vsub.f32 %v1581, %v1587
        %v1642 = vsub.f32 %v1586, %v1592
        %v1643 = vsub.f32 %v1587, %v1593
        %v1644 = vsub.f32 %v1592, %v1598
        %v1645 = vsub.f32 %v1593, %v1599
        %v1646 = vsub.f32 %v1598, %v1604
        %v1647 = vsub.f32 %v1599, %v1605
        %v1648 = vsub.f32 %v1604, %v1610
        %v1649 = vsub.f32 %v1605, %v1611
        %v1650 = vsub.f32 %v1610, %v1616
        %v1651 = vsub.f32 %v1611, %v1617
        %v1652 = vsub.f32 %v1616, %v1622
        %v1653 = vsub.f32 %v1617, %v1623
        %v1654 = vsub.f32 %v1622, %v1628
        %v1655 = vsub.f32 %v1623, %v1629
        %v1656 = vsub.f32 %v1628, %v1634
        %v1657 = vsub.f32 %v1629, %v1635
        %v1658 = vmul.f32 %v1384, 2.5
        %v1659 = vmul.f32 %v1385, 2.5
        %v1660 = vsub.f32 %v1658, -5.5
        %v1661 = vsub.f32 %v1659, -5.5
        %v1662 = vsub.f32 %v1658, -4.5
        %v1663 = vsub.f32 %v1659, -4.5
        %v1664 = vsub.f32 %v1658, -3.5
        %v1665 = vsub.f32 %v1659, -3.5
        %v1666 = vsub.f32 %v1658, -2.5
        %v1667 = vsub.f32 %v1659, -2.5
        %v1668 = vsub.f32 %v1658, -1.5
        %v1669 = vsub.f32 %v1659, -1.5
        %v1670 = vsub.f32 %v1658, -0.5
        %v1671 = vsub.f32 %v1659, -0.5
        %v1672 = vsub.f32 %v1658, 0.5
        %v1673 = vsub.f32 %v1659, 0.5
        %v1674 = vsub.f32 %v1658, 1.5
        %v1675 = vsub.f32 %v1659, 1.5
        %v1676 = vsub.f32 %v1658, 2.5
        %v1677 = vsub.f32 %v1659, 2.5
        %v1678 = vsub.f32 %v1658, 3.5
        %v1679 = vsub.f32 %v1659, 3.5
        %v1680 = vsub.f32 %v1658, 4.5
        %v1681 = vsub.f32 %v1659, 4.5
        %v1682 = vmul.f32 %v1660, %v1636
        %v1683 = vmul.f32 %v1661, %v1637
        %v1684 = vmul.f32 %v1662, %v1638
        %v1685 = vmul.f32 %v1663, %v1639
        %v1686 = vmul.f32 %v1664, %v1640
        %v1687 = vmul.f32 %v1665, %v1641
        %v1688 = vmul.f32 %v1666, %v1642
        %v1689 = vmul.f32 %v1667, %v1643
        %v1690 = vmul.f32 %v1668, %v1644
        %v1691 = vmul.f32 %v1669, %v1645
        %v1692 = vmul.f32 %v1670, %v1646
        %v1693 = vmul.f32 %v1671, %v1647
        %v1694 = vmul.f32 %v1672, %v1648
        %v1695 = vmul.f32 %v1673, %v1649
        %v1696 = vmul.f32 %v1674, %v1650
        %v1697 = vmul.f32 %v1675, %v1651
        %v1698 = vmul.f32 %v1676, %v1652
        %v1699 = vmul.f32 %v1677, %v1653
        %v1700 = vmul.f32 %v1678, %v1654
        %v1701 = vmul.f32 %v1679, %v1655
        %v1702 = vmul.f32 %v1680, %v1656
        %v1703 = vmul.f32 %v1681, %v1657
        %v1704 = vadd.f32 %v1682, %v1638
        %v1705 = vadd.f32 %v1683, %v1639
        %v1706 = vsub.f32 %v1704, %v1684
        %v1707 = vsub.f32 %v1705, %v1685
        %v1708 = vadd.f32 %v1684, %v1640
        %v1709 = vadd.f32 %v1685, %v1641
        %v1710 = vsub.f32 %v1708, %v1686
        %v1711 = vsub.f32 %v1709, %v1687
        %v1712 = vadd.f32 %v1686, %v1642
        %v1713 = vadd.f32 %v1687, %v1643
        %v1714 = vsub.f32 %v1712, %v1688
        %v1715 = vsub.f32 %v1713, %v1689
        %v1716 = vadd.f32 %v1688, %v1644
        %v1717 = vadd.f32 %v1689, %v1645
        %v1718 = vsub.f32 %v1716, %v1690
        %v1719 = vsub.f32 %v1717, %v1691
        %v1720 = vadd.f32 %v1690, %v1646
        %v1721 = vadd.f32 %v1691, %v1647
        %v1722 = vsub.f32 %v1720, %v1692
        %v1723 = vsub.f32 %v1721, %v1693
        %v1724 = vadd.f32 %v1692, %v1648
        %v1725 = vadd.f32 %v1693, %v1649
        %v1726 = vsub.f32 %v1724, %v1694
        %v1727 = vsub.f32 %v1725, %v1695
        %v1728 = vadd.f32 %v1694, %v1650
        %v1729 = vadd.f32 %v1695, %v1651
        %v1730 = vsub.f32 %v1728, %v1696
        %v1731 = vsub.f32 %v1729, %v1697
        %v1732 = vadd.f32 %v1696, %v1652
        %v1733 = vadd.f32 %v1697, %v1653
        %v1734 = vsub.f32 %v1732, %v1698
        %v1735 = vsub.f32 %v1733, %v1699
        %v1736 = vadd.f32 %v1698, %v1654
        %v1737 = vadd.f32 %v1699, %v1655
        %v1738 = vsub.f32 %v1736, %v1700
        %v1739 = vsub.f32 %v1737, %v1701
        %v1740 = vadd.f32 %v1700, %v1656
        %v1741 = vadd.f32 %v1701, %v1657
        %v1742 = vsub.f32 %v1740, %v1702
        %v1743 = vsub.f32 %v1741, %v1703
        %v1744 = vmul.f32 %v1384, 1.25
        %v1745 = vmul.f32 %v1385, 1.25
        %v1746 = vsub.f32 %v1744, -2.75
        %v1747 = vsub.f32 %v1745, -2.75
        %v1748 = vsub.f32 %v1744, -2.25
        %v1749 = vsub.f32 %v1745, -2.25
        %v1750 = vsub.f32 %v1744, -1.75
        %v1751 = vsub.f32 %v1745, -1.75
        %v1752 = vsub.f32 %v1744, -1.25
        %v1753 = vsub.f32 %v1745, -1.25
        %v1754 = vsub.f32 %v1744, -0.75
        %v1755 = vsub.f32 %v1745, -0.75
        %v1756 = vsub.f32 %v1744, -0.25
        %v1757 = vsub.f32 %v1745, -0.25
        %v1758 = vsub.f32 %v1744, 0.25
        %v1759 = vsub.f32 %v1745, 0.25
        %v1760 = vsub.f32 %v1744, 0.75
        %v1761 = vsub.f32 %v1745, 0.75
        %v1762 = vsub.f32 %v1744, 1.25
        %v1763 = vsub.f32 %v1745, 1.25
        %v1764 = vsub.f32 %v1744, 1.75
        %v1765 = vsub.f32 %v1745, 1.75
        %v1766 = vmul.f32 %v1746, %v1706
        %v1767 = vmul.f32 %v1747, %v1707
        %v1768 = vmul.f32 %v1748, %v1710
        %v1769 = vmul.f32 %v1749, %v1711
        %v1770 = vmul.f32 %v1750, %v1714
        %v1771 = vmul.f32 %v1751, %v1715
        %v1772 = vmul.f32 %v1752, %v1718
        %v1773 = vmul.f32 %v1753, %v1719
        %v1774 = vmul.f32 %v1754, %v1722
        %v1775 = vmul.f32 %v1755, %v1723
        %v1776 = vmul.f32 %v1756, %v1726
        %v1777 = vmul.f32 %v1757, %v1727
        %v1778 = vmul.f32 %v1758, %v1730
        %v1779 = vmul.f32 %v1759, %v1731
        %v1780 = vmul.f32 %v1760, %v1734
        %v1781 = vmul.f32 %v1761, %v1735
        %v1782 = vmul.f32 %v1762, %v1738
        %v1783 = vmul.f32 %v1763, %v1739
        %v1784 = vmul.f32 %v1764, %v1742
        %v1785 = vmul.f32 %v1765, %v1743
        %v1786 = vadd.f32 %v1766, %v1710
        %v1787 = vadd.f32 %v1767, %v1711
        %v1788 = vsub.f32 %v1786, %v1768
        %v1789 = vsub.f32 %v1787, %v1769
        %v1790 = vadd.f32 %v1768, %v1714
        %v1791 = vadd.f32 %v1769, %v1715
        %v1792 = vsub.f32 %v1790, %v1770
        %v1793 = vsub.f32 %v1791, %v1771
        %v1794 = vadd.f32 %v1770, %v1718
        %v1795 = vadd.f32 %v1771, %v1719
        %v1796 = vsub.f32 %v1794, %v1772
        %v1797 = vsub.f32 %v1795, %v1773
        %v1798 = vadd.f32 %v1772, %v1722
        %v1799 = vadd.f32 %v1773, %v1723
        %v1800 = vsub.f32 %v1798, %v1774
        %v1801 = vsub.f32 %v1799, %v1775
        %v1802 = vadd.f32 %v1774, %v1726
        %v1803 = vadd.f32 %v1775, %v1727
        %v1804 = vsub.f32 %v1802, %v1776
        %v1805 = vsub.f32 %v1803, %v1777
        %v1806 = vadd.f32 %v1776, %v1730
        %v1807 = vadd.f32 %v1777, %v1731
        %v1808 = vsub.f32 %v1806, %v1778
        %v1809 = vsub.f32 %v1807, %v1779
        %v1810 = vadd.f32 %v1778, %v1734
        %v1811 = vadd.f32 %v1779, %v1735
        %v1812 = vsub.f32 %v1810, %v1780
        %v1813 = vsub.f32 %v1811, %v1781
        %v1814 = vadd.f32 %v1780, %v1738
        %v1815 = vadd.f32 %v1781, %v1739
        %v1816 = vsub.f32 %v1814, %v1782
        %v1817 = vsub.f32 %v1815, %v1783
        %v1818 = vadd.f32 %v1782, %v1742
        %v1819 = vadd.f32 %v1783, %v1743
        %v1820 = vsub.f32 %v1818, %v1784
        %v1821 = vsub.f32 %v1819, %v1785
        %v1822 = vmul.f32 %v1384, 0.8333333
        %v1823 = vmul.f32 %v1385, 0.8333333
        %v1824 = vsub.f32 %v1822, -1.8333334
        %v1825 = vsub.f32 %v1823, -1.8333334
        %v1826 = vsub.f32 %v1822, -1.5
        %v1827 = vsub.f32 %v1823, -1.5
        %v1828 = vsub.f32 %v1822, -1.1666666
        %v1829 = vsub.f32 %v1823, -1.1666666
        %v1830 = vsub.f32 %v1822, -0.8333333
        %v1831 = vsub.f32 %v1823, -0.8333333
        %v1832 = vsub.f32 %v1822, -0.5
        %v1833 = vsub.f32 %v1823, -0.5
        %v1834 = vsub.f32 %v1822, -0.16666667
        %v1835 = vsub.f32 %v1823, -0.16666667
        %v1836 = vsub.f32 %v1822, 0.16666667
        %v1837 = vsub.f32 %v1823, 0.16666667
        %v1838 = vsub.f32 %v1822, 0.5
        %v1839 = vsub.f32 %v1823, 0.5
        %v1840 = vsub.f32 %v1822, 0.8333333
        %v1841 = vsub.f32 %v1823, 0.8333333
        %v1842 = vmul.f32 %v1824, %v1788
        %v1843 = vmul.f32 %v1825, %v1789
        %v1844 = vmul.f32 %v1826, %v1792
        %v1845 = vmul.f32 %v1827, %v1793
        %v1846 = vmul.f32 %v1828, %v1796
        %v1847 = vmul.f32 %v1829, %v1797
        %v1848 = vmul.f32 %v1830, %v1800
        %v1849 = vmul.f32 %v1831, %v1801
        %v1850 = vmul.f32 %v1832, %v1804
        %v1851 = vmul.f32 %v1833, %v1805
        %v1852 = vmul.f32 %v1834, %v1808
        %v1853 = vmul.f32 %v1835, %v1809
        %v1854 = vmul.f32 %v1836, %v1812
        %v1855 = vmul.f32 %v1837, %v1813
        %v1856 = vmul.f32 %v1838, %v1816
        %v1857 = vmul.f32 %v1839, %v1817
        %v1858 = vmul.f32 %v1840, %v1820
        %v1859 = vmul.f32 %v1841, %v1821
        %v1860 = vadd.f32 %v1842, %v1792
        %v1861 = vadd.f32 %v1843, %v1793
        %v1862 = vsub.f32 %v1860, %v1844
        %v1863 = vsub.f32 %v1861, %v1845
        %v1864 = vadd.f32 %v1844, %v1796
        %v1865 = vadd.f32 %v1845, %v1797
        %v1866 = vsub.f32 %v1864, %v1846
        %v1867 = vsub.f32 %v1865, %v1847
        %v1868 = vadd.f32 %v1846, %v1800
        %v1869 = vadd.f32 %v1847, %v1801
        %v1870 = vsub.f32 %v1868, %v1848
        %v1871 = vsub.f32 %v1869, %v1849
        %v1872 = vadd.f32 %v1848, %v1804
        %v1873 = vadd.f32 %v1849, %v1805
        %v1874 = vsub.f32 %v1872, %v1850
        %v1875 = vsub.f32 %v1873, %v1851
        %v1876 = vadd.f32 %v1850, %v1808
        %v1877 = vadd.f32 %v1851, %v1809
        %v1878 = vsub.f32 %v1876, %v1852
        %v1879 = vsub.f32 %v1877, %v1853
        %v1880 = vadd.f32 %v1852, %v1812
        %v1881 = vadd.f32 %v1853, %v1813
        %v1882 = vsub.f32 %v1880, %v1854
        %v1883 = vsub.f32 %v1881, %v1855
        %v1884 = vadd.f32 %v1854, %v1816
        %v1885 = vadd.f32 %v1855, %v1817
        %v1886 = vsub.f32 %v1884, %v1856
        %v1887 = vsub.f32 %v1885, %v1857
        %v1888 = vadd.f32 %v1856, %v1820
        %v1889 = vadd.f32 %v1857, %v1821
        %v1890 = vsub.f32 %v1888, %v1858
        %v1891 = vsub.f32 %v1889, %v1859
        %1892 = vst [vmem:[#allocation2] sm:$0xff] %v1862
        %1893 = vst [vmem:[#allocation2 + $0x40] sm:$0xff] %v1863
        %1894 = vst [vmem:[#allocation2 + $0x8] sm:$0xff] %v1866
        %1895 = vst [vmem:[#allocation2 + $0x48] sm:$0xff] %v1867
        %1896 = vst [vmem:[#allocation2 + $0x10] sm:$0xff] %v1870
        %1897 = vst [vmem:[#allocation2 + $0x50] sm:$0xff] %v1871
        %1898 = vst [vmem:[#allocation2 + $0x18] sm:$0xff] %v1874
        %1899 = vst [vmem:[#allocation2 + $0x58] sm:$0xff] %v1875
        %1900 = vst [vmem:[#allocation2 + $0x20] sm:$0xff] %v1878
        %1901 = vst [vmem:[#allocation2 + $0x60] sm:$0xff] %v1879
        %1902 = vst [vmem:[#allocation2 + $0x28] sm:$0xff] %v1882
        %1903 = vst [vmem:[#allocation2 + $0x68] sm:$0xff] %v1883
        %1904 = vst [vmem:[#allocation2 + $0x30] sm:$0xff] %v1886
        %1905 = vst [vmem:[#allocation2 + $0x70] sm:$0xff] %v1887
        %1906 = vst [vmem:[#allocation2 + $0x38] sm:$0xff] %v1890
        %1907 = vst [vmem:[#allocation2 + $0x78] sm:$0xff] %v1891
        %v1908 = vld [vmem:[#allocation4] sm:$0xff]
        %v1909 = vld [vmem:[#allocation4 + $0x8] sm:$0xff]
        %1910 = vmatprep.subr.mxu0 0.0
        %1911 = vmatpush1.msra.mxu0 %v1386
        %1912 = vmatprep.subr.mxu0 0.0
        %1913 = vmatpush1.msra.mxu0 %v1387
        %1914 = vmatprep.subr.mxu0 0.0
        %1915 = vmatpush1.msra.mxu0 %v1388
        %1916 = vmatprep.subr.mxu0 0.0
        %1917 = vmatpush1.msra.mxu0 %v1389
        %1918 = vmatprep.subr.mxu0 0.0
        %1919 = vmatpush1.msra.mxu0 %v1390
        %1920 = vmatprep.subr.mxu0 0.0
        %1921 = vmatpush1.msra.mxu0 %v1391
        %1922 = vmatprep.subr.mxu0 0.0
        %1923 = vmatpush1.msra.mxu0 %v1392
        %1924 = vmatprep.subr.mxu0 0.0
        %1925 = vmatpush1.msra.mxu0 %v1393
        %1926 = vmatprep.subr.mxu0 0.0
        %1927 = vmatpush1.msra.mxu0 %v1394
        %1928 = vmatprep.subr.mxu0 0.0
        %1929 = vmatpush1.msra.mxu0 %v1395
        %1930 = vmatprep.subr.mxu0 0.0
        %1931 = vmatpush1.msra.mxu0 %v1396
        %1932 = vmatprep.subr.mxu0 0.0
        %1933 = vmatpush1.msra.mxu0 %v1397
        %1934 = vmatprep.subr.mxu0 0.0
        %1935 = vmatpush1.msra.mxu0 %v1398
        %1936 = vmatprep.subr.mxu0 0.0
        %1937 = vmatpush1.msra.mxu0 %v1399
        %1938 = vmatprep.subr.mxu0 0.0
        %1939 = vmatpush1.msra.mxu0 %v1400
        %1940 = vmatprep.subr.mxu0 0.0
        %1941 = vmatpush1.msra.mxu0 %v1401
        %1942 = vmatprep.subr.mxu0 0.0
        %1943 = vmatpush1.msra.mxu0 0.0
        %1944 = vmatprep.subr.mxu0 0.0
        %1945 = vmatpush1.msra.mxu0 0.0
        %1946 = vmatprep.subr.mxu0 0.0
        %1947 = vmatpush1.msra.mxu0 0.0
        %1948 = vmatprep.subr.mxu0 0.0
        %1949 = vmatpush1.msra.mxu0 0.0
        %1950 = vmatprep.subr.mxu0 0.0
        %1951 = vmatpush1.msra.mxu0 0.0
        %1952 = vmatprep.subr.mxu0 0.0
        %1953 = vmatpush1.msra.mxu0 0.0
        %1954 = vmatprep.subr.mxu0 0.0
        %1955 = vmatpush1.msra.mxu0 0.0
        %1956 = vmatprep.subr.mxu0 0.0
        %1957 = vmatpush1.msra.mxu0 0.0
        %1958 = vmatprep.subr.mxu0 0.0
        %1959 = vmatpush1.msra.mxu0 0.0
        %1960 = vmatprep.subr.mxu0 0.0
        %1961 = vmatpush1.msra.mxu0 0.0
        %1962 = vmatprep.subr.mxu0 0.0
        %1963 = vmatpush1.msra.mxu0 0.0
        %1964 = vmatprep.subr.mxu0 0.0
        %1965 = vmatpush1.msra.mxu0 0.0
        %1966 = vmatprep.subr.mxu0 0.0
        %1967 = vmatpush1.msra.mxu0 0.0
        %1968 = vmatprep.subr.mxu0 0.0
        %1969 = vmatpush1.msra.mxu0 0.0
        %1970 = vmatprep.subr.mxu0 0.0
        %1971 = vmatpush1.msra.mxu0 0.0
        %1972 = vmatprep.subr.mxu0 0.0
        %1973 = vmatpush1.msra.mxu0 0.0
        %1974 = vmatprep.mubr.f32.mxu0 0.0
        %1975 = vmatmul.mubr.f32.gmra.mrb[0].mxu0 %v1908
        %v1976 = vpop.f32.mrb[0].mxu0
        %v1977 = vadd.f32 0.0, %v1976
        %v1978 = vpop.f32.mrb[0].mxu0
        %1979 = vmatprep.mubr.f32.mxu0 0.0
        %1980 = vmatmul.mubr.f32.gmra.mrb[0].mxu0 %v1909
        %v1981 = vpop.f32.mrb[0].mxu0
        %v1982 = vadd.f32 0.0, %v1981
        %v1983 = vpop.f32.mrb[0].mxu0
        %1984 = vdwg.mxu0
        %v1985 = vld [vmem:[#allocation3] sm:$0xff]
        %v1986 = vld [vmem:[#allocation3 + $0x8] sm:$0xff]
        %1987 = vmatprep.subr.mxu0 0.0
        %1988 = vmatpush1.msra.mxu0 %v1402
        %1989 = vmatprep.subr.mxu0 0.0
        %1990 = vmatpush1.msra.mxu0 %v1403
        %1991 = vmatprep.subr.mxu0 0.0
        %1992 = vmatpush1.msra.mxu0 %v1404
        %1993 = vmatprep.subr.mxu0 0.0
        %1994 = vmatpush1.msra.mxu0 %v1405
        %1995 = vmatprep.subr.mxu0 0.0
        %1996 = vmatpush1.msra.mxu0 %v1406
        %1997 = vmatprep.subr.mxu0 0.0
        %1998 = vmatpush1.msra.mxu0 %v1407
        %1999 = vmatprep.subr.mxu0 0.0
        %2000 = vmatpush1.msra.mxu0 %v1408
        %2001 = vmatprep.subr.mxu0 0.0
        %2002 = vmatpush1.msra.mxu0 %v1409
        %2003 = vmatprep.subr.mxu0 0.0
        %2004 = vmatpush1.msra.mxu0 %v1410
        %2005 = vmatprep.subr.mxu0 0.0
        %2006 = vmatpush1.msra.mxu0 %v1411
        %2007 = vmatprep.subr.mxu0 0.0
        %2008 = vmatpush1.msra.mxu0 %v1412
        %2009 = vmatprep.subr.mxu0 0.0
        %2010 = vmatpush1.msra.mxu0 %v1413
        %2011 = vmatprep.subr.mxu0 0.0
        %2012 = vmatpush1.msra.mxu0 %v1414
        %2013 = vmatprep.subr.mxu0 0.0
        %2014 = vmatpush1.msra.mxu0 %v1415
        %2015 = vmatprep.subr.mxu0 0.0
        %2016 = vmatpush1.msra.mxu0 %v1416
        %2017 = vmatprep.subr.mxu0 0.0
        %2018 = vmatpush1.msra.mxu0 %v1417
        %2019 = vmatprep.subr.mxu0 0.0
        %2020 = vmatpush1.msra.mxu0 0.0
        %2021 = vmatprep.subr.mxu0 0.0
        %2022 = vmatpush1.msra.mxu0 0.0
        %2023 = vmatprep.subr.mxu0 0.0
        %2024 = vmatpush1.msra.mxu0 0.0
        %2025 = vmatprep.subr.mxu0 0.0
        %2026 = vmatpush1.msra.mxu0 0.0
        %2027 = vmatprep.subr.mxu0 0.0
        %2028 = vmatpush1.msra.mxu0 0.0
        %2029 = vmatprep.subr.mxu0 0.0
        %2030 = vmatpush1.msra.mxu0 0.0
        %2031 = vmatprep.subr.mxu0 0.0
        %2032 = vmatpush1.msra.mxu0 0.0
        %2033 = vmatprep.subr.mxu0 0.0
        %2034 = vmatpush1.msra.mxu0 0.0
        %2035 = vmatprep.subr.mxu0 0.0
        %2036 = vmatpush1.msra.mxu0 0.0
        %2037 = vmatprep.subr.mxu0 0.0
        %2038 = vmatpush1.msra.mxu0 0.0
        %2039 = vmatprep.subr.mxu0 0.0
        %2040 = vmatpush1.msra.mxu0 0.0
        %2041 = vmatprep.subr.mxu0 0.0
        %2042 = vmatpush1.msra.mxu0 0.0
        %2043 = vmatprep.subr.mxu0 0.0
        %2044 = vmatpush1.msra.mxu0 0.0
        %2045 = vmatprep.subr.mxu0 0.0
        %2046 = vmatpush1.msra.mxu0 0.0
        %2047 = vmatprep.subr.mxu0 0.0
        %2048 = vmatpush1.msra.mxu0 0.0
        %2049 = vmatprep.subr.mxu0 0.0
        %2050 = vmatpush1.msra.mxu0 0.0
        %2051 = vmatprep.mubr.f32.mxu0 0.0
        %2052 = vmatmul.mubr.f32.gmra.mrb[0].mxu0 %v1985
        %v2053 = vpop.f32.mrb[0].mxu0
        %v2054 = vadd.f32 0.0, %v2053
        %v2055 = vpop.f32.mrb[0].mxu0
        %2056 = vmatprep.mubr.f32.mxu0 0.0
        %2057 = vmatmul.mubr.f32.gmra.mrb[0].mxu0 %v1986
        %v2058 = vpop.f32.mrb[0].mxu0
        %v2059 = vadd.f32 0.0, %v2058
        %v2060 = vpop.f32.mrb[0].mxu0
        %2061 = vdwg.mxu0
        %v2062 = vmul.f32 %v2054, %v1977
        %v2063 = vmul.f32 %v2059, %v1982
        %v2064 = vld [vmem:[#allocation2] sm:$0xff]
        %v2065 = vld [vmem:[#allocation2 + $0x8] sm:$0xff]
        %v2066 = vld [vmem:[#allocation2 + $0x10] sm:$0xff]
        %v2067 = vld [vmem:[#allocation2 + $0x18] sm:$0xff]
        %v2068 = vld [vmem:[#allocation2 + $0x20] sm:$0xff]
        %v2069 = vld [vmem:[#allocation2 + $0x28] sm:$0xff]
        %v2070 = vld [vmem:[#allocation2 + $0x30] sm:$0xff]
        %v2071 = vld [vmem:[#allocation2 + $0x38] sm:$0xff]
        %v2072 = vld [vmem:[#allocation2 + $0x40] sm:$0xff]
        %v2073 = vld [vmem:[#allocation2 + $0x48] sm:$0xff]
        %v2074 = vld [vmem:[#allocation2 + $0x50] sm:$0xff]
        %v2075 = vld [vmem:[#allocation2 + $0x58] sm:$0xff]
        %v2076 = vld [vmem:[#allocation2 + $0x60] sm:$0xff]
        %v2077 = vld [vmem:[#allocation2 + $0x68] sm:$0xff]
        %v2078 = vld [vmem:[#allocation2 + $0x70] sm:$0xff]
        %v2079 = vld [vmem:[#allocation2 + $0x78] sm:$0xff]
        %2080 = vmatprep.subr.mxu0 0.0
        %2081 = vmatpush1.msra.mxu0 %v1418
        %2082 = vmatprep.subr.mxu0 0.0
        %2083 = vmatpush1.msra.mxu0 %v1419
        %2084 = vmatprep.subr.mxu0 0.0
        %2085 = vmatpush1.msra.mxu0 %v1420
        %2086 = vmatprep.subr.mxu0 0.0
        %2087 = vmatpush1.msra.mxu0 %v1421
        %2088 = vmatprep.subr.mxu0 0.0
        %2089 = vmatpush1.msra.mxu0 %v1422
        %2090 = vmatprep.subr.mxu0 0.0
        %2091 = vmatpush1.msra.mxu0 %v1423
        %2092 = vmatprep.subr.mxu0 0.0
        %2093 = vmatpush1.msra.mxu0 %v1424
        %2094 = vmatprep.subr.mxu0 0.0
        %2095 = vmatpush1.msra.mxu0 %v1425
        %2096 = vmatprep.subr.mxu0 0.0
        %2097 = vmatpush1.msra.mxu0 %v1426
        %2098 = vmatprep.subr.mxu0 0.0
        %2099 = vmatpush1.msra.mxu0 %v1427
        %2100 = vmatprep.subr.mxu0 0.0
        %2101 = vmatpush1.msra.mxu0 %v1428
        %2102 = vmatprep.subr.mxu0 0.0
        %2103 = vmatpush1.msra.mxu0 %v1429
        %2104 = vmatprep.subr.mxu0 0.0
        %2105 = vmatpush1.msra.mxu0 %v1430
        %2106 = vmatprep.subr.mxu0 0.0
        %2107 = vmatpush1.msra.mxu0 %v1431
        %2108 = vmatprep.subr.mxu0 0.0
        %2109 = vmatpush1.msra.mxu0 %v1432
        %2110 = vmatprep.subr.mxu0 0.0
        %2111 = vmatpush1.msra.mxu0 %v1433
        %2112 = vmatprep.subr.mxu0 0.0
        %2113 = vmatpush1.msra.mxu0 %v1434
        %2114 = vmatprep.subr.mxu0 0.0
        %2115 = vmatpush1.msra.mxu0 %v1435
        %2116 = vmatprep.subr.mxu0 0.0
        %2117 = vmatpush1.msra.mxu0 %v1436
        %2118 = vmatprep.subr.mxu0 0.0
        %2119 = vmatpush1.msra.mxu0 %v1437
        %2120 = vmatprep.subr.mxu0 0.0
        %2121 = vmatpush1.msra.mxu0 %v1438
        %2122 = vmatprep.subr.mxu0 0.0
        %2123 = vmatpush1.msra.mxu0 %v1439
        %2124 = vmatprep.subr.mxu0 0.0
        %2125 = vmatpush1.msra.mxu0 %v1440
        %2126 = vmatprep.subr.mxu0 0.0
        %2127 = vmatpush1.msra.mxu0 %v1441
        %2128 = vmatprep.subr.mxu0 0.0
        %2129 = vmatpush1.msra.mxu0 %v1442
        %2130 = vmatprep.subr.mxu0 0.0
        %2131 = vmatpush1.msra.mxu0 %v1443
        %2132 = vmatprep.subr.mxu0 0.0
        %2133 = vmatpush1.msra.mxu0 %v1444
        %2134 = vmatprep.subr.mxu0 0.0
        %2135 = vmatpush1.msra.mxu0 %v1445
        %2136 = vmatprep.subr.mxu0 0.0
        %2137 = vmatpush1.msra.mxu0 %v1446
        %2138 = vmatprep.subr.mxu0 0.0
        %2139 = vmatpush1.msra.mxu0 %v1447
        %2140 = vmatprep.subr.mxu0 0.0
        %2141 = vmatpush1.msra.mxu0 %v1448
        %2142 = vmatprep.subr.mxu0 0.0
        %2143 = vmatpush1.msra.mxu0 %v1449
        %2144 = vmatprep.mubr.f32.mxu0 %v2065
        %2145 = vmatmul.mubr.f32.gmra.mrb[0].mxu0 %v2064
        %v2146 = vpop.f32.mrb[0].mxu0
        %v2147 = vadd.f32 0.0, %v2146
        %v2148 = vpop.f32.mrb[0].mxu0
        %2149 = vmatprep.mubr.f32.mxu0 %v2073
        %2150 = vmatmul.mubr.f32.gmra.mrb[0].mxu0 %v2072
        %v2151 = vpop.f32.mrb[0].mxu0
        %v2152 = vadd.f32 0.0, %v2151
        %v2153 = vpop.f32.mrb[0].mxu0
        %2154 = vdwg.mxu0
        %2155 = vmatprep.subr.mxu0 0.0
        %2156 = vmatpush1.msra.mxu0 %v1450
        %2157 = vmatprep.subr.mxu0 0.0
        %2158 = vmatpush1.msra.mxu0 %v1451
        %2159 = vmatprep.subr.mxu0 0.0
        %2160 = vmatpush1.msra.mxu0 %v1452
        %2161 = vmatprep.subr.mxu0 0.0
        %2162 = vmatpush1.msra.mxu0 %v1453
        %2163 = vmatprep.subr.mxu0 0.0
        %2164 = vmatpush1.msra.mxu0 %v1454
        %2165 = vmatprep.subr.mxu0 0.0
        %2166 = vmatpush1.msra.mxu0 %v1455
        %2167 = vmatprep.subr.mxu0 0.0
        %2168 = vmatpush1.msra.mxu0 %v1456
        %2169 = vmatprep.subr.mxu0 0.0
        %2170 = vmatpush1.msra.mxu0 %v1457
        %2171 = vmatprep.subr.mxu0 0.0
        %2172 = vmatpush1.msra.mxu0 %v1458
        %2173 = vmatprep.subr.mxu0 0.0
        %2174 = vmatpush1.msra.mxu0 %v1459
        %2175 = vmatprep.subr.mxu0 0.0
        %2176 = vmatpush1.msra.mxu0 %v1460
        %2177 = vmatprep.subr.mxu0 0.0
        %2178 = vmatpush1.msra.mxu0 %v1461
        %2179 = vmatprep.subr.mxu0 0.0
        %2180 = vmatpush1.msra.mxu0 %v1462
        %2181 = vmatprep.subr.mxu0 0.0
        %2182 = vmatpush1.msra.mxu0 %v1463
        %2183 = vmatprep.subr.mxu0 0.0
        %2184 = vmatpush1.msra.mxu0 %v1464
        %2185 = vmatprep.subr.mxu0 0.0
        %2186 = vmatpush1.msra.mxu0 %v1465
        %2187 = vmatprep.subr.mxu0 0.0
        %2188 = vmatpush1.msra.mxu0 %v1466
        %2189 = vmatprep.subr.mxu0 0.0
        %2190 = vmatpush1.msra.mxu0 %v1467
        %2191 = vmatprep.subr.mxu0 0.0
        %2192 = vmatpush1.msra.mxu0 %v1468
        %2193 = vmatprep.subr.mxu0 0.0
        %2194 = vmatpush1.msra.mxu0 %v1469
        %2195 = vmatprep.subr.mxu0 0.0
        %2196 = vmatpush1.msra.mxu0 %v1470
        %2197 = vmatprep.subr.mxu0 0.0
        %2198 = vmatpush1.msra.mxu0 %v1471
        %2199 = vmatprep.subr.mxu0 0.0
        %2200 = vmatpush1.msra.mxu0 %v1472
        %2201 = vmatprep.subr.mxu0 0.0
        %2202 = vmatpush1.msra.mxu0 %v1473
        %2203 = vmatprep.subr.mxu0 0.0
        %2204 = vmatpush1.msra.mxu0 %v1474
        %2205 = vmatprep.subr.mxu0 0.0
        %2206 = vmatpush1.msra.mxu0 %v1475
        %2207 = vmatprep.subr.mxu0 0.0
        %2208 = vmatpush1.msra.mxu0 %v1476
        %2209 = vmatprep.subr.mxu0 0.0
        %2210 = vmatpush1.msra.mxu0 %v1477
        %2211 = vmatprep.subr.mxu0 0.0
        %2212 = vmatpush1.msra.mxu0 %v1478
        %2213 = vmatprep.subr.mxu0 0.0
        %2214 = vmatpush1.msra.mxu0 %v1479
        %2215 = vmatprep.subr.mxu0 0.0
        %2216 = vmatpush1.msra.mxu0 %v1480
        %2217 = vmatprep.subr.mxu0 0.0
        %2218 = vmatpush1.msra.mxu0 %v1481
        %2219 = vmatprep.mubr.f32.mxu0 %v2067
        %2220 = vmatmul.mubr.f32.gmra.mrb[0].mxu0 %v2066
        %v2221 = vpop.f32.mrb[0].mxu0
        %v2222 = vadd.f32 %v2147, %v2221
        %v2223 = vpop.f32.mrb[0].mxu0
        %2224 = vmatprep.mubr.f32.mxu0 %v2075
        %2225 = vmatmul.mubr.f32.gmra.mrb[0].mxu0 %v2074
        %v2226 = vpop.f32.mrb[0].mxu0
        %v2227 = vadd.f32 %v2152, %v2226
        %v2228 = vpop.f32.mrb[0].mxu0
        %2229 = vdwg.mxu0
        %2230 = vmatprep.subr.mxu0 0.0
        %2231 = vmatpush1.msra.mxu0 %v1482
        %2232 = vmatprep.subr.mxu0 0.0
        %2233 = vmatpush1.msra.mxu0 %v1483
        %2234 = vmatprep.subr.mxu0 0.0
        %2235 = vmatpush1.msra.mxu0 %v1484
        %2236 = vmatprep.subr.mxu0 0.0
        %2237 = vmatpush1.msra.mxu0 %v1485
        %2238 = vmatprep.subr.mxu0 0.0
        %2239 = vmatpush1.msra.mxu0 %v1486
        %2240 = vmatprep.subr.mxu0 0.0
        %2241 = vmatpush1.msra.mxu0 %v1487
        %2242 = vmatprep.subr.mxu0 0.0
        %2243 = vmatpush1.msra.mxu0 %v1488
        %2244 = vmatprep.subr.mxu0 0.0
        %2245 = vmatpush1.msra.mxu0 %v1489
        %2246 = vmatprep.subr.mxu0 0.0
        %2247 = vmatpush1.msra.mxu0 %v1490
        %2248 = vmatprep.subr.mxu0 0.0
        %2249 = vmatpush1.msra.mxu0 %v1491
        %2250 = vmatprep.subr.mxu0 0.0
        %2251 = vmatpush1.msra.mxu0 %v1492
        %2252 = vmatprep.subr.mxu0 0.0
        %2253 = vmatpush1.msra.mxu0 %v1493
        %2254 = vmatprep.subr.mxu0 0.0
        %2255 = vmatpush1.msra.mxu0 %v1494
        %2256 = vmatprep.subr.mxu0 0.0
        %2257 = vmatpush1.msra.mxu0 %v1495
        %2258 = vmatprep.subr.mxu0 0.0
        %2259 = vmatpush1.msra.mxu0 %v1496
        %2260 = vmatprep.subr.mxu0 0.0
        %2261 = vmatpush1.msra.mxu0 %v1497
        %2262 = vmatprep.subr.mxu0 0.0
        %2263 = vmatpush1.msra.mxu0 %v1498
        %2264 = vmatprep.subr.mxu0 0.0
        %2265 = vmatpush1.msra.mxu0 %v1499
        %2266 = vmatprep.subr.mxu0 0.0
        %2267 = vmatpush1.msra.mxu0 %v1500
        %2268 = vmatprep.subr.mxu0 0.0
        %2269 = vmatpush1.msra.mxu0 %v1501
        %2270 = vmatprep.subr.mxu0 0.0
        %2271 = vmatpush1.msra.mxu0 %v1502
        %2272 = vmatprep.subr.mxu0 0.0
        %2273 = vmatpush1.msra.mxu0 %v1503
        %2274 = vmatprep.subr.mxu0 0.0
        %2275 = vmatpush1.msra.mxu0 %v1504
        %2276 = vmatprep.subr.mxu0 0.0
        %2277 = vmatpush1.msra.mxu0 %v1505
        %2278 = vmatprep.subr.mxu0 0.0
        %2279 = vmatpush1.msra.mxu0 %v1506
        %2280 = vmatprep.subr.mxu0 0.0
        %2281 = vmatpush1.msra.mxu0 %v1507
        %2282 = vmatprep.subr.mxu0 0.0
        %2283 = vmatpush1.msra.mxu0 %v1508
        %2284 = vmatprep.subr.mxu0 0.0
        %2285 = vmatpush1.msra.mxu0 %v1509
        %2286 = vmatprep.subr.mxu0 0.0
        %2287 = vmatpush1.msra.mxu0 %v1510
        %2288 = vmatprep.subr.mxu0 0.0
        %2289 = vmatpush1.msra.mxu0 %v1511
        %2290 = vmatprep.subr.mxu0 0.0
        %2291 = vmatpush1.msra.mxu0 %v1512
        %2292 = vmatprep.subr.mxu0 0.0
        %2293 = vmatpush1.msra.mxu0 %v1513
        %2294 = vmatprep.mubr.f32.mxu0 %v2069
        %2295 = vmatmul.mubr.f32.gmra.mrb[0].mxu0 %v2068
        %v2296 = vpop.f32.mrb[0].mxu0
        %v2297 = vadd.f32 %v2222, %v2296
        %v2298 = vpop.f32.mrb[0].mxu0
        %2299 = vmatprep.mubr.f32.mxu0 %v2077
        %2300 = vmatmul.mubr.f32.gmra.mrb[0].mxu0 %v2076
        %v2301 = vpop.f32.mrb[0].mxu0
        %v2302 = vadd.f32 %v2227, %v2301
        %v2303 = vpop.f32.mrb[0].mxu0
        %2304 = vdwg.mxu0
        %2305 = vmatprep.subr.mxu0 0.0
        %2306 = vmatpush1.msra.mxu0 %v1514
        %2307 = vmatprep.subr.mxu0 0.0
        %2308 = vmatpush1.msra.mxu0 %v1515
        %2309 = vmatprep.subr.mxu0 0.0
        %2310 = vmatpush1.msra.mxu0 %v1516
        %2311 = vmatprep.subr.mxu0 0.0
        %2312 = vmatpush1.msra.mxu0 %v1517
        %2313 = vmatprep.subr.mxu0 0.0
        %2314 = vmatpush1.msra.mxu0 %v1518
        %2315 = vmatprep.subr.mxu0 0.0
        %2316 = vmatpush1.msra.mxu0 %v1519
        %2317 = vmatprep.subr.mxu0 0.0
        %2318 = vmatpush1.msra.mxu0 %v1520
        %2319 = vmatprep.subr.mxu0 0.0
        %2320 = vmatpush1.msra.mxu0 %v1521
        %2321 = vmatprep.subr.mxu0 0.0
        %2322 = vmatpush1.msra.mxu0 %v1522
        %2323 = vmatprep.subr.mxu0 0.0
        %2324 = vmatpush1.msra.mxu0 %v1523
        %2325 = vmatprep.subr.mxu0 0.0
        %2326 = vmatpush1.msra.mxu0 %v1524
        %2327 = vmatprep.subr.mxu0 0.0
        %2328 = vmatpush1.msra.mxu0 %v1525
        %2329 = vmatprep.subr.mxu0 0.0
        %2330 = vmatpush1.msra.mxu0 %v1526
        %2331 = vmatprep.subr.mxu0 0.0
        %2332 = vmatpush1.msra.mxu0 %v1527
        %2333 = vmatprep.subr.mxu0 0.0
        %2334 = vmatpush1.msra.mxu0 %v1528
        %2335 = vmatprep.subr.mxu0 0.0
        %2336 = vmatpush1.msra.mxu0 %v1529
        %2337 = vmatprep.subr.mxu0 0.0
        %2338 = vmatpush1.msra.mxu0 %v1530
        %2339 = vmatprep.subr.mxu0 0.0
        %2340 = vmatpush1.msra.mxu0 %v1531
        %2341 = vmatprep.subr.mxu0 0.0
        %2342 = vmatpush1.msra.mxu0 %v1532
        %2343 = vmatprep.subr.mxu0 0.0
        %2344 = vmatpush1.msra.mxu0 %v1533
        %2345 = vmatprep.subr.mxu0 0.0
        %2346 = vmatpush1.msra.mxu0 %v1534
        %2347 = vmatprep.subr.mxu0 0.0
        %2348 = vmatpush1.msra.mxu0 %v1535
        %2349 = vmatprep.subr.mxu0 0.0
        %2350 = vmatpush1.msra.mxu0 %v1536
        %2351 = vmatprep.subr.mxu0 0.0
        %2352 = vmatpush1.msra.mxu0 %v1537
        %2353 = vmatprep.subr.mxu0 0.0
        %2354 = vmatpush1.msra.mxu0 %v1538
        %2355 = vmatprep.subr.mxu0 0.0
        %2356 = vmatpush1.msra.mxu0 %v1539
        %2357 = vmatprep.subr.mxu0 0.0
        %2358 = vmatpush1.msra.mxu0 %v1540
        %2359 = vmatprep.subr.mxu0 0.0
        %2360 = vmatpush1.msra.mxu0 %v1541
        %2361 = vmatprep.subr.mxu0 0.0
        %2362 = vmatpush1.msra.mxu0 %v1542
        %2363 = vmatprep.subr.mxu0 0.0
        %2364 = vmatpush1.msra.mxu0 %v1543
        %2365 = vmatprep.subr.mxu0 0.0
        %2366 = vmatpush1.msra.mxu0 %v1544
        %2367 = vmatprep.subr.mxu0 0.0
        %2368 = vmatpush1.msra.mxu0 %v1545
        %2369 = vmatprep.mubr.f32.mxu0 %v2071
        %2370 = vmatmul.mubr.f32.gmra.mrb[0].mxu0 %v2070
        %v2371 = vpop.f32.mrb[0].mxu0
        %v2372 = vadd.f32 %v2297, %v2371
        %v2373 = vpop.f32.mrb[0].mxu0
        %2374 = vmatprep.mubr.f32.mxu0 %v2079
        %2375 = vmatmul.mubr.f32.gmra.mrb[0].mxu0 %v2078
        %v2376 = vpop.f32.mrb[0].mxu0
        %v2377 = vadd.f32 %v2302, %v2376
        %v2378 = vpop.f32.mrb[0].mxu0
        %2379 = vdwg.mxu0
        %v2380 = vadd.f32 %v1977, %v2372
        %v2381 = vadd.f32 %v1982, %v2377
        %v2382 = vadd.f32 %v2380, %v2062
        %v2383 = vadd.f32 %v2381, %v2063
        %2384 = vst [vmem:[%s383] sm:$0xff] %v2382
        %2385 = vst [vmem:[%s383 + $0x8] sm:$0xff] %v2383
        %s2386 = sand.u32 %s187, 1
        %s2387 = scalar_lea.sflag [#allocation7], %s2386
        %s2388 = sand.u32 %s187, 1
        %s2389 = smul.addr %s2388, 16
        %s2390 = scalar_lea.vmem [#allocation17], %s2389
        // Predicated region
        $region77: #{tpu_custom_call.1} parent=47 // pred_check
          %p2391 = pneg %p197
        $region78: #{tpu_custom_call.1} parent=47 // pred_check_branch
          %2393 = sbr.rel (%p2391) target = $region80
        $region79: #{tpu_custom_call.1} parent=47 // pred_region
          %s2394 = smul.u32 2, %s27
          %s2396 = ssub.s32 256, 256
          %2397 = vsyncadd %s2387, %s2396
          %s2398 = smul.addr %s2394, 128
          %s2399 = scalar_lea.hbm %s7, %s2398
          %s2400 = sshll.u32 %s2390, 4
          %s2401 = int_to_ptr.vmem [resolvable:$true] %s2400
          %2406 = dma.vmem_to_hbm [thread:$0]  %s2401, 256, %s2399, %s2387, 128, 128, 8
        $region80: #{tpu_custom_call.1} parent=47 // pred_fallthru
          _
      $region48: #{tpu_custom_call.1} parent=5 // pred_fallthru
        _
      %p2407 = scmp.le.s32.totalorder 2, %s22
      // Predicated region
      $region81: #{tpu_custom_call.1} parent=5 // pred_check
        %p2408 = pneg %p2407
      $region82: #{tpu_custom_call.1} parent=5 // pred_check_branch
        %2410 = sbr.rel (%p2408) target = $region84
      $region83: #{tpu_custom_call.1} parent=5 // pred_region
        %s2411 = ssub.s32 %s22, 2
        // Predicated region
        $region85: #{tpu_custom_call.1} parent=83 // pred_check
          %p2412 = pneg %p203
        $region86: #{tpu_custom_call.1} parent=83 // pred_check_branch
          %2414 = sbr.rel (%p2412) target = $region88
        $region87: #{tpu_custom_call.1} parent=83 // pred_region
          %s2415 = sand.u32 %s188, 1
          %s2416 = scalar_lea.sflag [#allocation7], %s2415
          %s2417 = sand.u32 %s188, 1
          %s2418 = smul.addr %s2417, 16
          %s2419 = scalar_lea.vmem [#allocation17], %s2418
          %2420 = dma.done %s2416, 256
        $region88: #{tpu_custom_call.1} parent=83 // pred_fallthru
          _
      $region84: #{tpu_custom_call.1} parent=5 // pred_fallthru
        _
    $region6: #{tpu_custom_call.1} parent=1 // loop_footer
      %s26 = sadd.s32 1, %s22
    $region7: #{tpu_custom_call.1} parent=1 // loop_footer_branch
      %21 = sbr.rel target = $region3
    $region8: #{tpu_custom_call.1} parent=1 // loop_exit
      _
    %2421 = vsyncpa [#allocation6], 1
    %s2422 = scalar_lea.sflag [#allocation6], 1
    %2423 = vsyncpa %s2422, 1
    %2424 = vsyncpa [#allocation9], 1
    %2425 = vsyncpa [#allocation12], 1
    %2426 = vsyncpa [#allocation15], 1
    %2427 = vsyncpa [#allocation7], 1
    %s2428 = scalar_lea.sflag [#allocation7], 1
    %2429 = vsyncpa %s2428, 1

</llo_original>
